<compile_context>
chip_gen: v6e
topology: v6e:2x2x1
jax: 0.10.0
libtpu: 0.0.40
codegen_flags: <defaults>
</compile_context>

<pallas_src>
import functools
import math

import numpy as np
import jax
import jax.numpy as jnp
from jax.experimental import pallas as pl
from jax.experimental.pallas import tpu as pltpu


# ----------------------------------------------------------------------------
# Kernel 1: batched, h-independent precompute over all T*B rows at once.
# ----------------------------------------------------------------------------
def grud_precompute_kernel(xcnn_ref, x_ref, mask_ref, delta_ref,
                           w1_ref, b1_ref, w2_ref, b2_ref, wcf_ref, bcf_ref,
                           wd_ref, bd_ref, wx_ref, wm_ref, wxfc_ref, bxm_ref,
                           gxm_ref, rt_ref):
    dot = functools.partial(jnp.dot, preferred_element_type=jnp.float32)

    # CNN feature extractor (convs pre-folded to dense matmuls), batched M=T*B.
    c1 = jnp.maximum(dot(xcnn_ref[...], w1_ref[...]) + b1_ref[...], 0.0)
    c2 = jnp.maximum(dot(c1, w2_ref[...]) + b2_ref[...], 0.0)
    x_fc = dot(c2, wcf_ref[...]) + bcf_ref[...]            # (M, 128) padded
    # TODO(synk): nn.Dropout(0.5) treated as identity (eval-mode semantics).

    # rt = exp(-relu(d2r(cat(delta, ones))))  (ones columns folded into bias)
    rt_ref[...] = jnp.exp(
        -jnp.maximum(dot(delta_ref[...], wd_ref[...]) + bd_ref[...], 0.0))

    # Fused gate_x + gate_m (x2h(cat(x, x_fc)) + m2h(cat(mask, ones))),
    # ones columns folded into the combined bias.
    gxm_ref[...] = (dot(x_ref[...], wx_ref[...])
                    + dot(mask_ref[...], wm_ref[...])
                    + dot(x_fc, wxfc_ref[...])
                    + bxm_ref[...])


# ----------------------------------------------------------------------------
# Kernel 2: the serial GRU-D recurrence, single grid step, fori_loop over T.
# ----------------------------------------------------------------------------
def grud_recurrent_kernel(gxm_ref, rt_ref, wh_ref, bh_ref, wout_ref, bout_ref,
                          out_ref):
    T, Bp, _ = gxm_ref.shape
    Hp = rt_ref.shape[2]
    dot = functools.partial(jnp.dot, preferred_element_type=jnp.float32)

    wh = wh_ref[...]          # (Hp, 3*Hp), hoisted out of the loop
    bh = bh_ref[...]          # (1, 3*Hp)

    def step(t, h):
        g_xm = gxm_ref[t]                       # (Bp, 3*Hp) precomputed
        rt = rt_ref[t]                          # (Bp, Hp)   precomputed
        gh = dot(rt * h, wh) + bh               # only h-dependent matmul
        resetgate = jax.nn.sigmoid(g_xm[:, :Hp] + gh[:, :Hp])
        inputgate = jax.nn.sigmoid(g_xm[:, Hp:2 * Hp] + gh[:, Hp:2 * Hp])
        newgate = jnp.tanh(g_xm[:, 2 * Hp:] + resetgate * gh[:, 2 * Hp:])
        return newgate + inputgate * (h - newgate)

    h0 = jnp.zeros((Bp, Hp), jnp.float32)
    h = jax.lax.fori_loop(0, T, step, h0, unroll=True)

    out_ref[...] = dot(h, wout_ref[...]) + bout_ref[...]


# ----------------------------------------------------------------------------
# pallas_call wrappers
# ----------------------------------------------------------------------------
PRECOMP_WKEYS = ('w1f', 'b1f', 'w2f', 'b2f', 'wcf', 'bcf',
                 'wd', 'bd', 'wx', 'wm', 'wxfc', 'bxm')


def grud_precompute(xcnn_f, x_f, mask_f, delta_f, params):
    M = xcnn_f.shape[0]
    Hp3 = params['bxm'].shape[1]
    Hp = params['bd'].shape[1]
    weights = [params[k] for k in PRECOMP_WKEYS]

    in_specs = [pl.BlockSpec(a.shape, lambda i: (0, 0))
                for a in (xcnn_f, x_f, mask_f, delta_f, *weights)]

    gxm, rt = pl.pallas_call(
        grud_precompute_kernel,
        out_shape=(jax.ShapeDtypeStruct((M, Hp3), jnp.float32),
                   jax.ShapeDtypeStruct((M, Hp), jnp.float32)),
        grid=(1,),
        in_specs=in_specs,
        out_specs=(pl.BlockSpec((M, Hp3), lambda i: (0, 0)),
                   pl.BlockSpec((M, Hp), lambda i: (0, 0))),
        compiler_params=pltpu.CompilerParams(
            dimension_semantics=("parallel",)),
    )(xcnn_f, x_f, mask_f, delta_f, *weights)
    return gxm, rt


def grud_recurrence(gxm_seq, rt_seq, params, output_dim):
    T, Bp, Hp3 = gxm_seq.shape
    wh, bh, wout, bout = (params['wh'], params['bh'],
                          params['wout'], params['bout'])
    return pl.pallas_call(
        grud_recurrent_kernel,
        out_shape=jax.ShapeDtypeStruct((Bp, output_dim), jnp.float32),
        grid=(1,),
        in_specs=[pl.BlockSpec(gxm_seq.shape, lambda i: (0, 0, 0)),
                  pl.BlockSpec(rt_seq.shape, lambda i: (0, 0, 0)),
                  pl.BlockSpec(wh.shape, lambda i: (0, 0)),
                  pl.BlockSpec(bh.shape, lambda i: (0, 0)),
                  pl.BlockSpec(wout.shape, lambda i: (0, 0)),
                  pl.BlockSpec(bout.shape, lambda i: (0, 0))],
        out_specs=pl.BlockSpec((Bp, output_dim), lambda i: (0, 0)),
        compiler_params=pltpu.CompilerParams(
            dimension_semantics=("arbitrary",)),
    )(gxm_seq, rt_seq, wh, bh, wout, bout)


def grud_forward(x_cnn, x, mask, delta, params, output_dim):
    """x_cnn: (B,T,Dc), x/mask/delta: (B,T,D) -> (B, output_dim)."""
    B, T, _ = x_cnn.shape
    Bp = ((B + 7) // 8) * 8         # pad batch to a full sublane tile
    padb = Bp - B

    def prep(a):
        if padb:
            a = jnp.pad(a, ((0, padb), (0, 0), (0, 0)))
        # time-major then flatten: rows ordered (t, b), so the precompute
        # output reshapes straight to (T, Bp, .) with no extra transpose.
        return jnp.transpose(a, (1, 0, 2)).reshape(T * Bp, a.shape[-1])

    xcnn_f, x_f, mask_f, delta_f = prep(x_cnn), prep(x), prep(mask), prep(delta)

    gxm, rt = grud_precompute(xcnn_f, x_f, mask_f, delta_f, params)
    gxm_seq = gxm.reshape(T, Bp, gxm.shape[1])
    rt_seq = rt.reshape(T, Bp, rt.shape[1])

    out = grud_recurrence(gxm_seq, rt_seq, params, output_dim)
    return out[:B]


# ----------------------------------------------------------------------------
# Parameter setup (deterministic, mirrors GRUDCell/GRUDModel __init__ shapes).
# PyTorch Linear: y = x @ W.T + b, W: (out, in); Conv1d W: (out_ch, in_ch, k).
# ----------------------------------------------------------------------------
def init_params(key, input_dim_cnn, input_dim, hidden_dim, output_dim):
    std = 1.0 / math.sqrt(hidden_dim)

    def u(k, shape):
        return jax.random.uniform(k, shape, jnp.float32, -std, std)

    keys = jax.random.split(key, 16)
    D_in = input_dim + 4  # convfc_size = 4
    return {
        'conv1_w': u(keys[0], (32, 1, 2)),
        'conv1_b': u(keys[1], (32,)),
        'conv2_w': u(keys[2], (32, 32, 4)),
        'conv2_b': u(keys[3], (32,)),
        'convfc_w': u(keys[4], (4, 32 * 16)),
        'convfc_b': u(keys[5], (4,)),
        'x2h_w': u(keys[6], (3 * hidden_dim, D_in)),
        'x2h_b': u(keys[7], (3 * hidden_dim,)),
        'h2h_w': u(keys[8], (3 * hidden_dim, hidden_dim)),
        'h2h_b': u(keys[9], (3 * hidden_dim,)),
        'm2h_w': u(keys[10], (3 * hidden_dim, D_in)),
        'm2h_b': u(keys[11], (3 * hidden_dim,)),
        'd2r_w': u(keys[12], (hidden_dim, D_in)),
        'd2r_b': u(keys[13], (hidden_dim,)),
        'fc_w': u(keys[14], (output_dim, hidden_dim)),
        'fc_b': u(keys[15], (output_dim,)),
    }


def fold_params(raw, input_dim_cnn, input_dim, hidden_dim,
                hp=128, fcp=128):
    """Fold convs into dense matmuls, fuse x2h+m2h, fold ones-concat into
    biases, and pad gate/hidden widths to 128-lane tiles (zero padding keeps
    the padded hidden columns identically zero)."""
    C = 32
    L1 = input_dim_cnn - 1          # after conv1 (k=2)
    L2 = L1 - 3                     # after conv2 (k=4)
    D = input_dim
    H = hidden_dim
    Hp = hp

    w1 = np.asarray(raw['conv1_w']); b1 = np.asarray(raw['conv1_b'])
    W1f = np.zeros((input_dim_cnn, C * L1), np.float32)
    for c in range(C):
        for l in range(L1):
            for k in range(2):
                W1f[l + k, c * L1 + l] = w1[c, 0, k]
    b1f = np.repeat(b1, L1)[None, :].astype(np.float32)

    w2 = np.asarray(raw['conv2_w']); b2 = np.asarray(raw['conv2_b'])
    W2f = np.zeros((C * L1, C * L2), np.float32)
    for co in range(C):
        for ci in range(C):
            for l in range(L2):
                for k in range(4):
                    W2f[ci * L1 + l + k, co * L2 + l] = w2[co, ci, k]
    b2f = np.repeat(b2, L2)[None, :].astype(np.float32)

    wcf = np.zeros((C * L2, fcp), np.float32)
    wcf[:, :4] = np.asarray(raw['convfc_w']).T
    bcf = np.zeros((1, fcp), np.float32)
    bcf[0, :4] = np.asarray(raw['convfc_b'])

    d2r_w = np.asarray(raw['d2r_w'])                      # (H, D+4)
    wd = np.zeros((D, Hp), np.float32)
    wd[:, :H] = d2r_w[:, :D].T
    bd = np.zeros((1, Hp), np.float32)
    bd[0, :H] = np.asarray(raw['d2r_b']) + d2r_w[:, D:].sum(axis=1)

    x2h_w = np.asarray(raw['x2h_w']); x2h_b = np.asarray(raw['x2h_b'])
    m2h_w = np.asarray(raw['m2h_w']); m2h_b = np.asarray(raw['m2h_b'])
    h2h_w = np.asarray(raw['h2h_w']); h2h_b = np.asarray(raw['h2h_b'])

    wx = np.zeros((D, 3 * Hp), np.float32)
    wm = np.zeros((D, 3 * Hp), np.float32)
    wxfc = np.zeros((fcp, 3 * Hp), np.float32)
    bxm = np.zeros((1, 3 * Hp), np.float32)
    wh = np.zeros((Hp, 3 * Hp), np.float32)
    bh = np.zeros((1, 3 * Hp), np.float32)
    for g in range(3):                                     # r, i, n gates
        rows = slice(g * H, (g + 1) * H)
        cols = slice(g * Hp, g * Hp + H)
        wx[:, cols] = x2h_w[rows, :D].T
        wm[:, cols] = m2h_w[rows, :D].T
        wxfc[:4, cols] = x2h_w[rows, D:].T
        bxm[0, cols] = (x2h_b[rows] + m2h_b[rows]
                        + m2h_w[rows, D:].sum(axis=1))
        wh[:H, cols] = h2h_w[rows, :].T
        bh[0, cols] = h2h_b[rows]

    output_dim = int(raw['fc_w'].shape[0])
    wout = np.zeros((Hp, output_dim), np.float32)
    wout[:H, :] = np.asarray(raw['fc_w']).T
    bout = np.asarray(raw['fc_b'])[None, :].astype(np.float32)

    folded = dict(w1f=W1f, b1f=b1f, w2f=W2f, b2f=b2f, wcf=wcf, bcf=bcf,
                  wd=wd, bd=bd, wx=wx, wm=wm, wxfc=wxfc, bxm=bxm,
                  wh=wh, bh=bh, wout=wout, bout=bout)
    return {k: jnp.asarray(v, jnp.float32) for k, v in folded.items()}


# ----------------------------------------------------------------------------
# Pure-JAX reference (direct transcription of the PyTorch forward, eval mode).
# ----------------------------------------------------------------------------
def reference_forward(raw, x_cnn, x, mask, delta, hidden_dim):
    B, T, Dc = x_cnn.shape
    H = hidden_dim
    w1, b1 = raw['conv1_w'], raw['conv1_b']
    w2, b2 = raw['conv2_w'], raw['conv2_b']
    L1, L2 = Dc - 1, Dc - 4
    h = jnp.zeros((B, H), jnp.float32)
    for t in range(T):
        xc, xt = x_cnn[:, t, :], x[:, t, :]
        mt, dt = mask[:, t, :], delta[:, t, :]
        p1 = jnp.stack([xc[:, k:k + L1] for k in range(2)], axis=-1)     # (B,L1,2)
        c1 = jax.nn.relu(jnp.einsum('blk,ck->bcl', p1, w1[:, 0, :])
                         + b1[None, :, None])
        p2 = jnp.stack([c1[:, :, k:k + L2] for k in range(4)], axis=-1)  # (B,32,L2,4)
        c2 = jax.nn.relu(jnp.einsum('bilk,cik->bcl', p2, w2)
                         + b2[None, :, None])
        flat = c2.reshape(B, -1)
        x_fc = flat @ raw['convfc_w'].T + raw['convfc_b']
        ones = jnp.ones((B, 4), jnp.float32)
        xcat = jnp.concatenate([xt, x_fc], axis=1)
        dcat = jnp.concatenate([dt, ones], axis=1)
        mcat = jnp.concatenate([mt, ones], axis=1)
        rt = jnp.exp(-jax.nn.relu(dcat @ raw['d2r_w'].T + raw['d2r_b']))
        gx = xcat @ raw['x2h_w'].T + raw['x2h_b']
        gh = (rt * h) @ raw['h2h_w'].T + raw['h2h_b']
        gm = mcat @ raw['m2h_w'].T + raw['m2h_b']
        i_r, i_i, i_n = gx[:, :H], gx[:, H:2 * H], gx[:, 2 * H:]
        h_r, h_i, h_n = gh[:, :H], gh[:, H:2 * H], gh[:, 2 * H:]
        m_r, m_i, m_n = gm[:, :H], gm[:, H:2 * H], gm[:, 2 * H:]
        resetgate = jax.nn.sigmoid(i_r + h_r + m_r)
        inputgate = jax.nn.sigmoid(i_i + h_i + m_i)
        newgate = jnp.tanh(i_n + resetgate * h_n + m_n)
        h = newgate + inputgate * (h - newgate)
    return h @ raw['fc_w'].T + raw['fc_b']


if __name__ == "__main__":
    key = jax.random.PRNGKey(0)
    B, T = 4, 8
    input_dim_cnn = 20   # forced by convfc = Linear(32*16, 4): (20-1)-3 = 16
    input_dim = 10
    hidden_dim = 32
    output_dim = 6

    kp, kx1, kx2, km, kd = jax.random.split(key, 5)
    raw = init_params(kp, input_dim_cnn, input_dim, hidden_dim, output_dim)
    params = fold_params(raw, input_dim_cnn, input_dim, hidden_dim)

    x_cnn = jax.random.normal(kx1, (B, T, input_dim_cnn), jnp.float32)
    x = jax.random.normal(kx2, (B, T, input_dim), jnp.float32)
    mask = (jax.random.uniform(km, (B, T, input_dim)) > 0.5).astype(jnp.float32)
    delta = jax.random.uniform(kd, (B, T, input_dim), dtype=jnp.float32)

    out = grud_forward(x_cnn, x, mask, delta, params, output_dim)
    out = jax.block_until_ready(out)
    assert out.shape == (B, output_dim)

    ref = reference_forward(raw, x_cnn, x, mask, delta, hidden_dim)
    np.testing.assert_allclose(np.asarray(out), np.asarray(ref),
                               rtol=1e-4, atol=1e-4)
    print("KERNEL_OK")
</pallas_src>

<mosaic_0001>
module attributes {stable_mosaic.version = 11 : i64} {
  func.func @grud_precompute_kernel(%arg0: i32, %arg1: memref<64x20xf32, #tpu.memory_space<vmem>>, %arg2: memref<64x10xf32, #tpu.memory_space<vmem>>, %arg3: memref<64x10xf32, #tpu.memory_space<vmem>>, %arg4: memref<64x10xf32, #tpu.memory_space<vmem>>, %arg5: memref<20x608xf32, #tpu.memory_space<vmem>>, %arg6: memref<1x608xf32, #tpu.memory_space<vmem>>, %arg7: memref<608x512xf32, #tpu.memory_space<vmem>>, %arg8: memref<1x512xf32, #tpu.memory_space<vmem>>, %arg9: memref<512x128xf32, #tpu.memory_space<vmem>>, %arg10: memref<1x128xf32, #tpu.memory_space<vmem>>, %arg11: memref<10x128xf32, #tpu.memory_space<vmem>>, %arg12: memref<1x128xf32, #tpu.memory_space<vmem>>, %arg13: memref<10x384xf32, #tpu.memory_space<vmem>>, %arg14: memref<10x384xf32, #tpu.memory_space<vmem>>, %arg15: memref<128x384xf32, #tpu.memory_space<vmem>>, %arg16: memref<1x384xf32, #tpu.memory_space<vmem>>, %arg17: memref<64x384xf32, #tpu.memory_space<vmem>>, %arg18: memref<64x128xf32, #tpu.memory_space<vmem>>) attributes {dimension_semantics = [#tpu.dimension_semantics<parallel>], iteration_bounds = array<i64: 1>, scalar_prefetch = 0 : i64, scratch_operands = 0 : i64, tpu.core_type = #tpu.core_type<tc>, window_params = [{pipeline_mode = #tpu.pipeline_mode<synchronous>, transform_indices = @transform_0, window_bounds = array<i64: 64, 20>}, {pipeline_mode = #tpu.pipeline_mode<synchronous>, transform_indices = @transform_1, window_bounds = array<i64: 64, 10>}, {pipeline_mode = #tpu.pipeline_mode<synchronous>, transform_indices = @transform_2, window_bounds = array<i64: 64, 10>}, {pipeline_mode = #tpu.pipeline_mode<synchronous>, transform_indices = @transform_3, window_bounds = array<i64: 64, 10>}, {pipeline_mode = #tpu.pipeline_mode<synchronous>, transform_indices = @transform_4, window_bounds = array<i64: 20, 608>}, {pipeline_mode = #tpu.pipeline_mode<synchronous>, transform_indices = @transform_5, window_bounds = array<i64: 1, 608>}, {pipeline_mode = #tpu.pipeline_mode<synchronous>, transform_indices = @transform_6, window_bounds = array<i64: 608, 512>}, {pipeline_mode = #tpu.pipeline_mode<synchronous>, transform_indices = @transform_7, window_bounds = array<i64: 1, 512>}, {pipeline_mode = #tpu.pipeline_mode<synchronous>, transform_indices = @transform_8, window_bounds = array<i64: 512, 128>}, {pipeline_mode = #tpu.pipeline_mode<synchronous>, transform_indices = @transform_9, window_bounds = array<i64: 1, 128>}, {pipeline_mode = #tpu.pipeline_mode<synchronous>, transform_indices = @transform_10, window_bounds = array<i64: 10, 128>}, {pipeline_mode = #tpu.pipeline_mode<synchronous>, transform_indices = @transform_11, window_bounds = array<i64: 1, 128>}, {pipeline_mode = #tpu.pipeline_mode<synchronous>, transform_indices = @transform_12, window_bounds = array<i64: 10, 384>}, {pipeline_mode = #tpu.pipeline_mode<synchronous>, transform_indices = @transform_13, window_bounds = array<i64: 10, 384>}, {pipeline_mode = #tpu.pipeline_mode<synchronous>, transform_indices = @transform_14, window_bounds = array<i64: 128, 384>}, {pipeline_mode = #tpu.pipeline_mode<synchronous>, transform_indices = @transform_15, window_bounds = array<i64: 1, 384>}, {pipeline_mode = #tpu.pipeline_mode<synchronous>, transform_indices = @transform_16, window_bounds = array<i64: 64, 384>}, {pipeline_mode = #tpu.pipeline_mode<synchronous>, transform_indices = @transform_17, window_bounds = array<i64: 64, 128>}]} {
    %c0 = arith.constant 0 : index
    %c0_0 = arith.constant 0 : index
    %0 = vector.load %arg1[%c0, %c0_0] : memref<64x20xf32, #tpu.memory_space<vmem>>, vector<64x20xf32>
    %c0_1 = arith.constant 0 : index
    %c0_2 = arith.constant 0 : index
    %1 = vector.load %arg5[%c0_1, %c0_2] : memref<20x608xf32, #tpu.memory_space<vmem>>, vector<20x608xf32>
    %cst = arith.constant dense<0.000000e+00> : vector<64x608xf32>
    %2 = tpu.matmul %0, %1, %cst {dimension_numbers = #tpu.dot_dimension_numbers<[1], [0], [0], [1], [0, 0, 1, 1], [], []>} : vector<64x20xf32>, vector<20x608xf32>, vector<64x608xf32> -> vector<64x608xf32>
    %c0_3 = arith.constant 0 : index
    %c0_4 = arith.constant 0 : index
    %3 = vector.load %arg6[%c0_3, %c0_4] : memref<1x608xf32, #tpu.memory_space<vmem>>, vector<1x608xf32>
    %4 = vector.broadcast %3 : vector<1x608xf32> to vector<64x608xf32>
    %5 = arith.addf %2, %4 : vector<64x608xf32>
    %cst_5 = arith.constant 0.000000e+00 : f32
    %6 = vector.broadcast %cst_5 : f32 to vector<64x608xf32>
    %7 = arith.maximumf %5, %6 : vector<64x608xf32>
    %c0_6 = arith.constant 0 : index
    %c0_7 = arith.constant 0 : index
    %8 = vector.load %arg7[%c0_6, %c0_7] : memref<608x512xf32, #tpu.memory_space<vmem>>, vector<608x512xf32>
    %cst_8 = arith.constant dense<0.000000e+00> : vector<64x512xf32>
    %9 = tpu.matmul %7, %8, %cst_8 {dimension_numbers = #tpu.dot_dimension_numbers<[1], [0], [0], [1], [0, 0, 1, 1], [], []>} : vector<64x608xf32>, vector<608x512xf32>, vector<64x512xf32> -> vector<64x512xf32>
    %c0_9 = arith.constant 0 : index
    %c0_10 = arith.constant 0 : index
    %10 = vector.load %arg8[%c0_9, %c0_10] : memref<1x512xf32, #tpu.memory_space<vmem>>, vector<1x512xf32>
    %11 = vector.broadcast %10 : vector<1x512xf32> to vector<64x512xf32>
    %12 = arith.addf %9, %11 : vector<64x512xf32>
    %cst_11 = arith.constant 0.000000e+00 : f32
    %13 = vector.broadcast %cst_11 : f32 to vector<64x512xf32>
    %14 = arith.maximumf %12, %13 : vector<64x512xf32>
    %c0_12 = arith.constant 0 : index
    %c0_13 = arith.constant 0 : index
    %15 = vector.load %arg9[%c0_12, %c0_13] : memref<512x128xf32, #tpu.memory_space<vmem>>, vector<512x128xf32>
    %cst_14 = arith.constant dense<0.000000e+00> : vector<64x128xf32>
    %16 = tpu.matmul %14, %15, %cst_14 {dimension_numbers = #tpu.dot_dimension_numbers<[1], [0], [0], [1], [0, 0, 1, 1], [], []>} : vector<64x512xf32>, vector<512x128xf32>, vector<64x128xf32> -> vector<64x128xf32>
    %c0_15 = arith.constant 0 : index
    %c0_16 = arith.constant 0 : index
    %17 = vector.load %arg10[%c0_15, %c0_16] : memref<1x128xf32, #tpu.memory_space<vmem>>, vector<1x128xf32>
    %18 = vector.broadcast %17 : vector<1x128xf32> to vector<64x128xf32>
    %19 = arith.addf %16, %18 : vector<64x128xf32>
    %c0_17 = arith.constant 0 : index
    %c0_18 = arith.constant 0 : index
    %20 = vector.load %arg4[%c0_17, %c0_18] : memref<64x10xf32, #tpu.memory_space<vmem>>, vector<64x10xf32>
    %c0_19 = arith.constant 0 : index
    %c0_20 = arith.constant 0 : index
    %21 = vector.load %arg11[%c0_19, %c0_20] : memref<10x128xf32, #tpu.memory_space<vmem>>, vector<10x128xf32>
    %cst_21 = arith.constant dense<0.000000e+00> : vector<64x128xf32>
    %22 = tpu.matmul %20, %21, %cst_21 {dimension_numbers = #tpu.dot_dimension_numbers<[1], [0], [0], [1], [0, 0, 1, 1], [], []>} : vector<64x10xf32>, vector<10x128xf32>, vector<64x128xf32> -> vector<64x128xf32>
    %c0_22 = arith.constant 0 : index
    %c0_23 = arith.constant 0 : index
    %23 = vector.load %arg12[%c0_22, %c0_23] : memref<1x128xf32, #tpu.memory_space<vmem>>, vector<1x128xf32>
    %24 = vector.broadcast %23 : vector<1x128xf32> to vector<64x128xf32>
    %25 = arith.addf %22, %24 : vector<64x128xf32>
    %cst_24 = arith.constant 0.000000e+00 : f32
    %26 = vector.broadcast %cst_24 : f32 to vector<64x128xf32>
    %27 = arith.maximumf %25, %26 : vector<64x128xf32>
    %cst_25 = arith.constant 0.000000e+00 : f32
    %28 = vector.broadcast %cst_25 : f32 to vector<64x128xf32>
    %29 = arith.subf %28, %27 : vector<64x128xf32>
    %30 = math.exp %29 : vector<64x128xf32>
    %c0_26 = arith.constant 0 : index
    %c0_27 = arith.constant 0 : index
    %31 = vector.load %arg18[%c0_26, %c0_27] : memref<64x128xf32, #tpu.memory_space<vmem>>, vector<64x128xf32>
    tpu.vector_store %arg18[%c0_26, %c0_27], %30 {strides = array<i32>} : memref<64x128xf32, #tpu.memory_space<vmem>>, vector<64x128xf32>,
    %c0_28 = arith.constant 0 : index
    %c0_29 = arith.constant 0 : index
    %32 = vector.load %arg2[%c0_28, %c0_29] : memref<64x10xf32, #tpu.memory_space<vmem>>, vector<64x10xf32>
    %c0_30 = arith.constant 0 : index
    %c0_31 = arith.constant 0 : index
    %33 = vector.load %arg13[%c0_30, %c0_31] : memref<10x384xf32, #tpu.memory_space<vmem>>, vector<10x384xf32>
    %cst_32 = arith.constant dense<0.000000e+00> : vector<64x384xf32>
    %34 = tpu.matmul %32, %33, %cst_32 {dimension_numbers = #tpu.dot_dimension_numbers<[1], [0], [0], [1], [0, 0, 1, 1], [], []>} : vector<64x10xf32>, vector<10x384xf32>, vector<64x384xf32> -> vector<64x384xf32>
    %c0_33 = arith.constant 0 : index
    %c0_34 = arith.constant 0 : index
    %35 = vector.load %arg3[%c0_33, %c0_34] : memref<64x10xf32, #tpu.memory_space<vmem>>, vector<64x10xf32>
    %c0_35 = arith.constant 0 : index
    %c0_36 = arith.constant 0 : index
    %36 = vector.load %arg14[%c0_35, %c0_36] : memref<10x384xf32, #tpu.memory_space<vmem>>, vector<10x384xf32>
    %cst_37 = arith.constant dense<0.000000e+00> : vector<64x384xf32>
    %37 = tpu.matmul %35, %36, %cst_37 {dimension_numbers = #tpu.dot_dimension_numbers<[1], [0], [0], [1], [0, 0, 1, 1], [], []>} : vector<64x10xf32>, vector<10x384xf32>, vector<64x384xf32> -> vector<64x384xf32>
    %38 = arith.addf %34, %37 : vector<64x384xf32>
    %c0_38 = arith.constant 0 : index
    %c0_39 = arith.constant 0 : index
    %39 = vector.load %arg15[%c0_38, %c0_39] : memref<128x384xf32, #tpu.memory_space<vmem>>, vector<128x384xf32>
    %cst_40 = arith.constant dense<0.000000e+00> : vector<64x384xf32>
    %40 = tpu.matmul %19, %39, %cst_40 {dimension_numbers = #tpu.dot_dimension_numbers<[1], [0], [0], [1], [0, 0, 1, 1], [], []>} : vector<64x128xf32>, vector<128x384xf32>, vector<64x384xf32> -> vector<64x384xf32>
    %41 = arith.addf %38, %40 : vector<64x384xf32>
    %c0_41 = arith.constant 0 : index
    %c0_42 = arith.constant 0 : index
    %42 = vector.load %arg16[%c0_41, %c0_42] : memref<1x384xf32, #tpu.memory_space<vmem>>, vector<1x384xf32>
    %43 = vector.broadcast %42 : vector<1x384xf32> to vector<64x384xf32>
    %44 = arith.addf %41, %43 : vector<64x384xf32>
    %c0_43 = arith.constant 0 : index
    %c0_44 = arith.constant 0 : index
    %45 = vector.load %arg17[%c0_43, %c0_44] : memref<64x384xf32, #tpu.memory_space<vmem>>, vector<64x384xf32>
    tpu.vector_store %arg17[%c0_43, %c0_44], %44 {strides = array<i32>} : memref<64x384xf32, #tpu.memory_space<vmem>>, vector<64x384xf32>,
    return
  }
  func.func @transform_0(%arg0: i32) -> (i32, i32) {
    %c0_i32 = arith.constant 0 : i32
    %c0_i32_0 = arith.constant 0 : i32
    %c0_i32_1 = arith.constant 0 : i32
    return %c0_i32, %c0_i32_0 : i32, i32
  }
  func.func @transform_1(%arg0: i32) -> (i32, i32) {
    %c0_i32 = arith.constant 0 : i32
    %c0_i32_0 = arith.constant 0 : i32
    %c0_i32_1 = arith.constant 0 : i32
    return %c0_i32, %c0_i32_0 : i32, i32
  }
  func.func @transform_2(%arg0: i32) -> (i32, i32) {
    %c0_i32 = arith.constant 0 : i32
    %c0_i32_0 = arith.constant 0 : i32
    %c0_i32_1 = arith.constant 0 : i32
    return %c0_i32, %c0_i32_0 : i32, i32
  }
  func.func @transform_3(%arg0: i32) -> (i32, i32) {
    %c0_i32 = arith.constant 0 : i32
    %c0_i32_0 = arith.constant 0 : i32
    %c0_i32_1 = arith.constant 0 : i32
    return %c0_i32, %c0_i32_0 : i32, i32
  }
  func.func @transform_4(%arg0: i32) -> (i32, i32) {
    %c0_i32 = arith.constant 0 : i32
    %c0_i32_0 = arith.constant 0 : i32
    %c0_i32_1 = arith.constant 0 : i32
    return %c0_i32, %c0_i32_0 : i32, i32
  }
  func.func @transform_5(%arg0: i32) -> (i32, i32) {
    %c0_i32 = arith.constant 0 : i32
    %c0_i32_0 = arith.constant 0 : i32
    %c0_i32_1 = arith.constant 0 : i32
    return %c0_i32, %c0_i32_0 : i32, i32
  }
  func.func @transform_6(%arg0: i32) -> (i32, i32) {
    %c0_i32 = arith.constant 0 : i32
    %c0_i32_0 = arith.constant 0 : i32
    %c0_i32_1 = arith.constant 0 : i32
    return %c0_i32, %c0_i32_0 : i32, i32
  }
  func.func @transform_7(%arg0: i32) -> (i32, i32) {
    %c0_i32 = arith.constant 0 : i32
    %c0_i32_0 = arith.constant 0 : i32
    %c0_i32_1 = arith.constant 0 : i32
    return %c0_i32, %c0_i32_0 : i32, i32
  }
  func.func @transform_8(%arg0: i32) -> (i32, i32) {
    %c0_i32 = arith.constant 0 : i32
    %c0_i32_0 = arith.constant 0 : i32
    %c0_i32_1 = arith.constant 0 : i32
    return %c0_i32, %c0_i32_0 : i32, i32
  }
  func.func @transform_9(%arg0: i32) -> (i32, i32) {
    %c0_i32 = arith.constant 0 : i32
    %c0_i32_0 = arith.constant 0 : i32
    %c0_i32_1 = arith.constant 0 : i32
    return %c0_i32, %c0_i32_0 : i32, i32
  }
  func.func @transform_10(%arg0: i32) -> (i32, i32) {
    %c0_i32 = arith.constant 0 : i32
    %c0_i32_0 = arith.constant 0 : i32
    %c0_i32_1 = arith.constant 0 : i32
    return %c0_i32, %c0_i32_0 : i32, i32
  }
  func.func @transform_11(%arg0: i32) -> (i32, i32) {
    %c0_i32 = arith.constant 0 : i32
    %c0_i32_0 = arith.constant 0 : i32
    %c0_i32_1 = arith.constant 0 : i32
    return %c0_i32, %c0_i32_0 : i32, i32
  }
  func.func @transform_12(%arg0: i32) -> (i32, i32) {
    %c0_i32 = arith.constant 0 : i32
    %c0_i32_0 = arith.constant 0 : i32
    %c0_i32_1 = arith.constant 0 : i32
    return %c0_i32, %c0_i32_0 : i32, i32
  }
  func.func @transform_13(%arg0: i32) -> (i32, i32) {
    %c0_i32 = arith.constant 0 : i32
    %c0_i32_0 = arith.constant 0 : i32
    %c0_i32_1 = arith.constant 0 : i32
    return %c0_i32, %c0_i32_0 : i32, i32
  }
  func.func @transform_14(%arg0: i32) -> (i32, i32) {
    %c0_i32 = arith.constant 0 : i32
    %c0_i32_0 = arith.constant 0 : i32
    %c0_i32_1 = arith.constant 0 : i32
    return %c0_i32, %c0_i32_0 : i32, i32
  }
  func.func @transform_15(%arg0: i32) -> (i32, i32) {
    %c0_i32 = arith.constant 0 : i32
    %c0_i32_0 = arith.constant 0 : i32
    %c0_i32_1 = arith.constant 0 : i32
    return %c0_i32, %c0_i32_0 : i32, i32
  }
  func.func @transform_16(%arg0: i32) -> (i32, i32) {
    %c0_i32 = arith.constant 0 : i32
    %c0_i32_0 = arith.constant 0 : i32
    %c0_i32_1 = arith.constant 0 : i32
    return %c0_i32, %c0_i32_0 : i32, i32
  }
  func.func @transform_17(%arg0: i32) -> (i32, i32) {
    %c0_i32 = arith.constant 0 : i32
    %c0_i32_0 = arith.constant 0 : i32
    %c0_i32_1 = arith.constant 0 : i32
    return %c0_i32, %c0_i32_0 : i32, i32
  }
}

</mosaic_0001>

<llo_original>
// kernel: tpu_custom_call.1
$region0: #{tpu_custom_call.1}
  #allocation0 [shape = 'u32[]', space=smem, size = 0x4, offset = 0x4, fixed_abs, tag = 'smem constant byte address 0x4 - core index']
  #allocation1 [shape = 'u32[144,128]{1,0:T(1,128)}', space=vmem, size = 0x12000, scoped, tag = 'internal scratch']
  %s0 = inlined_call_operand.vmem [shape: f32[64,20], index: 0, kind: input, shape index: {}]
  %s1 = inlined_call_operand.vmem [shape: f32[64,10], index: 1, kind: input, shape index: {}]
  %s2 = inlined_call_operand.vmem [shape: f32[64,10], index: 2, kind: input, shape index: {}]
  %s3 = inlined_call_operand.vmem [shape: f32[64,10], index: 3, kind: input, shape index: {}]
  %s4 = inlined_call_operand.hbm [shape: f32[20,608], index: 4, kind: input, shape index: {}]
  %s5 = inlined_call_operand.hbm [shape: f32[1,608], index: 5, kind: input, shape index: {}]
  %s6 = inlined_call_operand.hbm [shape: f32[608,512], index: 6, kind: input, shape index: {}]
  %s7 = inlined_call_operand.hbm [shape: f32[1,512], index: 7, kind: input, shape index: {}]
  %s8 = inlined_call_operand.hbm [shape: f32[512,128], index: 8, kind: input, shape index: {}]
  %s9 = inlined_call_operand.hbm [shape: f32[1,128], index: 9, kind: input, shape index: {}]
  %s10 = inlined_call_operand.hbm [shape: f32[10,128], index: 10, kind: input, shape index: {}]
  %s11 = inlined_call_operand.hbm [shape: f32[1,128], index: 11, kind: input, shape index: {}]
  %s12 = inlined_call_operand.hbm [shape: f32[10,384], index: 12, kind: input, shape index: {}]
  %s13 = inlined_call_operand.hbm [shape: f32[10,384], index: 13, kind: input, shape index: {}]
  %s14 = inlined_call_operand.hbm [shape: f32[128,384], index: 14, kind: input, shape index: {}]
  %s15 = inlined_call_operand.hbm [shape: f32[1,384], index: 15, kind: input, shape index: {}]
  %s16 = inlined_call_operand.hbm [shape: f32[64,384], index: 16, kind: output, shape index: {0}]
  %s17 = inlined_call_operand.hbm [shape: f32[64,128], index: 17, kind: output, shape index: {1}]
  %18 = xla_tuple %s16, %s17
  %s19 = sld [smem:[#allocation0]]
  $region130: #{tpu_custom_call.1} parent=0
    _
  %s21 = ssub.s32 1, %s19
  %s22 = scalar_select 0, %s21, %s19
  $region1: #{tpu_custom_call.1} parent=0
    #allocation2 [shape = 'u8[61440]{0}', space=vmem, size = 0xf000, scoped, tag = 'input window, operand 4, single buffered']
    #allocation3 [shape = 's32[1]{0}', space=sflag, size = 0x4, scoped, tag = 'scoped memory for tpu_custom_call.1']
    #allocation4 [shape = 's32[1]{0}', space=sflag, size = 0x4, scoped, tag = 'scoped memory for tpu_custom_call.1']
    #allocation5 [shape = 'u8[2560]{0}', space=vmem, size = 0xc00, scoped, tag = 'input window, operand 5, single buffered']
    #allocation6 [shape = 's32[1]{0}', space=sflag, size = 0x4, scoped, tag = 'scoped memory for tpu_custom_call.1']
    #allocation7 [shape = 'u8[1245184]{0}', space=vmem, size = 0x130000, scoped, tag = 'input window, operand 6, single buffered']
    #allocation8 [shape = 'u8[2048]{0}', space=vmem, size = 0x800, scoped, tag = 'input window, operand 7, single buffered']
    #allocation9 [shape = 's32[1]{0}', space=sflag, size = 0x4, scoped, tag = 'scoped memory for tpu_custom_call.1']
    #allocation10 [shape = 'u8[262144]{0}', space=vmem, size = 0x40000, scoped, tag = 'input window, operand 8, single buffered']
    #allocation11 [shape = 'u8[512]{0}', space=vmem, size = 0x400, scoped, tag = 'input window, operand 9, single buffered']
    #allocation12 [shape = 's32[1]{0}', space=sflag, size = 0x4, scoped, tag = 'scoped memory for tpu_custom_call.1']
    #allocation13 [shape = 'u8[8192]{0}', space=vmem, size = 0x2000, scoped, tag = 'input window, operand 10, single buffered']
    #allocation14 [shape = 'u8[512]{0}', space=vmem, size = 0x400, scoped, tag = 'input window, operand 11, single buffered']
    #allocation15 [shape = 's32[1]{0}', space=sflag, size = 0x4, scoped, tag = 'scoped memory for tpu_custom_call.1']
    #allocation16 [shape = 'u8[24576]{0}', space=vmem, size = 0x6000, scoped, tag = 'input window, operand 12, single buffered']
    #allocation17 [shape = 'u8[24576]{0}', space=vmem, size = 0x6000, scoped, tag = 'input window, operand 13, single buffered']
    #allocation18 [shape = 's32[1]{0}', space=sflag, size = 0x4, scoped, tag = 'scoped memory for tpu_custom_call.1']
    #allocation19 [shape = 'u8[196608]{0}', space=vmem, size = 0x30000, scoped, tag = 'input window, operand 14, single buffered']
    #allocation20 [shape = 'u8[1536]{0}', space=vmem, size = 0x800, scoped, tag = 'input window, operand 15, single buffered']
    #allocation21 [shape = 's32[1]{0}', space=sflag, size = 0x4, scoped, tag = 'scoped memory for tpu_custom_call.1']
    #allocation22 [shape = 'u8[98304]{0}', space=vmem, size = 0x18000, scoped, tag = 'output window, operand 0, single buffered']
    #allocation23 [shape = 'u8[32768]{0}', space=vmem, size = 0x8000, scoped, tag = 'output window, operand 1, single buffered']
    #allocation24 [shape = 's32[1]{0}', space=sflag, size = 0x4, scoped, tag = 'scoped memory for tpu_custom_call.1']
    %23 = vsyncpa [#allocation3], 0
    %24 = vsyncpa [#allocation6], 0
    %25 = vsyncpa [#allocation9], 0
    %26 = vsyncpa [#allocation12], 0
    %27 = vsyncpa [#allocation15], 0
    %28 = vsyncpa [#allocation18], 0
    %29 = vsyncpa [#allocation21], 0
    %30 = vsyncpa [#allocation4], 0
    %31 = vsyncpa [#allocation24], 0
    // Predicated region
    $region2: #{tpu_custom_call.1} parent=1 // pred_check
      _
    $region3: #{tpu_custom_call.1} parent=1 // pred_check_branch
      %33 = sbr.rel (0) target = $region5
    $region4: #{tpu_custom_call.1} parent=1 // pred_region
      _
    $region5: #{tpu_custom_call.1} parent=1 // pred_fallthru
      _
    // Predicated region
    $region6: #{tpu_custom_call.1} parent=1 // pred_check
      _
    $region7: #{tpu_custom_call.1} parent=1 // pred_check_branch
      %35 = sbr.rel (0) target = $region9
    $region8: #{tpu_custom_call.1} parent=1 // pred_region
      _
    $region9: #{tpu_custom_call.1} parent=1 // pred_fallthru
      _
    // Predicated region
    $region10: #{tpu_custom_call.1} parent=1 // pred_check
      _
    $region11: #{tpu_custom_call.1} parent=1 // pred_check_branch
      %37 = sbr.rel (0) target = $region13
    $region12: #{tpu_custom_call.1} parent=1 // pred_region
      _
    $region13: #{tpu_custom_call.1} parent=1 // pred_fallthru
      _
    // Predicated region
    $region14: #{tpu_custom_call.1} parent=1 // pred_check
      _
    $region15: #{tpu_custom_call.1} parent=1 // pred_check_branch
      %39 = sbr.rel (0) target = $region17
    $region16: #{tpu_custom_call.1} parent=1 // pred_region
      _
    $region17: #{tpu_custom_call.1} parent=1 // pred_fallthru
      _
    // Predicated region
    $region18: #{tpu_custom_call.1} parent=1 // pred_check
      _
    $region19: #{tpu_custom_call.1} parent=1 // pred_check_branch
      %41 = sbr.rel (0) target = $region21
    $region20: #{tpu_custom_call.1} parent=1 // pred_region
      %s43 = ssub.s32 1920, 1920
      %44 = vsyncadd [#allocation3], %s43
      %s45 = sshll.u32 [#allocation2], 4
      %s46 = int_to_ptr.vmem [resolvable:$true] %s45
      %51 = dma.hbm_to_vmem [thread:$0]  %s4, 1920, %s46, [#allocation3], 640, 640, 40
    $region21: #{tpu_custom_call.1} parent=1 // pred_fallthru
      _
    // Predicated region
    $region22: #{tpu_custom_call.1} parent=1 // pred_check
      _
    $region23: #{tpu_custom_call.1} parent=1 // pred_check_branch
      %53 = sbr.rel (0) target = $region25
    $region24: #{tpu_custom_call.1} parent=1 // pred_region
      %s55 = ssub.s32 80, 80
      %56 = vsyncadd [#allocation6], %s55
      %s58 = sshll.u32 [#allocation5], 4
      %s59 = int_to_ptr.vmem [resolvable:$true] %s58
      %61 = dma.hbm_to_vmem [thread:$0]  %s5, 80, %s59, [#allocation6]
    $region25: #{tpu_custom_call.1} parent=1 // pred_fallthru
      _
    // Predicated region
    $region26: #{tpu_custom_call.1} parent=1 // pred_check
      _
    $region27: #{tpu_custom_call.1} parent=1 // pred_check_branch
      %63 = sbr.rel (0) target = $region29
    $region28: #{tpu_custom_call.1} parent=1 // pred_region
      %s65 = ssub.s32 38912, 38912
      %66 = vsyncadd [#allocation6], %s65
      %s67 = sshll.u32 [#allocation7], 4
      %s68 = int_to_ptr.vmem [resolvable:$true] %s67
      %73 = dma.hbm_to_vmem [thread:$0]  %s6, 38912, %s68, [#allocation6], 512, 512, 32
    $region29: #{tpu_custom_call.1} parent=1 // pred_fallthru
      _
    // Predicated region
    $region30: #{tpu_custom_call.1} parent=1 // pred_check
      _
    $region31: #{tpu_custom_call.1} parent=1 // pred_check_branch
      %75 = sbr.rel (0) target = $region33
    $region32: #{tpu_custom_call.1} parent=1 // pred_region
      %s77 = ssub.s32 64, 64
      %78 = vsyncadd [#allocation9], %s77
      %s80 = sshll.u32 [#allocation8], 4
      %s81 = int_to_ptr.vmem [resolvable:$true] %s80
      %83 = dma.hbm_to_vmem [thread:$0]  %s7, 64, %s81, [#allocation9]
    $region33: #{tpu_custom_call.1} parent=1 // pred_fallthru
      _
    // Predicated region
    $region34: #{tpu_custom_call.1} parent=1 // pred_check
      _
    $region35: #{tpu_custom_call.1} parent=1 // pred_check_branch
      %85 = sbr.rel (0) target = $region37
    $region36: #{tpu_custom_call.1} parent=1 // pred_region
      %s87 = ssub.s32 8192, 8192
      %88 = vsyncadd [#allocation9], %s87
      %s89 = sshll.u32 [#allocation10], 4
      %s90 = int_to_ptr.vmem [resolvable:$true] %s89
      %95 = dma.hbm_to_vmem [thread:$0]  %s8, 8192, %s90, [#allocation9], 128, 128, 8
    $region37: #{tpu_custom_call.1} parent=1 // pred_fallthru
      _
    // Predicated region
    $region38: #{tpu_custom_call.1} parent=1 // pred_check
      _
    $region39: #{tpu_custom_call.1} parent=1 // pred_check_branch
      %97 = sbr.rel (0) target = $region41
    $region40: #{tpu_custom_call.1} parent=1 // pred_region
      %s99 = ssub.s32 16, 16
      %100 = vsyncadd [#allocation12], %s99
      %s102 = sshll.u32 [#allocation11], 4
      %s103 = int_to_ptr.vmem [resolvable:$true] %s102
      %105 = dma.hbm_to_vmem [thread:$0]  %s9, 16, %s103, [#allocation12]
    $region41: #{tpu_custom_call.1} parent=1 // pred_fallthru
      _
    // Predicated region
    $region42: #{tpu_custom_call.1} parent=1 // pred_check
      _
    $region43: #{tpu_custom_call.1} parent=1 // pred_check_branch
      %107 = sbr.rel (0) target = $region45
    $region44: #{tpu_custom_call.1} parent=1 // pred_region
      %s109 = ssub.s32 256, 256
      %110 = vsyncadd [#allocation12], %s109
      %s111 = sshll.u32 [#allocation13], 4
      %s112 = int_to_ptr.vmem [resolvable:$true] %s111
      %117 = dma.hbm_to_vmem [thread:$0]  %s10, 256, %s112, [#allocation12], 128, 128, 8
    $region45: #{tpu_custom_call.1} parent=1 // pred_fallthru
      _
    // Predicated region
    $region46: #{tpu_custom_call.1} parent=1 // pred_check
      _
    $region47: #{tpu_custom_call.1} parent=1 // pred_check_branch
      %119 = sbr.rel (0) target = $region49
    $region48: #{tpu_custom_call.1} parent=1 // pred_region
      %s121 = ssub.s32 16, 16
      %122 = vsyncadd [#allocation15], %s121
      %s124 = sshll.u32 [#allocation14], 4
      %s125 = int_to_ptr.vmem [resolvable:$true] %s124
      %127 = dma.hbm_to_vmem [thread:$0]  %s11, 16, %s125, [#allocation15]
    $region49: #{tpu_custom_call.1} parent=1 // pred_fallthru
      _
    // Predicated region
    $region50: #{tpu_custom_call.1} parent=1 // pred_check
      _
    $region51: #{tpu_custom_call.1} parent=1 // pred_check_branch
      %129 = sbr.rel (0) target = $region53
    $region52: #{tpu_custom_call.1} parent=1 // pred_region
      %s131 = ssub.s32 768, 768
      %132 = vsyncadd [#allocation15], %s131
      %s133 = sshll.u32 [#allocation16], 4
      %s134 = int_to_ptr.vmem [resolvable:$true] %s133
      %139 = dma.hbm_to_vmem [thread:$0]  %s12, 768, %s134, [#allocation15], 384, 384, 24
    $region53: #{tpu_custom_call.1} parent=1 // pred_fallthru
      _
    // Predicated region
    $region54: #{tpu_custom_call.1} parent=1 // pred_check
      _
    $region55: #{tpu_custom_call.1} parent=1 // pred_check_branch
      %141 = sbr.rel (0) target = $region57
    $region56: #{tpu_custom_call.1} parent=1 // pred_region
      %s143 = ssub.s32 768, 768
      %144 = vsyncadd [#allocation18], %s143
      %s145 = sshll.u32 [#allocation17], 4
      %s146 = int_to_ptr.vmem [resolvable:$true] %s145
      %151 = dma.hbm_to_vmem [thread:$0]  %s13, 768, %s146, [#allocation18], 384, 384, 24
    $region57: #{tpu_custom_call.1} parent=1 // pred_fallthru
      _
    // Predicated region
    $region58: #{tpu_custom_call.1} parent=1 // pred_check
      _
    $region59: #{tpu_custom_call.1} parent=1 // pred_check_branch
      %153 = sbr.rel (0) target = $region61
    $region60: #{tpu_custom_call.1} parent=1 // pred_region
      %s155 = ssub.s32 6144, 6144
      %156 = vsyncadd [#allocation18], %s155
      %s157 = sshll.u32 [#allocation19], 4
      %s158 = int_to_ptr.vmem [resolvable:$true] %s157
      %163 = dma.hbm_to_vmem [thread:$0]  %s14, 6144, %s158, [#allocation18], 384, 384, 24
    $region61: #{tpu_custom_call.1} parent=1 // pred_fallthru
      _
    // Predicated region
    $region62: #{tpu_custom_call.1} parent=1 // pred_check
      _
    $region63: #{tpu_custom_call.1} parent=1 // pred_check_branch
      %165 = sbr.rel (0) target = $region65
    $region64: #{tpu_custom_call.1} parent=1 // pred_region
      %s167 = ssub.s32 48, 48
      %168 = vsyncadd [#allocation21], %s167
      %s170 = sshll.u32 [#allocation20], 4
      %s171 = int_to_ptr.vmem [resolvable:$true] %s170
      %173 = dma.hbm_to_vmem [thread:$0]  %s15, 48, %s171, [#allocation21]
    $region65: #{tpu_custom_call.1} parent=1 // pred_fallthru
      _
    // Predicated region
    $region66: #{tpu_custom_call.1} parent=1 // pred_check
      _
    $region67: #{tpu_custom_call.1} parent=1 // pred_check_branch
      %175 = sbr.rel (0) target = $region69
    $region68: #{tpu_custom_call.1} parent=1 // pred_region
      %176 = dma.done [#allocation3], 1920
    $region69: #{tpu_custom_call.1} parent=1 // pred_fallthru
      _
    // Predicated region
    $region70: #{tpu_custom_call.1} parent=1 // pred_check
      _
    $region71: #{tpu_custom_call.1} parent=1 // pred_check_branch
      %178 = sbr.rel (0) target = $region73
    $region72: #{tpu_custom_call.1} parent=1 // pred_region
      %179 = dma.done [#allocation6], 80
    $region73: #{tpu_custom_call.1} parent=1 // pred_fallthru
      _
    // Predicated region
    $region74: #{tpu_custom_call.1} parent=1 // pred_check
      _
    $region75: #{tpu_custom_call.1} parent=1 // pred_check_branch
      %181 = sbr.rel (0) target = $region77
    $region76: #{tpu_custom_call.1} parent=1 // pred_region
      %182 = dma.done [#allocation6], 38912
    $region77: #{tpu_custom_call.1} parent=1 // pred_fallthru
      _
    // Predicated region
    $region78: #{tpu_custom_call.1} parent=1 // pred_check
      _
    $region79: #{tpu_custom_call.1} parent=1 // pred_check_branch
      %184 = sbr.rel (0) target = $region81
    $region80: #{tpu_custom_call.1} parent=1 // pred_region
      %185 = dma.done [#allocation9], 64
    $region81: #{tpu_custom_call.1} parent=1 // pred_fallthru
      _
    // Predicated region
    $region82: #{tpu_custom_call.1} parent=1 // pred_check
      _
    $region83: #{tpu_custom_call.1} parent=1 // pred_check_branch
      %187 = sbr.rel (0) target = $region85
    $region84: #{tpu_custom_call.1} parent=1 // pred_region
      %188 = dma.done [#allocation9], 8192
    $region85: #{tpu_custom_call.1} parent=1 // pred_fallthru
      _
    // Predicated region
    $region86: #{tpu_custom_call.1} parent=1 // pred_check
      _
    $region87: #{tpu_custom_call.1} parent=1 // pred_check_branch
      %190 = sbr.rel (0) target = $region89
    $region88: #{tpu_custom_call.1} parent=1 // pred_region
      %191 = dma.done [#allocation12], 16
    $region89: #{tpu_custom_call.1} parent=1 // pred_fallthru
      _
    // Predicated region
    $region90: #{tpu_custom_call.1} parent=1 // pred_check
      _
    $region91: #{tpu_custom_call.1} parent=1 // pred_check_branch
      %193 = sbr.rel (0) target = $region93
    $region92: #{tpu_custom_call.1} parent=1 // pred_region
      %194 = dma.done [#allocation12], 256
    $region93: #{tpu_custom_call.1} parent=1 // pred_fallthru
      _
    // Predicated region
    $region94: #{tpu_custom_call.1} parent=1 // pred_check
      _
    $region95: #{tpu_custom_call.1} parent=1 // pred_check_branch
      %196 = sbr.rel (0) target = $region97
    $region96: #{tpu_custom_call.1} parent=1 // pred_region
      %197 = dma.done [#allocation15], 16
    $region97: #{tpu_custom_call.1} parent=1 // pred_fallthru
      _
    // Predicated region
    $region98: #{tpu_custom_call.1} parent=1 // pred_check
      _
    $region99: #{tpu_custom_call.1} parent=1 // pred_check_branch
      %199 = sbr.rel (0) target = $region101
    $region100: #{tpu_custom_call.1} parent=1 // pred_region
      %200 = dma.done [#allocation15], 768
    $region101: #{tpu_custom_call.1} parent=1 // pred_fallthru
      _
    // Predicated region
    $region102: #{tpu_custom_call.1} parent=1 // pred_check
      _
    $region103: #{tpu_custom_call.1} parent=1 // pred_check_branch
      %202 = sbr.rel (0) target = $region105
    $region104: #{tpu_custom_call.1} parent=1 // pred_region
      %203 = dma.done [#allocation18], 768
    $region105: #{tpu_custom_call.1} parent=1 // pred_fallthru
      _
    // Predicated region
    $region106: #{tpu_custom_call.1} parent=1 // pred_check
      _
    $region107: #{tpu_custom_call.1} parent=1 // pred_check_branch
      %205 = sbr.rel (0) target = $region109
    $region108: #{tpu_custom_call.1} parent=1 // pred_region
      %206 = dma.done [#allocation18], 6144
    $region109: #{tpu_custom_call.1} parent=1 // pred_fallthru
      _
    // Predicated region
    $region110: #{tpu_custom_call.1} parent=1 // pred_check
      _
    $region111: #{tpu_custom_call.1} parent=1 // pred_check_branch
      %208 = sbr.rel (0) target = $region113
    $region112: #{tpu_custom_call.1} parent=1 // pred_region
      %209 = dma.done [#allocation21], 48
    $region113: #{tpu_custom_call.1} parent=1 // pred_fallthru
      _
    %v210 = vld [vmem:[%s0] sm:$0xff]
    %v211 = vld [vmem:[%s0 + $0x8] sm:$0xff]
    %v212 = vld [vmem:[%s0 + $0x10] sm:$0xff]
    %v213 = vld [vmem:[%s0 + $0x18] sm:$0xff]
    %v214 = vld [vmem:[%s0 + $0x20] sm:$0xff]
    %v215 = vld [vmem:[%s0 + $0x28] sm:$0xff]
    %v216 = vld [vmem:[%s0 + $0x30] sm:$0xff]
    %v217 = vld [vmem:[%s0 + $0x38] sm:$0xff]
    %v218 = vld [vmem:[#allocation2] sm:$0xff]
    %v219 = vld [vmem:[#allocation2 + $0x8] sm:$0xff]
    %v220 = vld [vmem:[#allocation2 + $0x10] sm:$0xff]
    %v221 = vld [vmem:[#allocation2 + $0x18] sm:$0xff]
    %v222 = vld [vmem:[#allocation2 + $0x20] sm:$0xff]
    %v223 = vld [vmem:[#allocation2 + $0x28] sm:$0xff]
    %v224 = vld [vmem:[#allocation2 + $0x30] sm:$0xff]
    %v225 = vld [vmem:[#allocation2 + $0x38] sm:$0xff]
    %v226 = vld [vmem:[#allocation2 + $0x40] sm:$0xff]
    %v227 = vld [vmem:[#allocation2 + $0x48] sm:$0xff]
    %v228 = vld [vmem:[#allocation2 + $0x50] sm:$0xf]
    %v229 = vld [vmem:[#allocation2 + $0x58] sm:$0xf]
    %v230 = vld [vmem:[#allocation2 + $0x60] sm:$0xf]
    %v231 = vld [vmem:[#allocation2 + $0x68] sm:$0xf]
    %v232 = vld [vmem:[#allocation2 + $0x70] sm:$0xf]
    %v233 = vld [vmem:[#allocation5] sm:$0x1f]
    %v235 = vlaneseq
    %v236 = vshrl.u32 %v235, 7
    %v237 = vsub.s32 0, %v236
    %v238 = vrot.slane %v233, %v237
    %v239 = vlaneseq
    %v240 = vshrl.u32 %v239, 7
    %v241 = vsub.s32 1, %v240
    %v242 = vrot.slane %v233, %v241
    %v243 = vlaneseq
    %v244 = vshrl.u32 %v243, 7
    %v245 = vsub.s32 2, %v244
    %v246 = vrot.slane %v233, %v245
    %v247 = vlaneseq
    %v248 = vshrl.u32 %v247, 7
    %v249 = vsub.s32 3, %v248
    %v250 = vrot.slane %v233, %v249
    %v251 = vlaneseq
    %v252 = vshrl.u32 %v251, 7
    %v253 = vsub.s32 4, %v252
    %v254 = vrot.slane %v233, %v253
    %vm260 = vcmask 162816
    %v262 = vsel %vm260, %v210, 0
    %v265 = vsel %vm260, %v211, 0
    %v268 = vsel %vm260, %v212, 0
    %v271 = vsel %vm260, %v213, 0
    %v274 = vsel %vm260, %v214, 0
    %v277 = vsel %vm260, %v215, 0
    %v280 = vsel %vm260, %v216, 0
    %v283 = vsel %vm260, %v217, 0
    %vm285 = vcmask 1043456
    %v287 = vsel %vm285, %v228, 0
    %v290 = vsel %vm285, %v229, 0
    %v293 = vsel %vm285, %v230, 0
    %v296 = vsel %vm285, %v231, 0
    %v299 = vsel %vm285, %v232, 0
    %301 = vmatprep.subr.mxu0 0.0
    %302 = vmatpush1.msra.mxu0 0.0
    %303 = vmatprep.subr.mxu0 0.0
    %304 = vmatpush1.msra.mxu0 0.0
    %305 = vmatprep.subr.mxu0 0.0
    %306 = vmatpush1.msra.mxu0 0.0
    %307 = vmatprep.subr.mxu0 0.0
    %308 = vmatpush1.msra.mxu0 0.0
    %309 = vmatprep.subr.mxu0 0.0
    %310 = vmatpush1.msra.mxu0 0.0
    %311 = vmatprep.subr.mxu0 0.0
    %312 = vmatpush1.msra.mxu0 0.0
    %313 = vmatprep.subr.mxu0 0.0
    %314 = vmatpush1.msra.mxu0 0.0
    %315 = vmatprep.subr.mxu0 0.0
    %316 = vmatpush1.msra.mxu0 0.0
    %317 = vmatprep.subr.mxu0 0.0
    %318 = vmatpush1.msra.mxu0 0.0
    %319 = vmatprep.subr.mxu0 0.0
    %320 = vmatpush1.msra.mxu0 0.0
    %321 = vmatprep.subr.mxu0 0.0
    %322 = vmatpush1.msra.mxu0 0.0
    %323 = vmatprep.subr.mxu0 0.0
    %324 = vmatpush1.msra.mxu0 0.0
    %325 = vmatprep.subr.mxu0 0.0
    %326 = vmatpush1.msra.mxu0 0.0
    %327 = vmatprep.subr.mxu0 %v290
    %328 = vmatpush1.msra.mxu0 %v287
    %329 = vmatprep.subr.mxu0 %v224
    %330 = vmatpush1.msra.mxu0 %v223
    %331 = vmatprep.subr.mxu0 %v219
    %332 = vmatpush1.msra.mxu0 %v218
    %333 = vmatprep.subr.mxu0 0.0
    %334 = vmatpush2.msra.mxu0 0.0
    %335 = vmatprep.subr.mxu0 0.0
    %336 = vmatpush2.msra.mxu0 0.0
    %337 = vmatprep.subr.mxu0 0.0
    %338 = vmatpush2.msra.mxu0 0.0
    %339 = vmatprep.subr.mxu0 0.0
    %340 = vmatpush2.msra.mxu0 0.0
    %341 = vmatprep.subr.mxu0 0.0
    %342 = vmatpush2.msra.mxu0 0.0
    %343 = vmatprep.subr.mxu0 0.0
    %344 = vmatpush2.msra.mxu0 0.0
    %345 = vmatprep.subr.mxu0 0.0
    %346 = vmatpush2.msra.mxu0 0.0
    %347 = vmatprep.subr.mxu0 0.0
    %348 = vmatpush2.msra.mxu0 0.0
    %349 = vmatprep.subr.mxu0 0.0
    %350 = vmatpush2.msra.mxu0 0.0
    %351 = vmatprep.subr.mxu0 0.0
    %352 = vmatpush2.msra.mxu0 0.0
    %353 = vmatprep.subr.mxu0 0.0
    %354 = vmatpush2.msra.mxu0 0.0
    %355 = vmatprep.subr.mxu0 0.0
    %356 = vmatpush2.msra.mxu0 0.0
    %357 = vmatprep.subr.mxu0 0.0
    %358 = vmatpush2.msra.mxu0 0.0
    %359 = vmatprep.subr.mxu0 0.0
    %360 = vmatpush2.msra.mxu0 0.0
    %361 = vmatprep.subr.mxu0 0.0
    %362 = vmatpush2.msra.mxu0 0.0
    %363 = vmatprep.subr.mxu0 0.0
    %364 = vmatpush2.msra.mxu0 0.0
    %365 = vmatprep.mubr.f32.mxu0 0.0
    %366 = vmatmul.mubr.f32.gmra.mxu0 %v262
    %v367 = vpop.f32.mrf.mxu0
    %v368 = vadd.f32 %v238, %v367
    %v369 = vpop.f32.mrf.mxu0
    %v370 = vadd.f32 %v242, %v369
    %371 = vmatprep.mubr.f32.mxu0 0.0
    %372 = vmatmul.mubr.f32.gmra.mxu0 %v265
    %v373 = vpop.f32.mrf.mxu0
    %v374 = vadd.f32 %v238, %v373
    %v375 = vpop.f32.mrf.mxu0
    %v376 = vadd.f32 %v242, %v375
    %377 = vmatprep.mubr.f32.mxu0 0.0
    %378 = vmatmul.mubr.f32.gmra.mxu0 %v268
    %v379 = vpop.f32.mrf.mxu0
    %v380 = vadd.f32 %v238, %v379
    %v381 = vpop.f32.mrf.mxu0
    %v382 = vadd.f32 %v242, %v381
    %383 = vmatprep.mubr.f32.mxu0 0.0
    %384 = vmatmul.mubr.f32.gmra.mxu0 %v271
    %v385 = vpop.f32.mrf.mxu0
    %v386 = vadd.f32 %v238, %v385
    %v387 = vpop.f32.mrf.mxu0
    %v388 = vadd.f32 %v242, %v387
    %389 = vmatprep.mubr.f32.mxu0 0.0
    %390 = vmatmul.mubr.f32.gmra.mxu0 %v274
    %v391 = vpop.f32.mrf.mxu0
    %v392 = vadd.f32 %v238, %v391
    %v393 = vpop.f32.mrf.mxu0
    %v394 = vadd.f32 %v242, %v393
    %395 = vmatprep.mubr.f32.mxu0 0.0
    %396 = vmatmul.mubr.f32.gmra.mxu0 %v277
    %v397 = vpop.f32.mrf.mxu0
    %v398 = vadd.f32 %v238, %v397
    %v399 = vpop.f32.mrf.mxu0
    %v400 = vadd.f32 %v242, %v399
    %401 = vmatprep.mubr.f32.mxu0 0.0
    %402 = vmatmul.mubr.f32.gmra.mxu0 %v280
    %v403 = vpop.f32.mrf.mxu0
    %v404 = vadd.f32 %v238, %v403
    %v405 = vpop.f32.mrf.mxu0
    %v406 = vadd.f32 %v242, %v405
    %407 = vmatprep.mubr.f32.mxu0 0.0
    %408 = vmatmul.mubr.f32.gmra.mxu0 %v283
    %v409 = vpop.f32.mrf.mxu0
    %v410 = vadd.f32 %v238, %v409
    %v411 = vpop.f32.mrf.mxu0
    %v412 = vadd.f32 %v242, %v411
    %413 = vdwg.mxu0
    %414 = vmatprep.subr.mxu0 0.0
    %415 = vmatpush1.msra.mxu0 0.0
    %416 = vmatprep.subr.mxu0 0.0
    %417 = vmatpush1.msra.mxu0 0.0
    %418 = vmatprep.subr.mxu0 0.0
    %419 = vmatpush1.msra.mxu0 0.0
    %420 = vmatprep.subr.mxu0 0.0
    %421 = vmatpush1.msra.mxu0 0.0
    %422 = vmatprep.subr.mxu0 0.0
    %423 = vmatpush1.msra.mxu0 0.0
    %424 = vmatprep.subr.mxu0 0.0
    %425 = vmatpush1.msra.mxu0 0.0
    %426 = vmatprep.subr.mxu0 0.0
    %427 = vmatpush1.msra.mxu0 0.0
    %428 = vmatprep.subr.mxu0 0.0
    %429 = vmatpush1.msra.mxu0 0.0
    %430 = vmatprep.subr.mxu0 0.0
    %431 = vmatpush1.msra.mxu0 0.0
    %432 = vmatprep.subr.mxu0 0.0
    %433 = vmatpush1.msra.mxu0 0.0
    %434 = vmatprep.subr.mxu0 0.0
    %435 = vmatpush1.msra.mxu0 0.0
    %436 = vmatprep.subr.mxu0 0.0
    %437 = vmatpush1.msra.mxu0 0.0
    %438 = vmatprep.subr.mxu0 0.0
    %439 = vmatpush1.msra.mxu0 0.0
    %440 = vmatprep.subr.mxu0 %v296
    %441 = vmatpush1.msra.mxu0 %v293
    %442 = vmatprep.subr.mxu0 %v226
    %443 = vmatpush1.msra.mxu0 %v225
    %444 = vmatprep.subr.mxu0 %v221
    %445 = vmatpush1.msra.mxu0 %v220
    %446 = vmatprep.subr.mxu0 0.0
    %447 = vmatpush2.msra.mxu0 0.0
    %448 = vmatprep.subr.mxu0 0.0
    %449 = vmatpush2.msra.mxu0 0.0
    %450 = vmatprep.subr.mxu0 0.0
    %451 = vmatpush2.msra.mxu0 0.0
    %452 = vmatprep.subr.mxu0 0.0
    %453 = vmatpush2.msra.mxu0 0.0
    %454 = vmatprep.subr.mxu0 0.0
    %455 = vmatpush2.msra.mxu0 0.0
    %456 = vmatprep.subr.mxu0 0.0
    %457 = vmatpush2.msra.mxu0 0.0
    %458 = vmatprep.subr.mxu0 0.0
    %459 = vmatpush2.msra.mxu0 0.0
    %460 = vmatprep.subr.mxu0 0.0
    %461 = vmatpush2.msra.mxu0 0.0
    %462 = vmatprep.subr.mxu0 0.0
    %463 = vmatpush2.msra.mxu0 0.0
    %464 = vmatprep.subr.mxu0 0.0
    %465 = vmatpush2.msra.mxu0 0.0
    %466 = vmatprep.subr.mxu0 0.0
    %467 = vmatpush2.msra.mxu0 0.0
    %468 = vmatprep.subr.mxu0 0.0
    %469 = vmatpush2.msra.mxu0 0.0
    %470 = vmatprep.subr.mxu0 0.0
    %471 = vmatpush2.msra.mxu0 0.0
    %472 = vmatprep.subr.mxu0 0.0
    %473 = vmatpush2.msra.mxu0 0.0
    %474 = vmatprep.subr.mxu0 0.0
    %475 = vmatpush2.msra.mxu0 0.0
    %476 = vmatprep.subr.mxu0 0.0
    %477 = vmatpush2.msra.mxu0 0.0
    %478 = vmatprep.mubr.f32.mxu0 0.0
    %479 = vmatmul.mubr.f32.gmra.mxu0 %v262
    %v480 = vpop.f32.mrf.mxu0
    %v481 = vadd.f32 %v246, %v480
    %v482 = vpop.f32.mrf.mxu0
    %v483 = vadd.f32 %v250, %v482
    %484 = vmatprep.mubr.f32.mxu0 0.0
    %485 = vmatmul.mubr.f32.gmra.mxu0 %v265
    %v486 = vpop.f32.mrf.mxu0
    %v487 = vadd.f32 %v246, %v486
    %v488 = vpop.f32.mrf.mxu0
    %v489 = vadd.f32 %v250, %v488
    %490 = vmatprep.mubr.f32.mxu0 0.0
    %491 = vmatmul.mubr.f32.gmra.mxu0 %v268
    %v492 = vpop.f32.mrf.mxu0
    %v493 = vadd.f32 %v246, %v492
    %v494 = vpop.f32.mrf.mxu0
    %v495 = vadd.f32 %v250, %v494
    %496 = vmatprep.mubr.f32.mxu0 0.0
    %497 = vmatmul.mubr.f32.gmra.mxu0 %v271
    %v498 = vpop.f32.mrf.mxu0
    %v499 = vadd.f32 %v246, %v498
    %v500 = vpop.f32.mrf.mxu0
    %v501 = vadd.f32 %v250, %v500
    %502 = vmatprep.mubr.f32.mxu0 0.0
    %503 = vmatmul.mubr.f32.gmra.mxu0 %v274
    %v504 = vpop.f32.mrf.mxu0
    %v505 = vadd.f32 %v246, %v504
    %v506 = vpop.f32.mrf.mxu0
    %v507 = vadd.f32 %v250, %v506
    %508 = vmatprep.mubr.f32.mxu0 0.0
    %509 = vmatmul.mubr.f32.gmra.mxu0 %v277
    %v510 = vpop.f32.mrf.mxu0
    %v511 = vadd.f32 %v246, %v510
    %v512 = vpop.f32.mrf.mxu0
    %v513 = vadd.f32 %v250, %v512
    %514 = vmatprep.mubr.f32.mxu0 0.0
    %515 = vmatmul.mubr.f32.gmra.mxu0 %v280
    %v516 = vpop.f32.mrf.mxu0
    %v517 = vadd.f32 %v246, %v516
    %v518 = vpop.f32.mrf.mxu0
    %v519 = vadd.f32 %v250, %v518
    %520 = vmatprep.mubr.f32.mxu0 0.0
    %521 = vmatmul.mubr.f32.gmra.mxu0 %v283
    %v522 = vpop.f32.mrf.mxu0
    %v523 = vadd.f32 %v246, %v522
    %v524 = vpop.f32.mrf.mxu0
    %v525 = vadd.f32 %v250, %v524
    %526 = vdwg.mxu0
    %527 = vmatprep.subr.mxu0 0.0
    %528 = vmatpush1.msra.mxu0 0.0
    %529 = vmatprep.subr.mxu0 0.0
    %530 = vmatpush1.msra.mxu0 0.0
    %531 = vmatprep.subr.mxu0 0.0
    %532 = vmatpush1.msra.mxu0 0.0
    %533 = vmatprep.subr.mxu0 0.0
    %534 = vmatpush1.msra.mxu0 0.0
    %535 = vmatprep.subr.mxu0 0.0
    %536 = vmatpush1.msra.mxu0 0.0
    %537 = vmatprep.subr.mxu0 0.0
    %538 = vmatpush1.msra.mxu0 0.0
    %539 = vmatprep.subr.mxu0 0.0
    %540 = vmatpush1.msra.mxu0 0.0
    %541 = vmatprep.subr.mxu0 0.0
    %542 = vmatpush1.msra.mxu0 0.0
    %543 = vmatprep.subr.mxu0 0.0
    %544 = vmatpush1.msra.mxu0 0.0
    %545 = vmatprep.subr.mxu0 0.0
    %546 = vmatpush1.msra.mxu0 0.0
    %547 = vmatprep.subr.mxu0 0.0
    %548 = vmatpush1.msra.mxu0 0.0
    %549 = vmatprep.subr.mxu0 0.0
    %550 = vmatpush1.msra.mxu0 0.0
    %551 = vmatprep.subr.mxu0 0.0
    %552 = vmatpush1.msra.mxu0 0.0
    %553 = vmatprep.subr.mxu0 0.0
    %554 = vmatpush1.msra.mxu0 %v299
    %555 = vmatprep.subr.mxu0 0.0
    %556 = vmatpush1.msra.mxu0 %v227
    %557 = vmatprep.subr.mxu0 0.0
    %558 = vmatpush1.msra.mxu0 %v222
    %559 = vmatprep.subr.mxu0 0.0
    %560 = vmatpush2.msra.mxu0 0.0
    %561 = vmatprep.subr.mxu0 0.0
    %562 = vmatpush2.msra.mxu0 0.0
    %563 = vmatprep.subr.mxu0 0.0
    %564 = vmatpush2.msra.mxu0 0.0
    %565 = vmatprep.subr.mxu0 0.0
    %566 = vmatpush2.msra.mxu0 0.0
    %567 = vmatprep.subr.mxu0 0.0
    %568 = vmatpush2.msra.mxu0 0.0
    %569 = vmatprep.subr.mxu0 0.0
    %570 = vmatpush2.msra.mxu0 0.0
    %571 = vmatprep.subr.mxu0 0.0
    %572 = vmatpush2.msra.mxu0 0.0
    %573 = vmatprep.subr.mxu0 0.0
    %574 = vmatpush2.msra.mxu0 0.0
    %575 = vmatprep.subr.mxu0 0.0
    %576 = vmatpush2.msra.mxu0 0.0
    %577 = vmatprep.subr.mxu0 0.0
    %578 = vmatpush2.msra.mxu0 0.0
    %579 = vmatprep.subr.mxu0 0.0
    %580 = vmatpush2.msra.mxu0 0.0
    %581 = vmatprep.subr.mxu0 0.0
    %582 = vmatpush2.msra.mxu0 0.0
    %583 = vmatprep.subr.mxu0 0.0
    %584 = vmatpush2.msra.mxu0 0.0
    %585 = vmatprep.subr.mxu0 0.0
    %586 = vmatpush2.msra.mxu0 0.0
    %587 = vmatprep.subr.mxu0 0.0
    %588 = vmatpush2.msra.mxu0 0.0
    %589 = vmatprep.subr.mxu0 0.0
    %590 = vmatpush2.msra.mxu0 0.0
    %591 = vmatprep.mubr.f32.mxu0 0.0
    %592 = vmatmul.mubr.f32.gmra.mxu0 %v262
    %v593 = vpop.f32.mrf.mxu0
    %v594 = vadd.f32 %v254, %v593
    %v595 = vpop.f32.mrf.mxu0
    %596 = vmatprep.mubr.f32.mxu0 0.0
    %597 = vmatmul.mubr.f32.gmra.mxu0 %v265
    %v598 = vpop.f32.mrf.mxu0
    %v599 = vadd.f32 %v254, %v598
    %v600 = vpop.f32.mrf.mxu0
    %601 = vmatprep.mubr.f32.mxu0 0.0
    %602 = vmatmul.mubr.f32.gmra.mxu0 %v268
    %v603 = vpop.f32.mrf.mxu0
    %v604 = vadd.f32 %v254, %v603
    %v605 = vpop.f32.mrf.mxu0
    %606 = vmatprep.mubr.f32.mxu0 0.0
    %607 = vmatmul.mubr.f32.gmra.mxu0 %v271
    %v608 = vpop.f32.mrf.mxu0
    %v609 = vadd.f32 %v254, %v608
    %v610 = vpop.f32.mrf.mxu0
    %611 = vmatprep.mubr.f32.mxu0 0.0
    %612 = vmatmul.mubr.f32.gmra.mxu0 %v274
    %v613 = vpop.f32.mrf.mxu0
    %v614 = vadd.f32 %v254, %v613
    %v615 = vpop.f32.mrf.mxu0
    %616 = vmatprep.mubr.f32.mxu0 0.0
    %617 = vmatmul.mubr.f32.gmra.mxu0 %v277
    %v618 = vpop.f32.mrf.mxu0
    %v619 = vadd.f32 %v254, %v618
    %v620 = vpop.f32.mrf.mxu0
    %621 = vmatprep.mubr.f32.mxu0 0.0
    %622 = vmatmul.mubr.f32.gmra.mxu0 %v280
    %v623 = vpop.f32.mrf.mxu0
    %v624 = vadd.f32 %v254, %v623
    %v625 = vpop.f32.mrf.mxu0
    %626 = vmatprep.mubr.f32.mxu0 0.0
    %627 = vmatmul.mubr.f32.gmra.mxu0 %v283
    %v628 = vpop.f32.mrf.mxu0
    %v629 = vadd.f32 %v254, %v628
    %v630 = vpop.f32.mrf.mxu0
    %631 = vdwg.mxu0
    %v632 = vmax.f32 %v368, 0.0
    %v633 = vmax.f32 %v370, 0.0
    %v634 = vmax.f32 %v481, 0.0
    %v635 = vmax.f32 %v483, 0.0
    %v636 = vmax.f32 %v594, 0.0
    %v637 = vmax.f32 %v374, 0.0
    %v638 = vmax.f32 %v376, 0.0
    %v639 = vmax.f32 %v487, 0.0
    %v640 = vmax.f32 %v489, 0.0
    %v641 = vmax.f32 %v599, 0.0
    %v642 = vmax.f32 %v380, 0.0
    %v643 = vmax.f32 %v382, 0.0
    %v644 = vmax.f32 %v493, 0.0
    %v645 = vmax.f32 %v495, 0.0
    %v646 = vmax.f32 %v604, 0.0
    %v647 = vmax.f32 %v386, 0.0
    %v648 = vmax.f32 %v388, 0.0
    %v649 = vmax.f32 %v499, 0.0
    %v650 = vmax.f32 %v501, 0.0
    %v651 = vmax.f32 %v609, 0.0
    %v652 = vmax.f32 %v392, 0.0
    %v653 = vmax.f32 %v394, 0.0
    %v654 = vmax.f32 %v505, 0.0
    %v655 = vmax.f32 %v507, 0.0
    %v656 = vmax.f32 %v614, 0.0
    %v657 = vmax.f32 %v398, 0.0
    %v658 = vmax.f32 %v400, 0.0
    %v659 = vmax.f32 %v511, 0.0
    %v660 = vmax.f32 %v513, 0.0
    %v661 = vmax.f32 %v619, 0.0
    %v662 = vmax.f32 %v404, 0.0
    %v663 = vmax.f32 %v406, 0.0
    %v664 = vmax.f32 %v517, 0.0
    %v665 = vmax.f32 %v519, 0.0
    %v666 = vmax.f32 %v624, 0.0
    %v667 = vmax.f32 %v410, 0.0
    %v668 = vmax.f32 %v412, 0.0
    %v669 = vmax.f32 %v523, 0.0
    %v670 = vmax.f32 %v525, 0.0
    %v671 = vmax.f32 %v629, 0.0
    %v672 = vld [vmem:[#allocation7] sm:$0xff]
    %v673 = vld [vmem:[#allocation7 + $0x8] sm:$0xff]
    %v674 = vld [vmem:[#allocation7 + $0x10] sm:$0xff]
    %v675 = vld [vmem:[#allocation7 + $0x18] sm:$0xff]
    %v676 = vld [vmem:[#allocation7 + $0x20] sm:$0xff]
    %v677 = vld [vmem:[#allocation7 + $0x28] sm:$0xff]
    %v678 = vld [vmem:[#allocation7 + $0x30] sm:$0xff]
    %v679 = vld [vmem:[#allocation7 + $0x38] sm:$0xff]
    %v680 = vld [vmem:[#allocation7 + $0x40] sm:$0xff]
    %v681 = vld [vmem:[#allocation7 + $0x48] sm:$0xff]
    %v682 = vld [vmem:[#allocation7 + $0x50] sm:$0xff]
    %v683 = vld [vmem:[#allocation7 + $0x58] sm:$0xff]
    %v684 = vld [vmem:[#allocation7 + $0x60] sm:$0xff]
    %v685 = vld [vmem:[#allocation7 + $0x68] sm:$0xff]
    %v686 = vld [vmem:[#allocation7 + $0x70] sm:$0xff]
    %v687 = vld [vmem:[#allocation7 + $0x78] sm:$0xff]
    %v688 = vld [vmem:[#allocation7 + $0x80] sm:$0xff]
    %v689 = vld [vmem:[#allocation7 + $0x88] sm:$0xff]
    %v690 = vld [vmem:[#allocation7 + $0x90] sm:$0xff]
    %v691 = vld [vmem:[#allocation7 + $0x98] sm:$0xff]
    %v692 = vld [vmem:[#allocation7 + $0xa0] sm:$0xff]
    %v693 = vld [vmem:[#allocation7 + $0xa8] sm:$0xff]
    %v694 = vld [vmem:[#allocation7 + $0xb0] sm:$0xff]
    %v695 = vld [vmem:[#allocation7 + $0xb8] sm:$0xff]
    %v696 = vld [vmem:[#allocation7 + $0xc0] sm:$0xff]
    %v697 = vld [vmem:[#allocation7 + $0xc8] sm:$0xff]
    %v698 = vld [vmem:[#allocation7 + $0xd0] sm:$0xff]
    %v699 = vld [vmem:[#allocation7 + $0xd8] sm:$0xff]
    %v700 = vld [vmem:[#allocation7 + $0xe0] sm:$0xff]
    %v701 = vld [vmem:[#allocation7 + $0xe8] sm:$0xff]
    %v702 = vld [vmem:[#allocation7 + $0xf0] sm:$0xff]
    %v703 = vld [vmem:[#allocation7 + $0xf8] sm:$0xff]
    %v704 = vld [vmem:[#allocation7 + $0x100] sm:$0xff]
    %v705 = vld [vmem:[#allocation7 + $0x108] sm:$0xff]
    %v706 = vld [vmem:[#allocation7 + $0x110] sm:$0xff]
    %v707 = vld [vmem:[#allocation7 + $0x118] sm:$0xff]
    %v708 = vld [vmem:[#allocation7 + $0x120] sm:$0xff]
    %v709 = vld [vmem:[#allocation7 + $0x128] sm:$0xff]
    %v710 = vld [vmem:[#allocation7 + $0x130] sm:$0xff]
    %v711 = vld [vmem:[#allocation7 + $0x138] sm:$0xff]
    %v712 = vld [vmem:[#allocation7 + $0x140] sm:$0xff]
    %v713 = vld [vmem:[#allocation7 + $0x148] sm:$0xff]
    %v714 = vld [vmem:[#allocation7 + $0x150] sm:$0xff]
    %v715 = vld [vmem:[#allocation7 + $0x158] sm:$0xff]
    %v716 = vld [vmem:[#allocation7 + $0x160] sm:$0xff]
    %v717 = vld [vmem:[#allocation7 + $0x168] sm:$0xff]
    %v718 = vld [vmem:[#allocation7 + $0x170] sm:$0xff]
    %v719 = vld [vmem:[#allocation7 + $0x178] sm:$0xff]
    %v720 = vld [vmem:[#allocation7 + $0x180] sm:$0xff]
    %v721 = vld [vmem:[#allocation7 + $0x188] sm:$0xff]
    %v722 = vld [vmem:[#allocation7 + $0x190] sm:$0xff]
    %v723 = vld [vmem:[#allocation7 + $0x198] sm:$0xff]
    %v724 = vld [vmem:[#allocation7 + $0x1a0] sm:$0xff]
    %v725 = vld [vmem:[#allocation7 + $0x1a8] sm:$0xff]
    %v726 = vld [vmem:[#allocation7 + $0x1b0] sm:$0xff]
    %v727 = vld [vmem:[#allocation7 + $0x1b8] sm:$0xff]
    %v728 = vld [vmem:[#allocation7 + $0x1c0] sm:$0xff]
    %v729 = vld [vmem:[#allocation7 + $0x1c8] sm:$0xff]
    %v730 = vld [vmem:[#allocation7 + $0x1d0] sm:$0xff]
    %v731 = vld [vmem:[#allocation7 + $0x1d8] sm:$0xff]
    %v732 = vld [vmem:[#allocation7 + $0x1e0] sm:$0xff]
    %v733 = vld [vmem:[#allocation7 + $0x1e8] sm:$0xff]
    %v734 = vld [vmem:[#allocation7 + $0x1f0] sm:$0xff]
    %v735 = vld [vmem:[#allocation7 + $0x1f8] sm:$0xff]
    %v736 = vld [vmem:[#allocation7 + $0x200] sm:$0xff]
    %v737 = vld [vmem:[#allocation7 + $0x208] sm:$0xff]
    %v738 = vld [vmem:[#allocation7 + $0x210] sm:$0xff]
    %v739 = vld [vmem:[#allocation7 + $0x218] sm:$0xff]
    %v740 = vld [vmem:[#allocation7 + $0x220] sm:$0xff]
    %v741 = vld [vmem:[#allocation7 + $0x228] sm:$0xff]
    %v742 = vld [vmem:[#allocation7 + $0x230] sm:$0xff]
    %v743 = vld [vmem:[#allocation7 + $0x238] sm:$0xff]
    %v744 = vld [vmem:[#allocation7 + $0x240] sm:$0xff]
    %v745 = vld [vmem:[#allocation7 + $0x248] sm:$0xff]
    %v746 = vld [vmem:[#allocation7 + $0x250] sm:$0xff]
    %v747 = vld [vmem:[#allocation7 + $0x258] sm:$0xff]
    %v748 = vld [vmem:[#allocation7 + $0x260] sm:$0xff]
    %v749 = vld [vmem:[#allocation7 + $0x268] sm:$0xff]
    %v750 = vld [vmem:[#allocation7 + $0x270] sm:$0xff]
    %v751 = vld [vmem:[#allocation7 + $0x278] sm:$0xff]
    %v752 = vld [vmem:[#allocation7 + $0x280] sm:$0xff]
    %v753 = vld [vmem:[#allocation7 + $0x288] sm:$0xff]
    %v754 = vld [vmem:[#allocation7 + $0x290] sm:$0xff]
    %v755 = vld [vmem:[#allocation7 + $0x298] sm:$0xff]
    %v756 = vld [vmem:[#allocation7 + $0x2a0] sm:$0xff]
    %v757 = vld [vmem:[#allocation7 + $0x2a8] sm:$0xff]
    %v758 = vld [vmem:[#allocation7 + $0x2b0] sm:$0xff]
    %v759 = vld [vmem:[#allocation7 + $0x2b8] sm:$0xff]
    %v760 = vld [vmem:[#allocation7 + $0x2c0] sm:$0xff]
    %v761 = vld [vmem:[#allocation7 + $0x2c8] sm:$0xff]
    %v762 = vld [vmem:[#allocation7 + $0x2d0] sm:$0xff]
    %v763 = vld [vmem:[#allocation7 + $0x2d8] sm:$0xff]
    %v764 = vld [vmem:[#allocation7 + $0x2e0] sm:$0xff]
    %v765 = vld [vmem:[#allocation7 + $0x2e8] sm:$0xff]
    %v766 = vld [vmem:[#allocation7 + $0x2f0] sm:$0xff]
    %v767 = vld [vmem:[#allocation7 + $0x2f8] sm:$0xff]
    %v768 = vld [vmem:[#allocation7 + $0x300] sm:$0xff]
    %v769 = vld [vmem:[#allocation7 + $0x308] sm:$0xff]
    %v770 = vld [vmem:[#allocation7 + $0x310] sm:$0xff]
    %v771 = vld [vmem:[#allocation7 + $0x318] sm:$0xff]
    %v772 = vld [vmem:[#allocation7 + $0x320] sm:$0xff]
    %v773 = vld [vmem:[#allocation7 + $0x328] sm:$0xff]
    %v774 = vld [vmem:[#allocation7 + $0x330] sm:$0xff]
    %v775 = vld [vmem:[#allocation7 + $0x338] sm:$0xff]
    %v776 = vld [vmem:[#allocation7 + $0x340] sm:$0xff]
    %v777 = vld [vmem:[#allocation7 + $0x348] sm:$0xff]
    %v778 = vld [vmem:[#allocation7 + $0x350] sm:$0xff]
    %v779 = vld [vmem:[#allocation7 + $0x358] sm:$0xff]
    %v780 = vld [vmem:[#allocation7 + $0x360] sm:$0xff]
    %v781 = vld [vmem:[#allocation7 + $0x368] sm:$0xff]
    %v782 = vld [vmem:[#allocation7 + $0x370] sm:$0xff]
    %v783 = vld [vmem:[#allocation7 + $0x378] sm:$0xff]
    %v784 = vld [vmem:[#allocation7 + $0x380] sm:$0xff]
    %v785 = vld [vmem:[#allocation7 + $0x388] sm:$0xff]
    %v786 = vld [vmem:[#allocation7 + $0x390] sm:$0xff]
    %v787 = vld [vmem:[#allocation7 + $0x398] sm:$0xff]
    %v788 = vld [vmem:[#allocation7 + $0x3a0] sm:$0xff]
    %v789 = vld [vmem:[#allocation7 + $0x3a8] sm:$0xff]
    %v790 = vld [vmem:[#allocation7 + $0x3b0] sm:$0xff]
    %v791 = vld [vmem:[#allocation7 + $0x3b8] sm:$0xff]
    %v792 = vld [vmem:[#allocation7 + $0x3c0] sm:$0xff]
    %v793 = vld [vmem:[#allocation7 + $0x3c8] sm:$0xff]
    %v794 = vld [vmem:[#allocation7 + $0x3d0] sm:$0xff]
    %v795 = vld [vmem:[#allocation7 + $0x3d8] sm:$0xff]
    %v796 = vld [vmem:[#allocation7 + $0x3e0] sm:$0xff]
    %v797 = vld [vmem:[#allocation7 + $0x3e8] sm:$0xff]
    %v798 = vld [vmem:[#allocation7 + $0x3f0] sm:$0xff]
    %v799 = vld [vmem:[#allocation7 + $0x3f8] sm:$0xff]
    %v800 = vld [vmem:[#allocation7 + $0x400] sm:$0xff]
    %v801 = vld [vmem:[#allocation7 + $0x408] sm:$0xff]
    %v802 = vld [vmem:[#allocation7 + $0x410] sm:$0xff]
    %v803 = vld [vmem:[#allocation7 + $0x418] sm:$0xff]
    %v804 = vld [vmem:[#allocation7 + $0x420] sm:$0xff]
    %v805 = vld [vmem:[#allocation7 + $0x428] sm:$0xff]
    %v806 = vld [vmem:[#allocation7 + $0x430] sm:$0xff]
    %v807 = vld [vmem:[#allocation7 + $0x438] sm:$0xff]
    %v808 = vld [vmem:[#allocation7 + $0x440] sm:$0xff]
    %v809 = vld [vmem:[#allocation7 + $0x448] sm:$0xff]
    %v810 = vld [vmem:[#allocation7 + $0x450] sm:$0xff]
    %v811 = vld [vmem:[#allocation7 + $0x458] sm:$0xff]
    %v812 = vld [vmem:[#allocation7 + $0x460] sm:$0xff]
    %v813 = vld [vmem:[#allocation7 + $0x468] sm:$0xff]
    %v814 = vld [vmem:[#allocation7 + $0x470] sm:$0xff]
    %v815 = vld [vmem:[#allocation7 + $0x478] sm:$0xff]
    %v816 = vld [vmem:[#allocation7 + $0x480] sm:$0xff]
    %v817 = vld [vmem:[#allocation7 + $0x488] sm:$0xff]
    %v818 = vld [vmem:[#allocation7 + $0x490] sm:$0xff]
    %v819 = vld [vmem:[#allocation7 + $0x498] sm:$0xff]
    %v820 = vld [vmem:[#allocation7 + $0x4a0] sm:$0xff]
    %v821 = vld [vmem:[#allocation7 + $0x4a8] sm:$0xff]
    %v822 = vld [vmem:[#allocation7 + $0x4b0] sm:$0xff]
    %v823 = vld [vmem:[#allocation7 + $0x4b8] sm:$0xff]
    %v824 = vld [vmem:[#allocation7 + $0x4c0] sm:$0xff]
    %v825 = vld [vmem:[#allocation7 + $0x4c8] sm:$0xff]
    %v826 = vld [vmem:[#allocation7 + $0x4d0] sm:$0xff]
    %v827 = vld [vmem:[#allocation7 + $0x4d8] sm:$0xff]
    %v828 = vld [vmem:[#allocation7 + $0x4e0] sm:$0xff]
    %v829 = vld [vmem:[#allocation7 + $0x4e8] sm:$0xff]
    %v830 = vld [vmem:[#allocation7 + $0x4f0] sm:$0xff]
    %v831 = vld [vmem:[#allocation7 + $0x4f8] sm:$0xff]
    %v832 = vld [vmem:[#allocation7 + $0x500] sm:$0xff]
    %v833 = vld [vmem:[#allocation7 + $0x508] sm:$0xff]
    %v834 = vld [vmem:[#allocation7 + $0x510] sm:$0xff]
    %v835 = vld [vmem:[#allocation7 + $0x518] sm:$0xff]
    %v836 = vld [vmem:[#allocation7 + $0x520] sm:$0xff]
    %v837 = vld [vmem:[#allocation7 + $0x528] sm:$0xff]
    %v838 = vld [vmem:[#allocation7 + $0x530] sm:$0xff]
    %v839 = vld [vmem:[#allocation7 + $0x538] sm:$0xff]
    %v840 = vld [vmem:[#allocation7 + $0x540] sm:$0xff]
    %v841 = vld [vmem:[#allocation7 + $0x548] sm:$0xff]
    %v842 = vld [vmem:[#allocation7 + $0x550] sm:$0xff]
    %v843 = vld [vmem:[#allocation7 + $0x558] sm:$0xff]
    %v844 = vld [vmem:[#allocation7 + $0x560] sm:$0xff]
    %v845 = vld [vmem:[#allocation7 + $0x568] sm:$0xff]
    %v846 = vld [vmem:[#allocation7 + $0x570] sm:$0xff]
    %v847 = vld [vmem:[#allocation7 + $0x578] sm:$0xff]
    %v848 = vld [vmem:[#allocation7 + $0x580] sm:$0xff]
    %v849 = vld [vmem:[#allocation7 + $0x588] sm:$0xff]
    %v850 = vld [vmem:[#allocation7 + $0x590] sm:$0xff]
    %v851 = vld [vmem:[#allocation7 + $0x598] sm:$0xff]
    %v852 = vld [vmem:[#allocation7 + $0x5a0] sm:$0xff]
    %v853 = vld [vmem:[#allocation7 + $0x5a8] sm:$0xff]
    %v854 = vld [vmem:[#allocation7 + $0x5b0] sm:$0xff]
    %v855 = vld [vmem:[#allocation7 + $0x5b8] sm:$0xff]
    %v856 = vld [vmem:[#allocation7 + $0x5c0] sm:$0xff]
    %v857 = vld [vmem:[#allocation7 + $0x5c8] sm:$0xff]
    %v858 = vld [vmem:[#allocation7 + $0x5d0] sm:$0xff]
    %v859 = vld [vmem:[#allocation7 + $0x5d8] sm:$0xff]
    %v860 = vld [vmem:[#allocation7 + $0x5e0] sm:$0xff]
    %v861 = vld [vmem:[#allocation7 + $0x5e8] sm:$0xff]
    %v862 = vld [vmem:[#allocation7 + $0x5f0] sm:$0xff]
    %v863 = vld [vmem:[#allocation7 + $0x5f8] sm:$0xff]
    %v864 = vld [vmem:[#allocation7 + $0x600] sm:$0xff]
    %v865 = vld [vmem:[#allocation7 + $0x608] sm:$0xff]
    %v866 = vld [vmem:[#allocation7 + $0x610] sm:$0xff]
    %v867 = vld [vmem:[#allocation7 + $0x618] sm:$0xff]
    %v868 = vld [vmem:[#allocation7 + $0x620] sm:$0xff]
    %v869 = vld [vmem:[#allocation7 + $0x628] sm:$0xff]
    %v870 = vld [vmem:[#allocation7 + $0x630] sm:$0xff]
    %v871 = vld [vmem:[#allocation7 + $0x638] sm:$0xff]
    %v872 = vld [vmem:[#allocation7 + $0x640] sm:$0xff]
    %v873 = vld [vmem:[#allocation7 + $0x648] sm:$0xff]
    %v874 = vld [vmem:[#allocation7 + $0x650] sm:$0xff]
    %v875 = vld [vmem:[#allocation7 + $0x658] sm:$0xff]
    %v876 = vld [vmem:[#allocation7 + $0x660] sm:$0xff]
    %v877 = vld [vmem:[#allocation7 + $0x668] sm:$0xff]
    %v878 = vld [vmem:[#allocation7 + $0x670] sm:$0xff]
    %v879 = vld [vmem:[#allocation7 + $0x678] sm:$0xff]
    %v880 = vld [vmem:[#allocation7 + $0x680] sm:$0xff]
    %v881 = vld [vmem:[#allocation7 + $0x688] sm:$0xff]
    %v882 = vld [vmem:[#allocation7 + $0x690] sm:$0xff]
    %v883 = vld [vmem:[#allocation7 + $0x698] sm:$0xff]
    %v884 = vld [vmem:[#allocation7 + $0x6a0] sm:$0xff]
    %v885 = vld [vmem:[#allocation7 + $0x6a8] sm:$0xff]
    %v886 = vld [vmem:[#allocation7 + $0x6b0] sm:$0xff]
    %v887 = vld [vmem:[#allocation7 + $0x6b8] sm:$0xff]
    %v888 = vld [vmem:[#allocation7 + $0x6c0] sm:$0xff]
    %v889 = vld [vmem:[#allocation7 + $0x6c8] sm:$0xff]
    %v890 = vld [vmem:[#allocation7 + $0x6d0] sm:$0xff]
    %v891 = vld [vmem:[#allocation7 + $0x6d8] sm:$0xff]
    %v892 = vld [vmem:[#allocation7 + $0x6e0] sm:$0xff]
    %v893 = vld [vmem:[#allocation7 + $0x6e8] sm:$0xff]
    %v894 = vld [vmem:[#allocation7 + $0x6f0] sm:$0xff]
    %v895 = vld [vmem:[#allocation7 + $0x6f8] sm:$0xff]
    %v896 = vld [vmem:[#allocation7 + $0x700] sm:$0xff]
    %v897 = vld [vmem:[#allocation7 + $0x708] sm:$0xff]
    %v898 = vld [vmem:[#allocation7 + $0x710] sm:$0xff]
    %v899 = vld [vmem:[#allocation7 + $0x718] sm:$0xff]
    %v900 = vld [vmem:[#allocation7 + $0x720] sm:$0xff]
    %v901 = vld [vmem:[#allocation7 + $0x728] sm:$0xff]
    %v902 = vld [vmem:[#allocation7 + $0x730] sm:$0xff]
    %v903 = vld [vmem:[#allocation7 + $0x738] sm:$0xff]
    %v904 = vld [vmem:[#allocation7 + $0x740] sm:$0xff]
    %v905 = vld [vmem:[#allocation7 + $0x748] sm:$0xff]
    %v906 = vld [vmem:[#allocation7 + $0x750] sm:$0xff]
    %v907 = vld [vmem:[#allocation7 + $0x758] sm:$0xff]
    %v908 = vld [vmem:[#allocation7 + $0x760] sm:$0xff]
    %v909 = vld [vmem:[#allocation7 + $0x768] sm:$0xff]
    %v910 = vld [vmem:[#allocation7 + $0x770] sm:$0xff]
    %v911 = vld [vmem:[#allocation7 + $0x778] sm:$0xff]
    %v912 = vld [vmem:[#allocation7 + $0x780] sm:$0xff]
    %v913 = vld [vmem:[#allocation7 + $0x788] sm:$0xff]
    %v914 = vld [vmem:[#allocation7 + $0x790] sm:$0xff]
    %v915 = vld [vmem:[#allocation7 + $0x798] sm:$0xff]
    %v916 = vld [vmem:[#allocation7 + $0x7a0] sm:$0xff]
    %v917 = vld [vmem:[#allocation7 + $0x7a8] sm:$0xff]
    %v918 = vld [vmem:[#allocation7 + $0x7b0] sm:$0xff]
    %v919 = vld [vmem:[#allocation7 + $0x7b8] sm:$0xff]
    %v920 = vld [vmem:[#allocation7 + $0x7c0] sm:$0xff]
    %v921 = vld [vmem:[#allocation7 + $0x7c8] sm:$0xff]
    %v922 = vld [vmem:[#allocation7 + $0x7d0] sm:$0xff]
    %v923 = vld [vmem:[#allocation7 + $0x7d8] sm:$0xff]
    %v924 = vld [vmem:[#allocation7 + $0x7e0] sm:$0xff]
    %v925 = vld [vmem:[#allocation7 + $0x7e8] sm:$0xff]
    %v926 = vld [vmem:[#allocation7 + $0x7f0] sm:$0xff]
    %v927 = vld [vmem:[#allocation7 + $0x7f8] sm:$0xff]
    %v928 = vld [vmem:[#allocation7 + $0x800] sm:$0xff]
    %v929 = vld [vmem:[#allocation7 + $0x808] sm:$0xff]
    %v930 = vld [vmem:[#allocation7 + $0x810] sm:$0xff]
    %v931 = vld [vmem:[#allocation7 + $0x818] sm:$0xff]
    %v932 = vld [vmem:[#allocation7 + $0x820] sm:$0xff]
    %v933 = vld [vmem:[#allocation7 + $0x828] sm:$0xff]
    %v934 = vld [vmem:[#allocation7 + $0x830] sm:$0xff]
    %v935 = vld [vmem:[#allocation7 + $0x838] sm:$0xff]
    %v936 = vld [vmem:[#allocation7 + $0x840] sm:$0xff]
    %v937 = vld [vmem:[#allocation7 + $0x848] sm:$0xff]
    %v938 = vld [vmem:[#allocation7 + $0x850] sm:$0xff]
    %v939 = vld [vmem:[#allocation7 + $0x858] sm:$0xff]
    %v940 = vld [vmem:[#allocation7 + $0x860] sm:$0xff]
    %v941 = vld [vmem:[#allocation7 + $0x868] sm:$0xff]
    %v942 = vld [vmem:[#allocation7 + $0x870] sm:$0xff]
    %v943 = vld [vmem:[#allocation7 + $0x878] sm:$0xff]
    %v944 = vld [vmem:[#allocation7 + $0x880] sm:$0xff]
    %v945 = vld [vmem:[#allocation7 + $0x888] sm:$0xff]
    %v946 = vld [vmem:[#allocation7 + $0x890] sm:$0xff]
    %v947 = vld [vmem:[#allocation7 + $0x898] sm:$0xff]
    %v948 = vld [vmem:[#allocation7 + $0x8a0] sm:$0xff]
    %v949 = vld [vmem:[#allocation7 + $0x8a8] sm:$0xff]
    %v950 = vld [vmem:[#allocation7 + $0x8b0] sm:$0xff]
    %v951 = vld [vmem:[#allocation7 + $0x8b8] sm:$0xff]
    %v952 = vld [vmem:[#allocation7 + $0x8c0] sm:$0xff]
    %v953 = vld [vmem:[#allocation7 + $0x8c8] sm:$0xff]
    %v954 = vld [vmem:[#allocation7 + $0x8d0] sm:$0xff]
    %v955 = vld [vmem:[#allocation7 + $0x8d8] sm:$0xff]
    %v956 = vld [vmem:[#allocation7 + $0x8e0] sm:$0xff]
    %v957 = vld [vmem:[#allocation7 + $0x8e8] sm:$0xff]
    %v958 = vld [vmem:[#allocation7 + $0x8f0] sm:$0xff]
    %v959 = vld [vmem:[#allocation7 + $0x8f8] sm:$0xff]
    %v960 = vld [vmem:[#allocation7 + $0x900] sm:$0xff]
    %v961 = vld [vmem:[#allocation7 + $0x908] sm:$0xff]
    %v962 = vld [vmem:[#allocation7 + $0x910] sm:$0xff]
    %v963 = vld [vmem:[#allocation7 + $0x918] sm:$0xff]
    %v964 = vld [vmem:[#allocation7 + $0x920] sm:$0xff]
    %v965 = vld [vmem:[#allocation7 + $0x928] sm:$0xff]
    %v966 = vld [vmem:[#allocation7 + $0x930] sm:$0xff]
    %v967 = vld [vmem:[#allocation7 + $0x938] sm:$0xff]
    %v968 = vld [vmem:[#allocation7 + $0x940] sm:$0xff]
    %v969 = vld [vmem:[#allocation7 + $0x948] sm:$0xff]
    %v970 = vld [vmem:[#allocation7 + $0x950] sm:$0xff]
    %v971 = vld [vmem:[#allocation7 + $0x958] sm:$0xff]
    %v972 = vld [vmem:[#allocation7 + $0x960] sm:$0xff]
    %v973 = vld [vmem:[#allocation7 + $0x968] sm:$0xff]
    %v974 = vld [vmem:[#allocation7 + $0x970] sm:$0xff]
    %v975 = vld [vmem:[#allocation7 + $0x978] sm:$0xff]
    %v976 = vld [vmem:[#allocation8] sm:$0xf]
    %v978 = vlaneseq
    %v979 = vshrl.u32 %v978, 7
    %v980 = vsub.s32 0, %v979
    %v981 = vrot.slane %v976, %v980
    %v982 = vlaneseq
    %v983 = vshrl.u32 %v982, 7
    %v984 = vsub.s32 1, %v983
    %v985 = vrot.slane %v976, %v984
    %v986 = vlaneseq
    %v987 = vshrl.u32 %v986, 7
    %v988 = vsub.s32 2, %v987
    %v989 = vrot.slane %v976, %v988
    %v990 = vlaneseq
    %v991 = vshrl.u32 %v990, 7
    %v992 = vsub.s32 3, %v991
    %v993 = vrot.slane %v976, %v992
    %vm998 = vcmask 785408
    %v1000 = vsel %vm998, %v636, 0
    %v1003 = vsel %vm998, %v641, 0
    %v1006 = vsel %vm998, %v646, 0
    %v1009 = vsel %vm998, %v651, 0
    %v1012 = vsel %vm998, %v656, 0
    %v1015 = vsel %vm998, %v661, 0
    %v1018 = vsel %vm998, %v666, 0
    %v1021 = vsel %vm998, %v671, 0
    %1023 = vmatprep.subr.mxu0 %v733
    %1024 = vmatpush1.msra.mxu0 %v732
    %1025 = vmatprep.subr.mxu0 %v729
    %1026 = vmatpush1.msra.mxu0 %v728
    %1027 = vmatprep.subr.mxu0 %v725
    %1028 = vmatpush1.msra.mxu0 %v724
    %1029 = vmatprep.subr.mxu0 %v721
    %1030 = vmatpush1.msra.mxu0 %v720
    %1031 = vmatprep.subr.mxu0 %v717
    %1032 = vmatpush1.msra.mxu0 %v716
    %1033 = vmatprep.subr.mxu0 %v713
    %1034 = vmatpush1.msra.mxu0 %v712
    %1035 = vmatprep.subr.mxu0 %v709
    %1036 = vmatpush1.msra.mxu0 %v708
    %1037 = vmatprep.subr.mxu0 %v705
    %1038 = vmatpush1.msra.mxu0 %v704
    %1039 = vmatprep.subr.mxu0 %v701
    %1040 = vmatpush1.msra.mxu0 %v700
    %1041 = vmatprep.subr.mxu0 %v697
    %1042 = vmatpush1.msra.mxu0 %v696
    %1043 = vmatprep.subr.mxu0 %v693
    %1044 = vmatpush1.msra.mxu0 %v692
    %1045 = vmatprep.subr.mxu0 %v689
    %1046 = vmatpush1.msra.mxu0 %v688
    %1047 = vmatprep.subr.mxu0 %v685
    %1048 = vmatpush1.msra.mxu0 %v684
    %1049 = vmatprep.subr.mxu0 %v681
    %1050 = vmatpush1.msra.mxu0 %v680
    %1051 = vmatprep.subr.mxu0 %v677
    %1052 = vmatpush1.msra.mxu0 %v676
    %1053 = vmatprep.subr.mxu0 %v673
    %1054 = vmatpush1.msra.mxu0 %v672
    %1055 = vmatprep.subr.mxu0 %v797
    %1056 = vmatpush2.msra.mxu0 %v796
    %1057 = vmatprep.subr.mxu0 %v793
    %1058 = vmatpush2.msra.mxu0 %v792
    %1059 = vmatprep.subr.mxu0 %v789
    %1060 = vmatpush2.msra.mxu0 %v788
    %1061 = vmatprep.subr.mxu0 %v785
    %1062 = vmatpush2.msra.mxu0 %v784
    %1063 = vmatprep.subr.mxu0 %v781
    %1064 = vmatpush2.msra.mxu0 %v780
    %1065 = vmatprep.subr.mxu0 %v777
    %1066 = vmatpush2.msra.mxu0 %v776
    %1067 = vmatprep.subr.mxu0 %v773
    %1068 = vmatpush2.msra.mxu0 %v772
    %1069 = vmatprep.subr.mxu0 %v769
    %1070 = vmatpush2.msra.mxu0 %v768
    %1071 = vmatprep.subr.mxu0 %v765
    %1072 = vmatpush2.msra.mxu0 %v764
    %1073 = vmatprep.subr.mxu0 %v761
    %1074 = vmatpush2.msra.mxu0 %v760
    %1075 = vmatprep.subr.mxu0 %v757
    %1076 = vmatpush2.msra.mxu0 %v756
    %1077 = vmatprep.subr.mxu0 %v753
    %1078 = vmatpush2.msra.mxu0 %v752
    %1079 = vmatprep.subr.mxu0 %v749
    %1080 = vmatpush2.msra.mxu0 %v748
    %1081 = vmatprep.subr.mxu0 %v745
    %1082 = vmatpush2.msra.mxu0 %v744
    %1083 = vmatprep.subr.mxu0 %v741
    %1084 = vmatpush2.msra.mxu0 %v740
    %1085 = vmatprep.subr.mxu0 %v737
    %1086 = vmatpush2.msra.mxu0 %v736
    %1087 = vmatprep.mubr.f32.mxu0 %v633
    %1088 = vmatmul.mubr.f32.gmra.mxu0 %v632
    %v1089 = vpop.f32.mrf.mxu0
    %v1090 = vadd.f32 %v981, %v1089
    %v1091 = vpop.f32.mrf.mxu0
    %v1092 = vadd.f32 %v985, %v1091
    %1093 = vmatprep.mubr.f32.mxu0 %v638
    %1094 = vmatmul.mubr.f32.gmra.mxu0 %v637
    %v1095 = vpop.f32.mrf.mxu0
    %v1096 = vadd.f32 %v981, %v1095
    %v1097 = vpop.f32.mrf.mxu0
    %v1098 = vadd.f32 %v985, %v1097
    %1099 = vmatprep.mubr.f32.mxu0 %v643
    %1100 = vmatmul.mubr.f32.gmra.mxu0 %v642
    %v1101 = vpop.f32.mrf.mxu0
    %v1102 = vadd.f32 %v981, %v1101
    %v1103 = vpop.f32.mrf.mxu0
    %v1104 = vadd.f32 %v985, %v1103
    %1105 = vmatprep.mubr.f32.mxu0 %v648
    %1106 = vmatmul.mubr.f32.gmra.mxu0 %v647
    %v1107 = vpop.f32.mrf.mxu0
    %v1108 = vadd.f32 %v981, %v1107
    %v1109 = vpop.f32.mrf.mxu0
    %v1110 = vadd.f32 %v985, %v1109
    %1111 = vmatprep.mubr.f32.mxu0 %v653
    %1112 = vmatmul.mubr.f32.gmra.mxu0 %v652
    %v1113 = vpop.f32.mrf.mxu0
    %v1114 = vadd.f32 %v981, %v1113
    %v1115 = vpop.f32.mrf.mxu0
    %v1116 = vadd.f32 %v985, %v1115
    %1117 = vmatprep.mubr.f32.mxu0 %v658
    %1118 = vmatmul.mubr.f32.gmra.mxu0 %v657
    %v1119 = vpop.f32.mrf.mxu0
    %v1120 = vadd.f32 %v981, %v1119
    %v1121 = vpop.f32.mrf.mxu0
    %v1122 = vadd.f32 %v985, %v1121
    %1123 = vmatprep.mubr.f32.mxu0 %v663
    %1124 = vmatmul.mubr.f32.gmra.mxu0 %v662
    %v1125 = vpop.f32.mrf.mxu0
    %v1126 = vadd.f32 %v981, %v1125
    %v1127 = vpop.f32.mrf.mxu0
    %v1128 = vadd.f32 %v985, %v1127
    %1129 = vmatprep.mubr.f32.mxu0 %v668
    %1130 = vmatmul.mubr.f32.gmra.mxu0 %v667
    %v1131 = vpop.f32.mrf.mxu0
    %v1132 = vadd.f32 %v981, %v1131
    %v1133 = vpop.f32.mrf.mxu0
    %v1134 = vadd.f32 %v985, %v1133
    %1135 = vdwg.mxu0
    %1136 = vmatprep.subr.mxu0 %v861
    %1137 = vmatpush1.msra.mxu0 %v860
    %1138 = vmatprep.subr.mxu0 %v857
    %1139 = vmatpush1.msra.mxu0 %v856
    %1140 = vmatprep.subr.mxu0 %v853
    %1141 = vmatpush1.msra.mxu0 %v852
    %1142 = vmatprep.subr.mxu0 %v849
    %1143 = vmatpush1.msra.mxu0 %v848
    %1144 = vmatprep.subr.mxu0 %v845
    %1145 = vmatpush1.msra.mxu0 %v844
    %1146 = vmatprep.subr.mxu0 %v841
    %1147 = vmatpush1.msra.mxu0 %v840
    %1148 = vmatprep.subr.mxu0 %v837
    %1149 = vmatpush1.msra.mxu0 %v836
    %1150 = vmatprep.subr.mxu0 %v833
    %1151 = vmatpush1.msra.mxu0 %v832
    %1152 = vmatprep.subr.mxu0 %v829
    %1153 = vmatpush1.msra.mxu0 %v828
    %1154 = vmatprep.subr.mxu0 %v825
    %1155 = vmatpush1.msra.mxu0 %v824
    %1156 = vmatprep.subr.mxu0 %v821
    %1157 = vmatpush1.msra.mxu0 %v820
    %1158 = vmatprep.subr.mxu0 %v817
    %1159 = vmatpush1.msra.mxu0 %v816
    %1160 = vmatprep.subr.mxu0 %v813
    %1161 = vmatpush1.msra.mxu0 %v812
    %1162 = vmatprep.subr.mxu0 %v809
    %1163 = vmatpush1.msra.mxu0 %v808
    %1164 = vmatprep.subr.mxu0 %v805
    %1165 = vmatpush1.msra.mxu0 %v804
    %1166 = vmatprep.subr.mxu0 %v801
    %1167 = vmatpush1.msra.mxu0 %v800
    %1168 = vmatprep.subr.mxu0 %v925
    %1169 = vmatpush2.msra.mxu0 %v924
    %1170 = vmatprep.subr.mxu0 %v921
    %1171 = vmatpush2.msra.mxu0 %v920
    %1172 = vmatprep.subr.mxu0 %v917
    %1173 = vmatpush2.msra.mxu0 %v916
    %1174 = vmatprep.subr.mxu0 %v913
    %1175 = vmatpush2.msra.mxu0 %v912
    %1176 = vmatprep.subr.mxu0 %v909
    %1177 = vmatpush2.msra.mxu0 %v908
    %1178 = vmatprep.subr.mxu0 %v905
    %1179 = vmatpush2.msra.mxu0 %v904
    %1180 = vmatprep.subr.mxu0 %v901
    %1181 = vmatpush2.msra.mxu0 %v900
    %1182 = vmatprep.subr.mxu0 %v897
    %1183 = vmatpush2.msra.mxu0 %v896
    %1184 = vmatprep.subr.mxu0 %v893
    %1185 = vmatpush2.msra.mxu0 %v892
    %1186 = vmatprep.subr.mxu0 %v889
    %1187 = vmatpush2.msra.mxu0 %v888
    %1188 = vmatprep.subr.mxu0 %v885
    %1189 = vmatpush2.msra.mxu0 %v884
    %1190 = vmatprep.subr.mxu0 %v881
    %1191 = vmatpush2.msra.mxu0 %v880
    %1192 = vmatprep.subr.mxu0 %v877
    %1193 = vmatpush2.msra.mxu0 %v876
    %1194 = vmatprep.subr.mxu0 %v873
    %1195 = vmatpush2.msra.mxu0 %v872
    %1196 = vmatprep.subr.mxu0 %v869
    %1197 = vmatpush2.msra.mxu0 %v868
    %1198 = vmatprep.subr.mxu0 %v865
    %1199 = vmatpush2.msra.mxu0 %v864
    %1200 = vmatprep.mubr.f32.mxu0 %v635
    %1201 = vmatmul.mubr.f32.gmra.mxu0 %v634
    %v1202 = vpop.f32.mrf.mxu0
    %v1203 = vadd.f32 %v1090, %v1202
    %v1204 = vpop.f32.mrf.mxu0
    %v1205 = vadd.f32 %v1092, %v1204
    %1206 = vmatprep.mubr.f32.mxu0 %v640
    %1207 = vmatmul.mubr.f32.gmra.mxu0 %v639
    %v1208 = vpop.f32.mrf.mxu0
    %v1209 = vadd.f32 %v1096, %v1208
    %v1210 = vpop.f32.mrf.mxu0
    %v1211 = vadd.f32 %v1098, %v1210
    %1212 = vmatprep.mubr.f32.mxu0 %v645
    %1213 = vmatmul.mubr.f32.gmra.mxu0 %v644
    %v1214 = vpop.f32.mrf.mxu0
    %v1215 = vadd.f32 %v1102, %v1214
    %v1216 = vpop.f32.mrf.mxu0
    %v1217 = vadd.f32 %v1104, %v1216
    %1218 = vmatprep.mubr.f32.mxu0 %v650
    %1219 = vmatmul.mubr.f32.gmra.mxu0 %v649
    %v1220 = vpop.f32.mrf.mxu0
    %v1221 = vadd.f32 %v1108, %v1220
    %v1222 = vpop.f32.mrf.mxu0
    %v1223 = vadd.f32 %v1110, %v1222
    %1224 = vmatprep.mubr.f32.mxu0 %v655
    %1225 = vmatmul.mubr.f32.gmra.mxu0 %v654
    %v1226 = vpop.f32.mrf.mxu0
    %v1227 = vadd.f32 %v1114, %v1226
    %v1228 = vpop.f32.mrf.mxu0
    %v1229 = vadd.f32 %v1116, %v1228
    %1230 = vmatprep.mubr.f32.mxu0 %v660
    %1231 = vmatmul.mubr.f32.gmra.mxu0 %v659
    %v1232 = vpop.f32.mrf.mxu0
    %v1233 = vadd.f32 %v1120, %v1232
    %v1234 = vpop.f32.mrf.mxu0
    %v1235 = vadd.f32 %v1122, %v1234
    %1236 = vmatprep.mubr.f32.mxu0 %v665
    %1237 = vmatmul.mubr.f32.gmra.mxu0 %v664
    %v1238 = vpop.f32.mrf.mxu0
    %v1239 = vadd.f32 %v1126, %v1238
    %v1240 = vpop.f32.mrf.mxu0
    %v1241 = vadd.f32 %v1128, %v1240
    %1242 = vmatprep.mubr.f32.mxu0 %v670
    %1243 = vmatmul.mubr.f32.gmra.mxu0 %v669
    %v1244 = vpop.f32.mrf.mxu0
    %v1245 = vadd.f32 %v1132, %v1244
    %v1246 = vpop.f32.mrf.mxu0
    %v1247 = vadd.f32 %v1134, %v1246
    %1248 = vdwg.mxu0
    %1249 = vmatprep.subr.mxu0 0.0
    %1250 = vmatpush1.msra.mxu0 0.0
    %1251 = vmatprep.subr.mxu0 0.0
    %1252 = vmatpush1.msra.mxu0 0.0
    %1253 = vmatprep.subr.mxu0 0.0
    %1254 = vmatpush1.msra.mxu0 0.0
    %1255 = vmatprep.subr.mxu0 0.0
    %1256 = vmatpush1.msra.mxu0 0.0
    %1257 = vmatprep.subr.mxu0 %v973
    %1258 = vmatpush1.msra.mxu0 %v972
    %1259 = vmatprep.subr.mxu0 %v969
    %1260 = vmatpush1.msra.mxu0 %v968
    %1261 = vmatprep.subr.mxu0 %v965
    %1262 = vmatpush1.msra.mxu0 %v964
    %1263 = vmatprep.subr.mxu0 %v961
    %1264 = vmatpush1.msra.mxu0 %v960
    %1265 = vmatprep.subr.mxu0 %v957
    %1266 = vmatpush1.msra.mxu0 %v956
    %1267 = vmatprep.subr.mxu0 %v953
    %1268 = vmatpush1.msra.mxu0 %v952
    %1269 = vmatprep.subr.mxu0 %v949
    %1270 = vmatpush1.msra.mxu0 %v948
    %1271 = vmatprep.subr.mxu0 %v945
    %1272 = vmatpush1.msra.mxu0 %v944
    %1273 = vmatprep.subr.mxu0 %v941
    %1274 = vmatpush1.msra.mxu0 %v940
    %1275 = vmatprep.subr.mxu0 %v937
    %1276 = vmatpush1.msra.mxu0 %v936
    %1277 = vmatprep.subr.mxu0 %v933
    %1278 = vmatpush1.msra.mxu0 %v932
    %1279 = vmatprep.subr.mxu0 %v929
    %1280 = vmatpush1.msra.mxu0 %v928
    %1281 = vmatprep.subr.mxu0 0.0
    %1282 = vmatpush2.msra.mxu0 0.0
    %1283 = vmatprep.subr.mxu0 0.0
    %1284 = vmatpush2.msra.mxu0 0.0
    %1285 = vmatprep.subr.mxu0 0.0
    %1286 = vmatpush2.msra.mxu0 0.0
    %1287 = vmatprep.subr.mxu0 0.0
    %1288 = vmatpush2.msra.mxu0 0.0
    %1289 = vmatprep.subr.mxu0 0.0
    %1290 = vmatpush2.msra.mxu0 0.0
    %1291 = vmatprep.subr.mxu0 0.0
    %1292 = vmatpush2.msra.mxu0 0.0
    %1293 = vmatprep.subr.mxu0 0.0
    %1294 = vmatpush2.msra.mxu0 0.0
    %1295 = vmatprep.subr.mxu0 0.0
    %1296 = vmatpush2.msra.mxu0 0.0
    %1297 = vmatprep.subr.mxu0 0.0
    %1298 = vmatpush2.msra.mxu0 0.0
    %1299 = vmatprep.subr.mxu0 0.0
    %1300 = vmatpush2.msra.mxu0 0.0
    %1301 = vmatprep.subr.mxu0 0.0
    %1302 = vmatpush2.msra.mxu0 0.0
    %1303 = vmatprep.subr.mxu0 0.0
    %1304 = vmatpush2.msra.mxu0 0.0
    %1305 = vmatprep.subr.mxu0 0.0
    %1306 = vmatpush2.msra.mxu0 0.0
    %1307 = vmatprep.subr.mxu0 0.0
    %1308 = vmatpush2.msra.mxu0 0.0
    %1309 = vmatprep.subr.mxu0 0.0
    %1310 = vmatpush2.msra.mxu0 0.0
    %1311 = vmatprep.subr.mxu0 0.0
    %1312 = vmatpush2.msra.mxu0 0.0
    %1313 = vmatprep.mubr.f32.mxu0 0.0
    %1314 = vmatmul.mubr.f32.gmra.mxu0 %v1000
    %v1315 = vpop.f32.mrf.mxu0
    %v1316 = vadd.f32 %v1203, %v1315
    %v1317 = vpop.f32.mrf.mxu0
    %v1318 = vadd.f32 %v1205, %v1317
    %1319 = vmatprep.mubr.f32.mxu0 0.0
    %1320 = vmatmul.mubr.f32.gmra.mxu0 %v1003
    %v1321 = vpop.f32.mrf.mxu0
    %v1322 = vadd.f32 %v1209, %v1321
    %v1323 = vpop.f32.mrf.mxu0
    %v1324 = vadd.f32 %v1211, %v1323
    %1325 = vmatprep.mubr.f32.mxu0 0.0
    %1326 = vmatmul.mubr.f32.gmra.mxu0 %v1006
    %v1327 = vpop.f32.mrf.mxu0
    %v1328 = vadd.f32 %v1215, %v1327
    %v1329 = vpop.f32.mrf.mxu0
    %v1330 = vadd.f32 %v1217, %v1329
    %1331 = vmatprep.mubr.f32.mxu0 0.0
    %1332 = vmatmul.mubr.f32.gmra.mxu0 %v1009
    %v1333 = vpop.f32.mrf.mxu0
    %v1334 = vadd.f32 %v1221, %v1333
    %v1335 = vpop.f32.mrf.mxu0
    %v1336 = vadd.f32 %v1223, %v1335
    %1337 = vmatprep.mubr.f32.mxu0 0.0
    %1338 = vmatmul.mubr.f32.gmra.mxu0 %v1012
    %v1339 = vpop.f32.mrf.mxu0
    %v1340 = vadd.f32 %v1227, %v1339
    %v1341 = vpop.f32.mrf.mxu0
    %v1342 = vadd.f32 %v1229, %v1341
    %1343 = vmatprep.mubr.f32.mxu0 0.0
    %1344 = vmatmul.mubr.f32.gmra.mxu0 %v1015
    %v1345 = vpop.f32.mrf.mxu0
    %v1346 = vadd.f32 %v1233, %v1345
    %v1347 = vpop.f32.mrf.mxu0
    %v1348 = vadd.f32 %v1235, %v1347
    %1349 = vmatprep.mubr.f32.mxu0 0.0
    %1350 = vmatmul.mubr.f32.gmra.mxu0 %v1018
    %v1351 = vpop.f32.mrf.mxu0
    %v1352 = vadd.f32 %v1239, %v1351
    %v1353 = vpop.f32.mrf.mxu0
    %v1354 = vadd.f32 %v1241, %v1353
    %1355 = vmatprep.mubr.f32.mxu0 0.0
    %1356 = vmatmul.mubr.f32.gmra.mxu0 %v1021
    %v1357 = vpop.f32.mrf.mxu0
    %v1358 = vadd.f32 %v1245, %v1357
    %v1359 = vpop.f32.mrf.mxu0
    %v1360 = vadd.f32 %v1247, %v1359
    %1361 = vdwg.mxu0
    %1362 = vmatprep.subr.mxu0 %v735
    %1363 = vmatpush1.msra.mxu0 %v734
    %1364 = vmatprep.subr.mxu0 %v731
    %1365 = vmatpush1.msra.mxu0 %v730
    %1366 = vmatprep.subr.mxu0 %v727
    %1367 = vmatpush1.msra.mxu0 %v726
    %1368 = vmatprep.subr.mxu0 %v723
    %1369 = vmatpush1.msra.mxu0 %v722
    %1370 = vmatprep.subr.mxu0 %v719
    %1371 = vmatpush1.msra.mxu0 %v718
    %1372 = vmatprep.subr.mxu0 %v715
    %1373 = vmatpush1.msra.mxu0 %v714
    %1374 = vmatprep.subr.mxu0 %v711
    %1375 = vmatpush1.msra.mxu0 %v710
    %1376 = vmatprep.subr.mxu0 %v707
    %1377 = vmatpush1.msra.mxu0 %v706
    %1378 = vmatprep.subr.mxu0 %v703
    %1379 = vmatpush1.msra.mxu0 %v702
    %1380 = vmatprep.subr.mxu0 %v699
    %1381 = vmatpush1.msra.mxu0 %v698
    %1382 = vmatprep.subr.mxu0 %v695
    %1383 = vmatpush1.msra.mxu0 %v694
    %1384 = vmatprep.subr.mxu0 %v691
    %1385 = vmatpush1.msra.mxu0 %v690
    %1386 = vmatprep.subr.mxu0 %v687
    %1387 = vmatpush1.msra.mxu0 %v686
    %1388 = vmatprep.subr.mxu0 %v683
    %1389 = vmatpush1.msra.mxu0 %v682
    %1390 = vmatprep.subr.mxu0 %v679
    %1391 = vmatpush1.msra.mxu0 %v678
    %1392 = vmatprep.subr.mxu0 %v675
    %1393 = vmatpush1.msra.mxu0 %v674
    %1394 = vmatprep.subr.mxu0 %v799
    %1395 = vmatpush2.msra.mxu0 %v798
    %1396 = vmatprep.subr.mxu0 %v795
    %1397 = vmatpush2.msra.mxu0 %v794
    %1398 = vmatprep.subr.mxu0 %v791
    %1399 = vmatpush2.msra.mxu0 %v790
    %1400 = vmatprep.subr.mxu0 %v787
    %1401 = vmatpush2.msra.mxu0 %v786
    %1402 = vmatprep.subr.mxu0 %v783
    %1403 = vmatpush2.msra.mxu0 %v782
    %1404 = vmatprep.subr.mxu0 %v779
    %1405 = vmatpush2.msra.mxu0 %v778
    %1406 = vmatprep.subr.mxu0 %v775
    %1407 = vmatpush2.msra.mxu0 %v774
    %1408 = vmatprep.subr.mxu0 %v771
    %1409 = vmatpush2.msra.mxu0 %v770
    %1410 = vmatprep.subr.mxu0 %v767
    %1411 = vmatpush2.msra.mxu0 %v766
    %1412 = vmatprep.subr.mxu0 %v763
    %1413 = vmatpush2.msra.mxu0 %v762
    %1414 = vmatprep.subr.mxu0 %v759
    %1415 = vmatpush2.msra.mxu0 %v758
    %1416 = vmatprep.subr.mxu0 %v755
    %1417 = vmatpush2.msra.mxu0 %v754
    %1418 = vmatprep.subr.mxu0 %v751
    %1419 = vmatpush2.msra.mxu0 %v750
    %1420 = vmatprep.subr.mxu0 %v747
    %1421 = vmatpush2.msra.mxu0 %v746
    %1422 = vmatprep.subr.mxu0 %v743
    %1423 = vmatpush2.msra.mxu0 %v742
    %1424 = vmatprep.subr.mxu0 %v739
    %1425 = vmatpush2.msra.mxu0 %v738
    %1426 = vmatprep.mubr.f32.mxu0 %v633
    %1427 = vmatmul.mubr.f32.gmra.mxu0 %v632
    %v1428 = vpop.f32.mrf.mxu0
    %v1429 = vadd.f32 %v989, %v1428
    %v1430 = vpop.f32.mrf.mxu0
    %v1431 = vadd.f32 %v993, %v1430
    %1432 = vmatprep.mubr.f32.mxu0 %v638
    %1433 = vmatmul.mubr.f32.gmra.mxu0 %v637
    %v1434 = vpop.f32.mrf.mxu0
    %v1435 = vadd.f32 %v989, %v1434
    %v1436 = vpop.f32.mrf.mxu0
    %v1437 = vadd.f32 %v993, %v1436
    %1438 = vmatprep.mubr.f32.mxu0 %v643
    %1439 = vmatmul.mubr.f32.gmra.mxu0 %v642
    %v1440 = vpop.f32.mrf.mxu0
    %v1441 = vadd.f32 %v989, %v1440
    %v1442 = vpop.f32.mrf.mxu0
    %v1443 = vadd.f32 %v993, %v1442
    %1444 = vmatprep.mubr.f32.mxu0 %v648
    %1445 = vmatmul.mubr.f32.gmra.mxu0 %v647
    %v1446 = vpop.f32.mrf.mxu0
    %v1447 = vadd.f32 %v989, %v1446
    %v1448 = vpop.f32.mrf.mxu0
    %v1449 = vadd.f32 %v993, %v1448
    %1450 = vmatprep.mubr.f32.mxu0 %v653
    %1451 = vmatmul.mubr.f32.gmra.mxu0 %v652
    %v1452 = vpop.f32.mrf.mxu0
    %v1453 = vadd.f32 %v989, %v1452
    %v1454 = vpop.f32.mrf.mxu0
    %v1455 = vadd.f32 %v993, %v1454
    %1456 = vmatprep.mubr.f32.mxu0 %v658
    %1457 = vmatmul.mubr.f32.gmra.mxu0 %v657
    %v1458 = vpop.f32.mrf.mxu0
    %v1459 = vadd.f32 %v989, %v1458
    %v1460 = vpop.f32.mrf.mxu0
    %v1461 = vadd.f32 %v993, %v1460
    %1462 = vmatprep.mubr.f32.mxu0 %v663
    %1463 = vmatmul.mubr.f32.gmra.mxu0 %v662
    %v1464 = vpop.f32.mrf.mxu0
    %v1465 = vadd.f32 %v989, %v1464
    %v1466 = vpop.f32.mrf.mxu0
    %v1467 = vadd.f32 %v993, %v1466
    %1468 = vmatprep.mubr.f32.mxu0 %v668
    %1469 = vmatmul.mubr.f32.gmra.mxu0 %v667
    %v1470 = vpop.f32.mrf.mxu0
    %v1471 = vadd.f32 %v989, %v1470
    %v1472 = vpop.f32.mrf.mxu0
    %v1473 = vadd.f32 %v993, %v1472
    %1474 = vdwg.mxu0
    %1475 = vmatprep.subr.mxu0 %v863
    %1476 = vmatpush1.msra.mxu0 %v862
    %1477 = vmatprep.subr.mxu0 %v859
    %1478 = vmatpush1.msra.mxu0 %v858
    %1479 = vmatprep.subr.mxu0 %v855
    %1480 = vmatpush1.msra.mxu0 %v854
    %1481 = vmatprep.subr.mxu0 %v851
    %1482 = vmatpush1.msra.mxu0 %v850
    %1483 = vmatprep.subr.mxu0 %v847
    %1484 = vmatpush1.msra.mxu0 %v846
    %1485 = vmatprep.subr.mxu0 %v843
    %1486 = vmatpush1.msra.mxu0 %v842
    %1487 = vmatprep.subr.mxu0 %v839
    %1488 = vmatpush1.msra.mxu0 %v838
    %1489 = vmatprep.subr.mxu0 %v835
    %1490 = vmatpush1.msra.mxu0 %v834
    %1491 = vmatprep.subr.mxu0 %v831
    %1492 = vmatpush1.msra.mxu0 %v830
    %1493 = vmatprep.subr.mxu0 %v827
    %1494 = vmatpush1.msra.mxu0 %v826
    %1495 = vmatprep.subr.mxu0 %v823
    %1496 = vmatpush1.msra.mxu0 %v822
    %1497 = vmatprep.subr.mxu0 %v819
    %1498 = vmatpush1.msra.mxu0 %v818
    %1499 = vmatprep.subr.mxu0 %v815
    %1500 = vmatpush1.msra.mxu0 %v814
    %1501 = vmatprep.subr.mxu0 %v811
    %1502 = vmatpush1.msra.mxu0 %v810
    %1503 = vmatprep.subr.mxu0 %v807
    %1504 = vmatpush1.msra.mxu0 %v806
    %1505 = vmatprep.subr.mxu0 %v803
    %1506 = vmatpush1.msra.mxu0 %v802
    %1507 = vmatprep.subr.mxu0 %v927
    %1508 = vmatpush2.msra.mxu0 %v926
    %1509 = vmatprep.subr.mxu0 %v923
    %1510 = vmatpush2.msra.mxu0 %v922
    %1511 = vmatprep.subr.mxu0 %v919
    %1512 = vmatpush2.msra.mxu0 %v918
    %1513 = vmatprep.subr.mxu0 %v915
    %1514 = vmatpush2.msra.mxu0 %v914
    %1515 = vmatprep.subr.mxu0 %v911
    %1516 = vmatpush2.msra.mxu0 %v910
    %1517 = vmatprep.subr.mxu0 %v907
    %1518 = vmatpush2.msra.mxu0 %v906
    %1519 = vmatprep.subr.mxu0 %v903
    %1520 = vmatpush2.msra.mxu0 %v902
    %1521 = vmatprep.subr.mxu0 %v899
    %1522 = vmatpush2.msra.mxu0 %v898
    %1523 = vmatprep.subr.mxu0 %v895
    %1524 = vmatpush2.msra.mxu0 %v894
    %1525 = vmatprep.subr.mxu0 %v891
    %1526 = vmatpush2.msra.mxu0 %v890
    %1527 = vmatprep.subr.mxu0 %v887
    %1528 = vmatpush2.msra.mxu0 %v886
    %1529 = vmatprep.subr.mxu0 %v883
    %1530 = vmatpush2.msra.mxu0 %v882
    %1531 = vmatprep.subr.mxu0 %v879
    %1532 = vmatpush2.msra.mxu0 %v878
    %1533 = vmatprep.subr.mxu0 %v875
    %1534 = vmatpush2.msra.mxu0 %v874
    %1535 = vmatprep.subr.mxu0 %v871
    %1536 = vmatpush2.msra.mxu0 %v870
    %1537 = vmatprep.subr.mxu0 %v867
    %1538 = vmatpush2.msra.mxu0 %v866
    %1539 = vmatprep.mubr.f32.mxu0 %v635
    %1540 = vmatmul.mubr.f32.gmra.mxu0 %v634
    %v1541 = vpop.f32.mrf.mxu0
    %v1542 = vadd.f32 %v1429, %v1541
    %v1543 = vpop.f32.mrf.mxu0
    %v1544 = vadd.f32 %v1431, %v1543
    %1545 = vmatprep.mubr.f32.mxu0 %v640
    %1546 = vmatmul.mubr.f32.gmra.mxu0 %v639
    %v1547 = vpop.f32.mrf.mxu0
    %v1548 = vadd.f32 %v1435, %v1547
    %v1549 = vpop.f32.mrf.mxu0
    %v1550 = vadd.f32 %v1437, %v1549
    %1551 = vmatprep.mubr.f32.mxu0 %v645
    %1552 = vmatmul.mubr.f32.gmra.mxu0 %v644
    %v1553 = vpop.f32.mrf.mxu0
    %v1554 = vadd.f32 %v1441, %v1553
    %v1555 = vpop.f32.mrf.mxu0
    %v1556 = vadd.f32 %v1443, %v1555
    %1557 = vmatprep.mubr.f32.mxu0 %v650
    %1558 = vmatmul.mubr.f32.gmra.mxu0 %v649
    %v1559 = vpop.f32.mrf.mxu0
    %v1560 = vadd.f32 %v1447, %v1559
    %v1561 = vpop.f32.mrf.mxu0
    %v1562 = vadd.f32 %v1449, %v1561
    %1563 = vmatprep.mubr.f32.mxu0 %v655
    %1564 = vmatmul.mubr.f32.gmra.mxu0 %v654
    %v1565 = vpop.f32.mrf.mxu0
    %v1566 = vadd.f32 %v1453, %v1565
    %v1567 = vpop.f32.mrf.mxu0
    %v1568 = vadd.f32 %v1455, %v1567
    %1569 = vmatprep.mubr.f32.mxu0 %v660
    %1570 = vmatmul.mubr.f32.gmra.mxu0 %v659
    %v1571 = vpop.f32.mrf.mxu0
    %v1572 = vadd.f32 %v1459, %v1571
    %v1573 = vpop.f32.mrf.mxu0
    %v1574 = vadd.f32 %v1461, %v1573
    %1575 = vmatprep.mubr.f32.mxu0 %v665
    %1576 = vmatmul.mubr.f32.gmra.mxu0 %v664
    %v1577 = vpop.f32.mrf.mxu0
    %v1578 = vadd.f32 %v1465, %v1577
    %v1579 = vpop.f32.mrf.mxu0
    %v1580 = vadd.f32 %v1467, %v1579
    %1581 = vmatprep.mubr.f32.mxu0 %v670
    %1582 = vmatmul.mubr.f32.gmra.mxu0 %v669
    %v1583 = vpop.f32.mrf.mxu0
    %v1584 = vadd.f32 %v1471, %v1583
    %v1585 = vpop.f32.mrf.mxu0
    %v1586 = vadd.f32 %v1473, %v1585
    %1587 = vdwg.mxu0
    %1588 = vmatprep.subr.mxu0 0.0
    %1589 = vmatpush1.msra.mxu0 0.0
    %1590 = vmatprep.subr.mxu0 0.0
    %1591 = vmatpush1.msra.mxu0 0.0
    %1592 = vmatprep.subr.mxu0 0.0
    %1593 = vmatpush1.msra.mxu0 0.0
    %1594 = vmatprep.subr.mxu0 0.0
    %1595 = vmatpush1.msra.mxu0 0.0
    %1596 = vmatprep.subr.mxu0 %v975
    %1597 = vmatpush1.msra.mxu0 %v974
    %1598 = vmatprep.subr.mxu0 %v971
    %1599 = vmatpush1.msra.mxu0 %v970
    %1600 = vmatprep.subr.mxu0 %v967
    %1601 = vmatpush1.msra.mxu0 %v966
    %1602 = vmatprep.subr.mxu0 %v963
    %1603 = vmatpush1.msra.mxu0 %v962
    %1604 = vmatprep.subr.mxu0 %v959
    %1605 = vmatpush1.msra.mxu0 %v958
    %1606 = vmatprep.subr.mxu0 %v955
    %1607 = vmatpush1.msra.mxu0 %v954
    %1608 = vmatprep.subr.mxu0 %v951
    %1609 = vmatpush1.msra.mxu0 %v950
    %1610 = vmatprep.subr.mxu0 %v947
    %1611 = vmatpush1.msra.mxu0 %v946
    %1612 = vmatprep.subr.mxu0 %v943
    %1613 = vmatpush1.msra.mxu0 %v942
    %1614 = vmatprep.subr.mxu0 %v939
    %1615 = vmatpush1.msra.mxu0 %v938
    %1616 = vmatprep.subr.mxu0 %v935
    %1617 = vmatpush1.msra.mxu0 %v934
    %1618 = vmatprep.subr.mxu0 %v931
    %1619 = vmatpush1.msra.mxu0 %v930
    %1620 = vmatprep.subr.mxu0 0.0
    %1621 = vmatpush2.msra.mxu0 0.0
    %1622 = vmatprep.subr.mxu0 0.0
    %1623 = vmatpush2.msra.mxu0 0.0
    %1624 = vmatprep.subr.mxu0 0.0
    %1625 = vmatpush2.msra.mxu0 0.0
    %1626 = vmatprep.subr.mxu0 0.0
    %1627 = vmatpush2.msra.mxu0 0.0
    %1628 = vmatprep.subr.mxu0 0.0
    %1629 = vmatpush2.msra.mxu0 0.0
    %1630 = vmatprep.subr.mxu0 0.0
    %1631 = vmatpush2.msra.mxu0 0.0
    %1632 = vmatprep.subr.mxu0 0.0
    %1633 = vmatpush2.msra.mxu0 0.0
    %1634 = vmatprep.subr.mxu0 0.0
    %1635 = vmatpush2.msra.mxu0 0.0
    %1636 = vmatprep.subr.mxu0 0.0
    %1637 = vmatpush2.msra.mxu0 0.0
    %1638 = vmatprep.subr.mxu0 0.0
    %1639 = vmatpush2.msra.mxu0 0.0
    %1640 = vmatprep.subr.mxu0 0.0
    %1641 = vmatpush2.msra.mxu0 0.0
    %1642 = vmatprep.subr.mxu0 0.0
    %1643 = vmatpush2.msra.mxu0 0.0
    %1644 = vmatprep.subr.mxu0 0.0
    %1645 = vmatpush2.msra.mxu0 0.0
    %1646 = vmatprep.subr.mxu0 0.0
    %1647 = vmatpush2.msra.mxu0 0.0
    %1648 = vmatprep.subr.mxu0 0.0
    %1649 = vmatpush2.msra.mxu0 0.0
    %1650 = vmatprep.subr.mxu0 0.0
    %1651 = vmatpush2.msra.mxu0 0.0
    %1652 = vmatprep.mubr.f32.mxu0 0.0
    %1653 = vmatmul.mubr.f32.gmra.mxu0 %v1000
    %v1654 = vpop.f32.mrf.mxu0
    %v1655 = vadd.f32 %v1542, %v1654
    %v1656 = vpop.f32.mrf.mxu0
    %v1657 = vadd.f32 %v1544, %v1656
    %1658 = vmatprep.mubr.f32.mxu0 0.0
    %1659 = vmatmul.mubr.f32.gmra.mxu0 %v1003
    %v1660 = vpop.f32.mrf.mxu0
    %v1661 = vadd.f32 %v1548, %v1660
    %v1662 = vpop.f32.mrf.mxu0
    %v1663 = vadd.f32 %v1550, %v1662
    %1664 = vmatprep.mubr.f32.mxu0 0.0
    %1665 = vmatmul.mubr.f32.gmra.mxu0 %v1006
    %v1666 = vpop.f32.mrf.mxu0
    %v1667 = vadd.f32 %v1554, %v1666
    %v1668 = vpop.f32.mrf.mxu0
    %v1669 = vadd.f32 %v1556, %v1668
    %1670 = vmatprep.mubr.f32.mxu0 0.0
    %1671 = vmatmul.mubr.f32.gmra.mxu0 %v1009
    %v1672 = vpop.f32.mrf.mxu0
    %v1673 = vadd.f32 %v1560, %v1672
    %v1674 = vpop.f32.mrf.mxu0
    %v1675 = vadd.f32 %v1562, %v1674
    %1676 = vmatprep.mubr.f32.mxu0 0.0
    %1677 = vmatmul.mubr.f32.gmra.mxu0 %v1012
    %v1678 = vpop.f32.mrf.mxu0
    %v1679 = vadd.f32 %v1566, %v1678
    %v1680 = vpop.f32.mrf.mxu0
    %v1681 = vadd.f32 %v1568, %v1680
    %1682 = vmatprep.mubr.f32.mxu0 0.0
    %1683 = vmatmul.mubr.f32.gmra.mxu0 %v1015
    %v1684 = vpop.f32.mrf.mxu0
    %v1685 = vadd.f32 %v1572, %v1684
    %v1686 = vpop.f32.mrf.mxu0
    %v1687 = vadd.f32 %v1574, %v1686
    %1688 = vmatprep.mubr.f32.mxu0 0.0
    %1689 = vmatmul.mubr.f32.gmra.mxu0 %v1018
    %v1690 = vpop.f32.mrf.mxu0
    %v1691 = vadd.f32 %v1578, %v1690
    %v1692 = vpop.f32.mrf.mxu0
    %v1693 = vadd.f32 %v1580, %v1692
    %1694 = vmatprep.mubr.f32.mxu0 0.0
    %1695 = vmatmul.mubr.f32.gmra.mxu0 %v1021
    %v1696 = vpop.f32.mrf.mxu0
    %v1697 = vadd.f32 %v1584, %v1696
    %v1698 = vpop.f32.mrf.mxu0
    %v1699 = vadd.f32 %v1586, %v1698
    %1700 = vdwg.mxu0
    %v1701 = vmax.f32 %v1316, 0.0
    %v1702 = vmax.f32 %v1318, 0.0
    %v1703 = vmax.f32 %v1655, 0.0
    %v1704 = vmax.f32 %v1657, 0.0
    %v1705 = vmax.f32 %v1322, 0.0
    %v1706 = vmax.f32 %v1324, 0.0
    %v1707 = vmax.f32 %v1661, 0.0
    %v1708 = vmax.f32 %v1663, 0.0
    %v1709 = vmax.f32 %v1328, 0.0
    %v1710 = vmax.f32 %v1330, 0.0
    %v1711 = vmax.f32 %v1667, 0.0
    %v1712 = vmax.f32 %v1669, 0.0
    %v1713 = vmax.f32 %v1334, 0.0
    %v1714 = vmax.f32 %v1336, 0.0
    %v1715 = vmax.f32 %v1673, 0.0
    %v1716 = vmax.f32 %v1675, 0.0
    %v1717 = vmax.f32 %v1340, 0.0
    %v1718 = vmax.f32 %v1342, 0.0
    %v1719 = vmax.f32 %v1679, 0.0
    %v1720 = vmax.f32 %v1681, 0.0
    %v1721 = vmax.f32 %v1346, 0.0
    %v1722 = vmax.f32 %v1348, 0.0
    %v1723 = vmax.f32 %v1685, 0.0
    %v1724 = vmax.f32 %v1687, 0.0
    %v1725 = vmax.f32 %v1352, 0.0
    %v1726 = vmax.f32 %v1354, 0.0
    %v1727 = vmax.f32 %v1691, 0.0
    %v1728 = vmax.f32 %v1693, 0.0
    %v1729 = vmax.f32 %v1358, 0.0
    %v1730 = vmax.f32 %v1360, 0.0
    %v1731 = vmax.f32 %v1697, 0.0
    %v1732 = vmax.f32 %v1699, 0.0
    %v1733 = vld [vmem:[#allocation10] sm:$0xff]
    %v1734 = vld [vmem:[#allocation10 + $0x8] sm:$0xff]
    %v1735 = vld [vmem:[#allocation10 + $0x10] sm:$0xff]
    %v1736 = vld [vmem:[#allocation10 + $0x18] sm:$0xff]
    %v1737 = vld [vmem:[#allocation10 + $0x20] sm:$0xff]
    %v1738 = vld [vmem:[#allocation10 + $0x28] sm:$0xff]
    %v1739 = vld [vmem:[#allocation10 + $0x30] sm:$0xff]
    %v1740 = vld [vmem:[#allocation10 + $0x38] sm:$0xff]
    %v1741 = vld [vmem:[#allocation10 + $0x40] sm:$0xff]
    %v1742 = vld [vmem:[#allocation10 + $0x48] sm:$0xff]
    %v1743 = vld [vmem:[#allocation10 + $0x50] sm:$0xff]
    %v1744 = vld [vmem:[#allocation10 + $0x58] sm:$0xff]
    %v1745 = vld [vmem:[#allocation10 + $0x60] sm:$0xff]
    %v1746 = vld [vmem:[#allocation10 + $0x68] sm:$0xff]
    %v1747 = vld [vmem:[#allocation10 + $0x70] sm:$0xff]
    %v1748 = vld [vmem:[#allocation10 + $0x78] sm:$0xff]
    %v1749 = vld [vmem:[#allocation10 + $0x80] sm:$0xff]
    %v1750 = vld [vmem:[#allocation10 + $0x88] sm:$0xff]
    %v1751 = vld [vmem:[#allocation10 + $0x90] sm:$0xff]
    %v1752 = vld [vmem:[#allocation10 + $0x98] sm:$0xff]
    %v1753 = vld [vmem:[#allocation10 + $0xa0] sm:$0xff]
    %v1754 = vld [vmem:[#allocation10 + $0xa8] sm:$0xff]
    %v1755 = vld [vmem:[#allocation10 + $0xb0] sm:$0xff]
    %v1756 = vld [vmem:[#allocation10 + $0xb8] sm:$0xff]
    %v1757 = vld [vmem:[#allocation10 + $0xc0] sm:$0xff]
    %v1758 = vld [vmem:[#allocation10 + $0xc8] sm:$0xff]
    %v1759 = vld [vmem:[#allocation10 + $0xd0] sm:$0xff]
    %v1760 = vld [vmem:[#allocation10 + $0xd8] sm:$0xff]
    %v1761 = vld [vmem:[#allocation10 + $0xe0] sm:$0xff]
    %v1762 = vld [vmem:[#allocation10 + $0xe8] sm:$0xff]
    %v1763 = vld [vmem:[#allocation10 + $0xf0] sm:$0xff]
    %v1764 = vld [vmem:[#allocation10 + $0xf8] sm:$0xff]
    %v1765 = vld [vmem:[#allocation10 + $0x100] sm:$0xff]
    %v1766 = vld [vmem:[#allocation10 + $0x108] sm:$0xff]
    %v1767 = vld [vmem:[#allocation10 + $0x110] sm:$0xff]
    %v1768 = vld [vmem:[#allocation10 + $0x118] sm:$0xff]
    %v1769 = vld [vmem:[#allocation10 + $0x120] sm:$0xff]
    %v1770 = vld [vmem:[#allocation10 + $0x128] sm:$0xff]
    %v1771 = vld [vmem:[#allocation10 + $0x130] sm:$0xff]
    %v1772 = vld [vmem:[#allocation10 + $0x138] sm:$0xff]
    %v1773 = vld [vmem:[#allocation10 + $0x140] sm:$0xff]
    %v1774 = vld [vmem:[#allocation10 + $0x148] sm:$0xff]
    %v1775 = vld [vmem:[#allocation10 + $0x150] sm:$0xff]
    %v1776 = vld [vmem:[#allocation10 + $0x158] sm:$0xff]
    %v1777 = vld [vmem:[#allocation10 + $0x160] sm:$0xff]
    %v1778 = vld [vmem:[#allocation10 + $0x168] sm:$0xff]
    %v1779 = vld [vmem:[#allocation10 + $0x170] sm:$0xff]
    %v1780 = vld [vmem:[#allocation10 + $0x178] sm:$0xff]
    %v1781 = vld [vmem:[#allocation10 + $0x180] sm:$0xff]
    %v1782 = vld [vmem:[#allocation10 + $0x188] sm:$0xff]
    %v1783 = vld [vmem:[#allocation10 + $0x190] sm:$0xff]
    %v1784 = vld [vmem:[#allocation10 + $0x198] sm:$0xff]
    %v1785 = vld [vmem:[#allocation10 + $0x1a0] sm:$0xff]
    %v1786 = vld [vmem:[#allocation10 + $0x1a8] sm:$0xff]
    %v1787 = vld [vmem:[#allocation10 + $0x1b0] sm:$0xff]
    %v1788 = vld [vmem:[#allocation10 + $0x1b8] sm:$0xff]
    %v1789 = vld [vmem:[#allocation10 + $0x1c0] sm:$0xff]
    %v1790 = vld [vmem:[#allocation10 + $0x1c8] sm:$0xff]
    %v1791 = vld [vmem:[#allocation10 + $0x1d0] sm:$0xff]
    %v1792 = vld [vmem:[#allocation10 + $0x1d8] sm:$0xff]
    %v1793 = vld [vmem:[#allocation10 + $0x1e0] sm:$0xff]
    %v1794 = vld [vmem:[#allocation10 + $0x1e8] sm:$0xff]
    %v1795 = vld [vmem:[#allocation10 + $0x1f0] sm:$0xff]
    %v1796 = vld [vmem:[#allocation10 + $0x1f8] sm:$0xff]
    %v1797 = vld [vmem:[#allocation11] sm:$0x1]
    %v1799 = vlaneseq
    %v1800 = vshrl.u32 %v1799, 7
    %v1801 = vsub.s32 0, %v1800
    %v1802 = vrot.slane %v1797, %v1801
    %1804 = vmatprep.subr.mxu0 0.0
    %1805 = vmatpush1.msra.mxu0 %v1748
    %1806 = vmatprep.subr.mxu0 0.0
    %1807 = vmatpush1.msra.mxu0 %v1747
    %1808 = vmatprep.subr.mxu0 0.0
    %1809 = vmatpush1.msra.mxu0 %v1746
    %1810 = vmatprep.subr.mxu0 0.0
    %1811 = vmatpush1.msra.mxu0 %v1745
    %1812 = vmatprep.subr.mxu0 0.0
    %1813 = vmatpush1.msra.mxu0 %v1744
    %1814 = vmatprep.subr.mxu0 0.0
    %1815 = vmatpush1.msra.mxu0 %v1743
    %1816 = vmatprep.subr.mxu0 0.0
    %1817 = vmatpush1.msra.mxu0 %v1742
    %1818 = vmatprep.subr.mxu0 0.0
    %1819 = vmatpush1.msra.mxu0 %v1741
    %1820 = vmatprep.subr.mxu0 0.0
    %1821 = vmatpush1.msra.mxu0 %v1740
    %1822 = vmatprep.subr.mxu0 0.0
    %1823 = vmatpush1.msra.mxu0 %v1739
    %1824 = vmatprep.subr.mxu0 0.0
    %1825 = vmatpush1.msra.mxu0 %v1738
    %1826 = vmatprep.subr.mxu0 0.0
    %1827 = vmatpush1.msra.mxu0 %v1737
    %1828 = vmatprep.subr.mxu0 0.0
    %1829 = vmatpush1.msra.mxu0 %v1736
    %1830 = vmatprep.subr.mxu0 0.0
    %1831 = vmatpush1.msra.mxu0 %v1735
    %1832 = vmatprep.subr.mxu0 0.0
    %1833 = vmatpush1.msra.mxu0 %v1734
    %1834 = vmatprep.subr.mxu0 0.0
    %1835 = vmatpush1.msra.mxu0 %v1733
    %1836 = vmatprep.subr.mxu0 0.0
    %1837 = vmatpush2.msra.mxu0 %v1764
    %1838 = vmatprep.subr.mxu0 0.0
    %1839 = vmatpush2.msra.mxu0 %v1763
    %1840 = vmatprep.subr.mxu0 0.0
    %1841 = vmatpush2.msra.mxu0 %v1762
    %1842 = vmatprep.subr.mxu0 0.0
    %1843 = vmatpush2.msra.mxu0 %v1761
    %1844 = vmatprep.subr.mxu0 0.0
    %1845 = vmatpush2.msra.mxu0 %v1760
    %1846 = vmatprep.subr.mxu0 0.0
    %1847 = vmatpush2.msra.mxu0 %v1759
    %1848 = vmatprep.subr.mxu0 0.0
    %1849 = vmatpush2.msra.mxu0 %v1758
    %1850 = vmatprep.subr.mxu0 0.0
    %1851 = vmatpush2.msra.mxu0 %v1757
    %1852 = vmatprep.subr.mxu0 0.0
    %1853 = vmatpush2.msra.mxu0 %v1756
    %1854 = vmatprep.subr.mxu0 0.0
    %1855 = vmatpush2.msra.mxu0 %v1755
    %1856 = vmatprep.subr.mxu0 0.0
    %1857 = vmatpush2.msra.mxu0 %v1754
    %1858 = vmatprep.subr.mxu0 0.0
    %1859 = vmatpush2.msra.mxu0 %v1753
    %1860 = vmatprep.subr.mxu0 0.0
    %1861 = vmatpush2.msra.mxu0 %v1752
    %1862 = vmatprep.subr.mxu0 0.0
    %1863 = vmatpush2.msra.mxu0 %v1751
    %1864 = vmatprep.subr.mxu0 0.0
    %1865 = vmatpush2.msra.mxu0 %v1750
    %1866 = vmatprep.subr.mxu0 0.0
    %1867 = vmatpush2.msra.mxu0 %v1749
    %1868 = vmatprep.mubr.f32.mxu0 %v1702
    %1869 = vmatmul.mubr.f32.gmra.mxu0 %v1701
    %v1870 = vpop.f32.mrf.mxu0
    %v1871 = vadd.f32 %v1802, %v1870
    %v1872 = vpop.f32.mrf.mxu0
    %1873 = vmatprep.mubr.f32.mxu0 %v1706
    %1874 = vmatmul.mubr.f32.gmra.mxu0 %v1705
    %v1875 = vpop.f32.mrf.mxu0
    %v1876 = vadd.f32 %v1802, %v1875
    %v1877 = vpop.f32.mrf.mxu0
    %1878 = vmatprep.mubr.f32.mxu0 %v1710
    %1879 = vmatmul.mubr.f32.gmra.mxu0 %v1709
    %v1880 = vpop.f32.mrf.mxu0
    %v1881 = vadd.f32 %v1802, %v1880
    %v1882 = vpop.f32.mrf.mxu0
    %1883 = vmatprep.mubr.f32.mxu0 %v1714
    %1884 = vmatmul.mubr.f32.gmra.mxu0 %v1713
    %v1885 = vpop.f32.mrf.mxu0
    %v1886 = vadd.f32 %v1802, %v1885
    %v1887 = vpop.f32.mrf.mxu0
    %1888 = vmatprep.mubr.f32.mxu0 %v1718
    %1889 = vmatmul.mubr.f32.gmra.mxu0 %v1717
    %v1890 = vpop.f32.mrf.mxu0
    %v1891 = vadd.f32 %v1802, %v1890
    %v1892 = vpop.f32.mrf.mxu0
    %1893 = vmatprep.mubr.f32.mxu0 %v1722
    %1894 = vmatmul.mubr.f32.gmra.mxu0 %v1721
    %v1895 = vpop.f32.mrf.mxu0
    %v1896 = vadd.f32 %v1802, %v1895
    %v1897 = vpop.f32.mrf.mxu0
    %1898 = vmatprep.mubr.f32.mxu0 %v1726
    %1899 = vmatmul.mubr.f32.gmra.mxu0 %v1725
    %v1900 = vpop.f32.mrf.mxu0
    %v1901 = vadd.f32 %v1802, %v1900
    %v1902 = vpop.f32.mrf.mxu0
    %1903 = vmatprep.mubr.f32.mxu0 %v1730
    %1904 = vmatmul.mubr.f32.gmra.mxu0 %v1729
    %v1905 = vpop.f32.mrf.mxu0
    %v1906 = vadd.f32 %v1802, %v1905
    %v1907 = vpop.f32.mrf.mxu0
    %1908 = vdwg.mxu0
    %1909 = vmatprep.subr.mxu0 0.0
    %1910 = vmatpush1.msra.mxu0 %v1780
    %1911 = vmatprep.subr.mxu0 0.0
    %1912 = vmatpush1.msra.mxu0 %v1779
    %1913 = vmatprep.subr.mxu0 0.0
    %1914 = vmatpush1.msra.mxu0 %v1778
    %1915 = vmatprep.subr.mxu0 0.0
    %1916 = vmatpush1.msra.mxu0 %v1777
    %1917 = vmatprep.subr.mxu0 0.0
    %1918 = vmatpush1.msra.mxu0 %v1776
    %1919 = vmatprep.subr.mxu0 0.0
    %1920 = vmatpush1.msra.mxu0 %v1775
    %1921 = vmatprep.subr.mxu0 0.0
    %1922 = vmatpush1.msra.mxu0 %v1774
    %1923 = vmatprep.subr.mxu0 0.0
    %1924 = vmatpush1.msra.mxu0 %v1773
    %1925 = vmatprep.subr.mxu0 0.0
    %1926 = vmatpush1.msra.mxu0 %v1772
    %1927 = vmatprep.subr.mxu0 0.0
    %1928 = vmatpush1.msra.mxu0 %v1771
    %1929 = vmatprep.subr.mxu0 0.0
    %1930 = vmatpush1.msra.mxu0 %v1770
    %1931 = vmatprep.subr.mxu0 0.0
    %1932 = vmatpush1.msra.mxu0 %v1769
    %1933 = vmatprep.subr.mxu0 0.0
    %1934 = vmatpush1.msra.mxu0 %v1768
    %1935 = vmatprep.subr.mxu0 0.0
    %1936 = vmatpush1.msra.mxu0 %v1767
    %1937 = vmatprep.subr.mxu0 0.0
    %1938 = vmatpush1.msra.mxu0 %v1766
    %1939 = vmatprep.subr.mxu0 0.0
    %1940 = vmatpush1.msra.mxu0 %v1765
    %1941 = vmatprep.subr.mxu0 0.0
    %1942 = vmatpush2.msra.mxu0 %v1796
    %1943 = vmatprep.subr.mxu0 0.0
    %1944 = vmatpush2.msra.mxu0 %v1795
    %1945 = vmatprep.subr.mxu0 0.0
    %1946 = vmatpush2.msra.mxu0 %v1794
    %1947 = vmatprep.subr.mxu0 0.0
    %1948 = vmatpush2.msra.mxu0 %v1793
    %1949 = vmatprep.subr.mxu0 0.0
    %1950 = vmatpush2.msra.mxu0 %v1792
    %1951 = vmatprep.subr.mxu0 0.0
    %1952 = vmatpush2.msra.mxu0 %v1791
    %1953 = vmatprep.subr.mxu0 0.0
    %1954 = vmatpush2.msra.mxu0 %v1790
    %1955 = vmatprep.subr.mxu0 0.0
    %1956 = vmatpush2.msra.mxu0 %v1789
    %1957 = vmatprep.subr.mxu0 0.0
    %1958 = vmatpush2.msra.mxu0 %v1788
    %1959 = vmatprep.subr.mxu0 0.0
    %1960 = vmatpush2.msra.mxu0 %v1787
    %1961 = vmatprep.subr.mxu0 0.0
    %1962 = vmatpush2.msra.mxu0 %v1786
    %1963 = vmatprep.subr.mxu0 0.0
    %1964 = vmatpush2.msra.mxu0 %v1785
    %1965 = vmatprep.subr.mxu0 0.0
    %1966 = vmatpush2.msra.mxu0 %v1784
    %1967 = vmatprep.subr.mxu0 0.0
    %1968 = vmatpush2.msra.mxu0 %v1783
    %1969 = vmatprep.subr.mxu0 0.0
    %1970 = vmatpush2.msra.mxu0 %v1782
    %1971 = vmatprep.subr.mxu0 0.0
    %1972 = vmatpush2.msra.mxu0 %v1781
    %1973 = vmatprep.mubr.f32.mxu0 %v1704
    %1974 = vmatmul.mubr.f32.gmra.mxu0 %v1703
    %v1975 = vpop.f32.mrf.mxu0
    %v1976 = vadd.f32 %v1871, %v1975
    %v1977 = vpop.f32.mrf.mxu0
    %1978 = vmatprep.mubr.f32.mxu0 %v1708
    %1979 = vmatmul.mubr.f32.gmra.mxu0 %v1707
    %v1980 = vpop.f32.mrf.mxu0
    %v1981 = vadd.f32 %v1876, %v1980
    %v1982 = vpop.f32.mrf.mxu0
    %1983 = vmatprep.mubr.f32.mxu0 %v1712
    %1984 = vmatmul.mubr.f32.gmra.mxu0 %v1711
    %v1985 = vpop.f32.mrf.mxu0
    %v1986 = vadd.f32 %v1881, %v1985
    %v1987 = vpop.f32.mrf.mxu0
    %1988 = vmatprep.mubr.f32.mxu0 %v1716
    %1989 = vmatmul.mubr.f32.gmra.mxu0 %v1715
    %v1990 = vpop.f32.mrf.mxu0
    %v1991 = vadd.f32 %v1886, %v1990
    %v1992 = vpop.f32.mrf.mxu0
    %1993 = vmatprep.mubr.f32.mxu0 %v1720
    %1994 = vmatmul.mubr.f32.gmra.mxu0 %v1719
    %v1995 = vpop.f32.mrf.mxu0
    %v1996 = vadd.f32 %v1891, %v1995
    %v1997 = vpop.f32.mrf.mxu0
    %1998 = vmatprep.mubr.f32.mxu0 %v1724
    %1999 = vmatmul.mubr.f32.gmra.mxu0 %v1723
    %v2000 = vpop.f32.mrf.mxu0
    %v2001 = vadd.f32 %v1896, %v2000
    %v2002 = vpop.f32.mrf.mxu0
    %2003 = vmatprep.mubr.f32.mxu0 %v1728
    %2004 = vmatmul.mubr.f32.gmra.mxu0 %v1727
    %v2005 = vpop.f32.mrf.mxu0
    %v2006 = vadd.f32 %v1901, %v2005
    %v2007 = vpop.f32.mrf.mxu0
    %2008 = vmatprep.mubr.f32.mxu0 %v1732
    %2009 = vmatmul.mubr.f32.gmra.mxu0 %v1731
    %v2010 = vpop.f32.mrf.mxu0
    %v2011 = vadd.f32 %v1906, %v2010
    %v2012 = vpop.f32.mrf.mxu0
    %2013 = vdwg.mxu0
    %v2014 = vld [vmem:[%s3] sm:$0xff]
    %v2015 = vld [vmem:[%s3 + $0x8] sm:$0xff]
    %v2016 = vld [vmem:[%s3 + $0x10] sm:$0xff]
    %v2017 = vld [vmem:[%s3 + $0x18] sm:$0xff]
    %v2018 = vld [vmem:[%s3 + $0x20] sm:$0xff]
    %v2019 = vld [vmem:[%s3 + $0x28] sm:$0xff]
    %v2020 = vld [vmem:[%s3 + $0x30] sm:$0xff]
    %v2021 = vld [vmem:[%s3 + $0x38] sm:$0xff]
    %v2022 = vld [vmem:[#allocation13] sm:$0xff]
    %v2023 = vld [vmem:[#allocation13 + $0x8] sm:$0x3]
    %v2024 = vld [vmem:[#allocation14] sm:$0x1]
    %v2026 = vlaneseq
    %v2027 = vshrl.u32 %v2026, 7
    %v2028 = vsub.s32 0, %v2027
    %v2029 = vrot.slane %v2024, %v2028
    %vm2031 = vcmask 80896
    %v2033 = vsel %vm2031, %v2014, 0
    %v2036 = vsel %vm2031, %v2015, 0
    %v2039 = vsel %vm2031, %v2016, 0
    %v2042 = vsel %vm2031, %v2017, 0
    %v2045 = vsel %vm2031, %v2018, 0
    %v2048 = vsel %vm2031, %v2019, 0
    %v2051 = vsel %vm2031, %v2020, 0
    %v2054 = vsel %vm2031, %v2021, 0
    %vm2056 = vcmask 1041408
    %v2058 = vsel %vm2056, %v2023, 0
    %2060 = vmatprep.subr.mxu0 0.0
    %2061 = vmatpush1.msra.mxu0 0.0
    %2062 = vmatprep.subr.mxu0 0.0
    %2063 = vmatpush1.msra.mxu0 0.0
    %2064 = vmatprep.subr.mxu0 0.0
    %2065 = vmatpush1.msra.mxu0 0.0
    %2066 = vmatprep.subr.mxu0 0.0
    %2067 = vmatpush1.msra.mxu0 0.0
    %2068 = vmatprep.subr.mxu0 0.0
    %2069 = vmatpush1.msra.mxu0 0.0
    %2070 = vmatprep.subr.mxu0 0.0
    %2071 = vmatpush1.msra.mxu0 0.0
    %2072 = vmatprep.subr.mxu0 0.0
    %2073 = vmatpush1.msra.mxu0 0.0
    %2074 = vmatprep.subr.mxu0 0.0
    %2075 = vmatpush1.msra.mxu0 0.0
    %2076 = vmatprep.subr.mxu0 0.0
    %2077 = vmatpush1.msra.mxu0 0.0
    %2078 = vmatprep.subr.mxu0 0.0
    %2079 = vmatpush1.msra.mxu0 0.0
    %2080 = vmatprep.subr.mxu0 0.0
    %2081 = vmatpush1.msra.mxu0 0.0
    %2082 = vmatprep.subr.mxu0 0.0
    %2083 = vmatpush1.msra.mxu0 0.0
    %2084 = vmatprep.subr.mxu0 0.0
    %2085 = vmatpush1.msra.mxu0 0.0
    %2086 = vmatprep.subr.mxu0 0.0
    %2087 = vmatpush1.msra.mxu0 0.0
    %2088 = vmatprep.subr.mxu0 0.0
    %2089 = vmatpush1.msra.mxu0 %v2058
    %2090 = vmatprep.subr.mxu0 0.0
    %2091 = vmatpush1.msra.mxu0 %v2022
    %2092 = vmatprep.subr.mxu0 0.0
    %2093 = vmatpush2.msra.mxu0 0.0
    %2094 = vmatprep.subr.mxu0 0.0
    %2095 = vmatpush2.msra.mxu0 0.0
    %2096 = vmatprep.subr.mxu0 0.0
    %2097 = vmatpush2.msra.mxu0 0.0
    %2098 = vmatprep.subr.mxu0 0.0
    %2099 = vmatpush2.msra.mxu0 0.0
    %2100 = vmatprep.subr.mxu0 0.0
    %2101 = vmatpush2.msra.mxu0 0.0
    %2102 = vmatprep.subr.mxu0 0.0
    %2103 = vmatpush2.msra.mxu0 0.0
    %2104 = vmatprep.subr.mxu0 0.0
    %2105 = vmatpush2.msra.mxu0 0.0
    %2106 = vmatprep.subr.mxu0 0.0
    %2107 = vmatpush2.msra.mxu0 0.0
    %2108 = vmatprep.subr.mxu0 0.0
    %2109 = vmatpush2.msra.mxu0 0.0
    %2110 = vmatprep.subr.mxu0 0.0
    %2111 = vmatpush2.msra.mxu0 0.0
    %2112 = vmatprep.subr.mxu0 0.0
    %2113 = vmatpush2.msra.mxu0 0.0
    %2114 = vmatprep.subr.mxu0 0.0
    %2115 = vmatpush2.msra.mxu0 0.0
    %2116 = vmatprep.subr.mxu0 0.0
    %2117 = vmatpush2.msra.mxu0 0.0
    %2118 = vmatprep.subr.mxu0 0.0
    %2119 = vmatpush2.msra.mxu0 0.0
    %2120 = vmatprep.subr.mxu0 0.0
    %2121 = vmatpush2.msra.mxu0 0.0
    %2122 = vmatprep.subr.mxu0 0.0
    %2123 = vmatpush2.msra.mxu0 0.0
    %2124 = vmatprep.mubr.f32.mxu0 0.0
    %2125 = vmatmul.mubr.f32.gmra.mxu0 %v2033
    %v2126 = vpop.f32.mrf.mxu0
    %v2127 = vadd.f32 %v2029, %v2126
    %v2128 = vpop.f32.mrf.mxu0
    %2129 = vmatprep.mubr.f32.mxu0 0.0
    %2130 = vmatmul.mubr.f32.gmra.mxu0 %v2036
    %v2131 = vpop.f32.mrf.mxu0
    %v2132 = vadd.f32 %v2029, %v2131
    %v2133 = vpop.f32.mrf.mxu0
    %2134 = vmatprep.mubr.f32.mxu0 0.0
    %2135 = vmatmul.mubr.f32.gmra.mxu0 %v2039
    %v2136 = vpop.f32.mrf.mxu0
    %v2137 = vadd.f32 %v2029, %v2136
    %v2138 = vpop.f32.mrf.mxu0
    %2139 = vmatprep.mubr.f32.mxu0 0.0
    %2140 = vmatmul.mubr.f32.gmra.mxu0 %v2042
    %v2141 = vpop.f32.mrf.mxu0
    %v2142 = vadd.f32 %v2029, %v2141
    %v2143 = vpop.f32.mrf.mxu0
    %2144 = vmatprep.mubr.f32.mxu0 0.0
    %2145 = vmatmul.mubr.f32.gmra.mxu0 %v2045
    %v2146 = vpop.f32.mrf.mxu0
    %v2147 = vadd.f32 %v2029, %v2146
    %v2148 = vpop.f32.mrf.mxu0
    %2149 = vmatprep.mubr.f32.mxu0 0.0
    %2150 = vmatmul.mubr.f32.gmra.mxu0 %v2048
    %v2151 = vpop.f32.mrf.mxu0
    %v2152 = vadd.f32 %v2029, %v2151
    %v2153 = vpop.f32.mrf.mxu0
    %2154 = vmatprep.mubr.f32.mxu0 0.0
    %2155 = vmatmul.mubr.f32.gmra.mxu0 %v2051
    %v2156 = vpop.f32.mrf.mxu0
    %v2157 = vadd.f32 %v2029, %v2156
    %v2158 = vpop.f32.mrf.mxu0
    %2159 = vmatprep.mubr.f32.mxu0 0.0
    %2160 = vmatmul.mubr.f32.gmra.mxu0 %v2054
    %v2161 = vpop.f32.mrf.mxu0
    %v2162 = vadd.f32 %v2029, %v2161
    %v2163 = vpop.f32.mrf.mxu0
    %2164 = vdwg.mxu0
    %v2165 = vmax.f32 %v2127, 0.0
    %v2166 = vmax.f32 %v2132, 0.0
    %v2167 = vmax.f32 %v2137, 0.0
    %v2168 = vmax.f32 %v2142, 0.0
    %v2169 = vmax.f32 %v2147, 0.0
    %v2170 = vmax.f32 %v2152, 0.0
    %v2171 = vmax.f32 %v2157, 0.0
    %v2172 = vmax.f32 %v2162, 0.0
    %v2173 = vsub.f32 0.0, %v2165
    %v2174 = vsub.f32 0.0, %v2166
    %v2175 = vsub.f32 0.0, %v2167
    %v2176 = vsub.f32 0.0, %v2168
    %v2177 = vsub.f32 0.0, %v2169
    %v2178 = vsub.f32 0.0, %v2170
    %v2179 = vsub.f32 0.0, %v2171
    %v2180 = vsub.f32 0.0, %v2172
    %v2181 = vmul.f32 %v2173, 1.442695
    %v2182 = vpow.pop %v2181
    %v2183 = vmul.f32 %v2174, 1.442695
    %v2184 = vpow.pop %v2183
    %v2185 = vmul.f32 %v2175, 1.442695
    %v2186 = vpow.pop %v2185
    %v2187 = vmul.f32 %v2176, 1.442695
    %v2188 = vpow.pop %v2187
    %v2189 = vmul.f32 %v2177, 1.442695
    %v2190 = vpow.pop %v2189
    %v2191 = vmul.f32 %v2178, 1.442695
    %v2192 = vpow.pop %v2191
    %v2193 = vmul.f32 %v2179, 1.442695
    %v2194 = vpow.pop %v2193
    %v2195 = vmul.f32 %v2180, 1.442695
    %v2196 = vpow.pop %v2195
    %2197 = vst [vmem:[#allocation23] sm:$0xff] %v2182
    %2198 = vst [vmem:[#allocation23 + $0x8] sm:$0xff] %v2184
    %2199 = vst [vmem:[#allocation23 + $0x10] sm:$0xff] %v2186
    %2200 = vst [vmem:[#allocation23 + $0x18] sm:$0xff] %v2188
    %2201 = vst [vmem:[#allocation23 + $0x20] sm:$0xff] %v2190
    %2202 = vst [vmem:[#allocation23 + $0x28] sm:$0xff] %v2192
    %2203 = vst [vmem:[#allocation23 + $0x30] sm:$0xff] %v2194
    %2204 = vst [vmem:[#allocation23 + $0x38] sm:$0xff] %v2196
    %v2205 = vld [vmem:[%s1] sm:$0xff]
    %v2206 = vld [vmem:[%s1 + $0x8] sm:$0xff]
    %v2207 = vld [vmem:[%s1 + $0x10] sm:$0xff]
    %v2208 = vld [vmem:[%s1 + $0x18] sm:$0xff]
    %v2209 = vld [vmem:[%s1 + $0x20] sm:$0xff]
    %v2210 = vld [vmem:[%s1 + $0x28] sm:$0xff]
    %v2211 = vld [vmem:[%s1 + $0x30] sm:$0xff]
    %v2212 = vld [vmem:[%s1 + $0x38] sm:$0xff]
    %v2213 = vld [vmem:[#allocation16] sm:$0xff]
    %v2214 = vld [vmem:[#allocation16 + $0x8] sm:$0xff]
    %v2215 = vld [vmem:[#allocation16 + $0x10] sm:$0xff]
    %v2216 = vld [vmem:[#allocation16 + $0x18] sm:$0x3]
    %v2217 = vld [vmem:[#allocation16 + $0x20] sm:$0x3]
    %v2218 = vld [vmem:[#allocation16 + $0x28] sm:$0x3]
    %v2219 = vld [vmem:[%s2] sm:$0xff]
    %v2220 = vld [vmem:[%s2 + $0x8] sm:$0xff]
    %v2221 = vld [vmem:[%s2 + $0x10] sm:$0xff]
    %v2222 = vld [vmem:[%s2 + $0x18] sm:$0xff]
    %v2223 = vld [vmem:[%s2 + $0x20] sm:$0xff]
    %v2224 = vld [vmem:[%s2 + $0x28] sm:$0xff]
    %v2225 = vld [vmem:[%s2 + $0x30] sm:$0xff]
    %v2226 = vld [vmem:[%s2 + $0x38] sm:$0xff]
    %v2227 = vld [vmem:[#allocation17] sm:$0xff]
    %v2228 = vld [vmem:[#allocation17 + $0x8] sm:$0xff]
    %v2229 = vld [vmem:[#allocation17 + $0x10] sm:$0xff]
    %v2230 = vld [vmem:[#allocation17 + $0x18] sm:$0x3]
    %v2231 = vld [vmem:[#allocation17 + $0x20] sm:$0x3]
    %v2232 = vld [vmem:[#allocation17 + $0x28] sm:$0x3]
    %v2234 = vsel %vm2031, %v2219, 0
    %v2237 = vsel %vm2031, %v2220, 0
    %v2240 = vsel %vm2031, %v2221, 0
    %v2243 = vsel %vm2031, %v2222, 0
    %v2246 = vsel %vm2031, %v2223, 0
    %v2249 = vsel %vm2031, %v2224, 0
    %v2252 = vsel %vm2031, %v2225, 0
    %v2255 = vsel %vm2031, %v2226, 0
    %v2258 = vsel %vm2056, %v2230, 0
    %v2261 = vsel %vm2056, %v2231, 0
    %v2264 = vsel %vm2056, %v2232, 0
    %2266 = vmatprep.subr.mxu0 0.0
    %2267 = vmatpush1.msra.mxu0 0.0
    %2268 = vmatprep.subr.mxu0 0.0
    %2269 = vmatpush1.msra.mxu0 0.0
    %2270 = vmatprep.subr.mxu0 0.0
    %2271 = vmatpush1.msra.mxu0 0.0
    %2272 = vmatprep.subr.mxu0 0.0
    %2273 = vmatpush1.msra.mxu0 0.0
    %2274 = vmatprep.subr.mxu0 0.0
    %2275 = vmatpush1.msra.mxu0 0.0
    %2276 = vmatprep.subr.mxu0 0.0
    %2277 = vmatpush1.msra.mxu0 0.0
    %2278 = vmatprep.subr.mxu0 0.0
    %2279 = vmatpush1.msra.mxu0 0.0
    %2280 = vmatprep.subr.mxu0 0.0
    %2281 = vmatpush1.msra.mxu0 0.0
    %2282 = vmatprep.subr.mxu0 0.0
    %2283 = vmatpush1.msra.mxu0 0.0
    %2284 = vmatprep.subr.mxu0 0.0
    %2285 = vmatpush1.msra.mxu0 0.0
    %2286 = vmatprep.subr.mxu0 0.0
    %2287 = vmatpush1.msra.mxu0 0.0
    %2288 = vmatprep.subr.mxu0 0.0
    %2289 = vmatpush1.msra.mxu0 0.0
    %2290 = vmatprep.subr.mxu0 0.0
    %2291 = vmatpush1.msra.mxu0 0.0
    %2292 = vmatprep.subr.mxu0 0.0
    %2293 = vmatpush1.msra.mxu0 0.0
    %2294 = vmatprep.subr.mxu0 %v2261
    %2295 = vmatpush1.msra.mxu0 %v2258
    %2296 = vmatprep.subr.mxu0 %v2228
    %2297 = vmatpush1.msra.mxu0 %v2227
    %2298 = vmatprep.subr.mxu0 0.0
    %2299 = vmatpush2.msra.mxu0 0.0
    %2300 = vmatprep.subr.mxu0 0.0
    %2301 = vmatpush2.msra.mxu0 0.0
    %2302 = vmatprep.subr.mxu0 0.0
    %2303 = vmatpush2.msra.mxu0 0.0
    %2304 = vmatprep.subr.mxu0 0.0
    %2305 = vmatpush2.msra.mxu0 0.0
    %2306 = vmatprep.subr.mxu0 0.0
    %2307 = vmatpush2.msra.mxu0 0.0
    %2308 = vmatprep.subr.mxu0 0.0
    %2309 = vmatpush2.msra.mxu0 0.0
    %2310 = vmatprep.subr.mxu0 0.0
    %2311 = vmatpush2.msra.mxu0 0.0
    %2312 = vmatprep.subr.mxu0 0.0
    %2313 = vmatpush2.msra.mxu0 0.0
    %2314 = vmatprep.subr.mxu0 0.0
    %2315 = vmatpush2.msra.mxu0 0.0
    %2316 = vmatprep.subr.mxu0 0.0
    %2317 = vmatpush2.msra.mxu0 0.0
    %2318 = vmatprep.subr.mxu0 0.0
    %2319 = vmatpush2.msra.mxu0 0.0
    %2320 = vmatprep.subr.mxu0 0.0
    %2321 = vmatpush2.msra.mxu0 0.0
    %2322 = vmatprep.subr.mxu0 0.0
    %2323 = vmatpush2.msra.mxu0 0.0
    %2324 = vmatprep.subr.mxu0 0.0
    %2325 = vmatpush2.msra.mxu0 0.0
    %2326 = vmatprep.subr.mxu0 0.0
    %2327 = vmatpush2.msra.mxu0 0.0
    %2328 = vmatprep.subr.mxu0 0.0
    %2329 = vmatpush2.msra.mxu0 0.0
    %2330 = vmatprep.mubr.f32.mxu0 0.0
    %2331 = vmatmul.mubr.f32.gmra.mxu0 %v2234
    %v2332 = vpop.f32.mrf.mxu0
    %v2333 = vadd.f32 0.0, %v2332
    %v2334 = vpop.f32.mrf.mxu0
    %v2335 = vadd.f32 0.0, %v2334
    %2336 = vmatprep.mubr.f32.mxu0 0.0
    %2337 = vmatmul.mubr.f32.gmra.mxu0 %v2237
    %v2338 = vpop.f32.mrf.mxu0
    %v2339 = vadd.f32 0.0, %v2338
    %v2340 = vpop.f32.mrf.mxu0
    %v2341 = vadd.f32 0.0, %v2340
    %2342 = vmatprep.mubr.f32.mxu0 0.0
    %2343 = vmatmul.mubr.f32.gmra.mxu0 %v2240
    %v2344 = vpop.f32.mrf.mxu0
    %v2345 = vadd.f32 0.0, %v2344
    %v2346 = vpop.f32.mrf.mxu0
    %v2347 = vadd.f32 0.0, %v2346
    %2348 = vmatprep.mubr.f32.mxu0 0.0
    %2349 = vmatmul.mubr.f32.gmra.mxu0 %v2243
    %v2350 = vpop.f32.mrf.mxu0
    %v2351 = vadd.f32 0.0, %v2350
    %v2352 = vpop.f32.mrf.mxu0
    %v2353 = vadd.f32 0.0, %v2352
    %2354 = vmatprep.mubr.f32.mxu0 0.0
    %2355 = vmatmul.mubr.f32.gmra.mxu0 %v2246
    %v2356 = vpop.f32.mrf.mxu0
    %v2357 = vadd.f32 0.0, %v2356
    %v2358 = vpop.f32.mrf.mxu0
    %v2359 = vadd.f32 0.0, %v2358
    %2360 = vmatprep.mubr.f32.mxu0 0.0
    %2361 = vmatmul.mubr.f32.gmra.mxu0 %v2249
    %v2362 = vpop.f32.mrf.mxu0
    %v2363 = vadd.f32 0.0, %v2362
    %v2364 = vpop.f32.mrf.mxu0
    %v2365 = vadd.f32 0.0, %v2364
    %2366 = vmatprep.mubr.f32.mxu0 0.0
    %2367 = vmatmul.mubr.f32.gmra.mxu0 %v2252
    %v2368 = vpop.f32.mrf.mxu0
    %v2369 = vadd.f32 0.0, %v2368
    %v2370 = vpop.f32.mrf.mxu0
    %v2371 = vadd.f32 0.0, %v2370
    %2372 = vmatprep.mubr.f32.mxu0 0.0
    %2373 = vmatmul.mubr.f32.gmra.mxu0 %v2255
    %v2374 = vpop.f32.mrf.mxu0
    %v2375 = vadd.f32 0.0, %v2374
    %v2376 = vpop.f32.mrf.mxu0
    %v2377 = vadd.f32 0.0, %v2376
    %2378 = vdwg.mxu0
    %2379 = vmatprep.subr.mxu0 0.0
    %2380 = vmatpush1.msra.mxu0 0.0
    %2381 = vmatprep.subr.mxu0 0.0
    %2382 = vmatpush1.msra.mxu0 0.0
    %2383 = vmatprep.subr.mxu0 0.0
    %2384 = vmatpush1.msra.mxu0 0.0
    %2385 = vmatprep.subr.mxu0 0.0
    %2386 = vmatpush1.msra.mxu0 0.0
    %2387 = vmatprep.subr.mxu0 0.0
    %2388 = vmatpush1.msra.mxu0 0.0
    %2389 = vmatprep.subr.mxu0 0.0
    %2390 = vmatpush1.msra.mxu0 0.0
    %2391 = vmatprep.subr.mxu0 0.0
    %2392 = vmatpush1.msra.mxu0 0.0
    %2393 = vmatprep.subr.mxu0 0.0
    %2394 = vmatpush1.msra.mxu0 0.0
    %2395 = vmatprep.subr.mxu0 0.0
    %2396 = vmatpush1.msra.mxu0 0.0
    %2397 = vmatprep.subr.mxu0 0.0
    %2398 = vmatpush1.msra.mxu0 0.0
    %2399 = vmatprep.subr.mxu0 0.0
    %2400 = vmatpush1.msra.mxu0 0.0
    %2401 = vmatprep.subr.mxu0 0.0
    %2402 = vmatpush1.msra.mxu0 0.0
    %2403 = vmatprep.subr.mxu0 0.0
    %2404 = vmatpush1.msra.mxu0 0.0
    %2405 = vmatprep.subr.mxu0 0.0
    %2406 = vmatpush1.msra.mxu0 0.0
    %2407 = vmatprep.subr.mxu0 0.0
    %2408 = vmatpush1.msra.mxu0 %v2264
    %2409 = vmatprep.subr.mxu0 0.0
    %2410 = vmatpush1.msra.mxu0 %v2229
    %2411 = vmatprep.subr.mxu0 0.0
    %2412 = vmatpush2.msra.mxu0 0.0
    %2413 = vmatprep.subr.mxu0 0.0
    %2414 = vmatpush2.msra.mxu0 0.0
    %2415 = vmatprep.subr.mxu0 0.0
    %2416 = vmatpush2.msra.mxu0 0.0
    %2417 = vmatprep.subr.mxu0 0.0
    %2418 = vmatpush2.msra.mxu0 0.0
    %2419 = vmatprep.subr.mxu0 0.0
    %2420 = vmatpush2.msra.mxu0 0.0
    %2421 = vmatprep.subr.mxu0 0.0
    %2422 = vmatpush2.msra.mxu0 0.0
    %2423 = vmatprep.subr.mxu0 0.0
    %2424 = vmatpush2.msra.mxu0 0.0
    %2425 = vmatprep.subr.mxu0 0.0
    %2426 = vmatpush2.msra.mxu0 0.0
    %2427 = vmatprep.subr.mxu0 0.0
    %2428 = vmatpush2.msra.mxu0 0.0
    %2429 = vmatprep.subr.mxu0 0.0
    %2430 = vmatpush2.msra.mxu0 0.0
    %2431 = vmatprep.subr.mxu0 0.0
    %2432 = vmatpush2.msra.mxu0 0.0
    %2433 = vmatprep.subr.mxu0 0.0
    %2434 = vmatpush2.msra.mxu0 0.0
    %2435 = vmatprep.subr.mxu0 0.0
    %2436 = vmatpush2.msra.mxu0 0.0
    %2437 = vmatprep.subr.mxu0 0.0
    %2438 = vmatpush2.msra.mxu0 0.0
    %2439 = vmatprep.subr.mxu0 0.0
    %2440 = vmatpush2.msra.mxu0 0.0
    %2441 = vmatprep.subr.mxu0 0.0
    %2442 = vmatpush2.msra.mxu0 0.0
    %2443 = vmatprep.mubr.f32.mxu0 0.0
    %2444 = vmatmul.mubr.f32.gmra.mxu0 %v2234
    %v2445 = vpop.f32.mrf.mxu0
    %v2446 = vadd.f32 0.0, %v2445
    %v2447 = vpop.f32.mrf.mxu0
    %2448 = vmatprep.mubr.f32.mxu0 0.0
    %2449 = vmatmul.mubr.f32.gmra.mxu0 %v2237
    %v2450 = vpop.f32.mrf.mxu0
    %v2451 = vadd.f32 0.0, %v2450
    %v2452 = vpop.f32.mrf.mxu0
    %2453 = vmatprep.mubr.f32.mxu0 0.0
    %2454 = vmatmul.mubr.f32.gmra.mxu0 %v2240
    %v2455 = vpop.f32.mrf.mxu0
    %v2456 = vadd.f32 0.0, %v2455
    %v2457 = vpop.f32.mrf.mxu0
    %2458 = vmatprep.mubr.f32.mxu0 0.0
    %2459 = vmatmul.mubr.f32.gmra.mxu0 %v2243
    %v2460 = vpop.f32.mrf.mxu0
    %v2461 = vadd.f32 0.0, %v2460
    %v2462 = vpop.f32.mrf.mxu0
    %2463 = vmatprep.mubr.f32.mxu0 0.0
    %2464 = vmatmul.mubr.f32.gmra.mxu0 %v2246
    %v2465 = vpop.f32.mrf.mxu0
    %v2466 = vadd.f32 0.0, %v2465
    %v2467 = vpop.f32.mrf.mxu0
    %2468 = vmatprep.mubr.f32.mxu0 0.0
    %2469 = vmatmul.mubr.f32.gmra.mxu0 %v2249
    %v2470 = vpop.f32.mrf.mxu0
    %v2471 = vadd.f32 0.0, %v2470
    %v2472 = vpop.f32.mrf.mxu0
    %2473 = vmatprep.mubr.f32.mxu0 0.0
    %2474 = vmatmul.mubr.f32.gmra.mxu0 %v2252
    %v2475 = vpop.f32.mrf.mxu0
    %v2476 = vadd.f32 0.0, %v2475
    %v2477 = vpop.f32.mrf.mxu0
    %2478 = vmatprep.mubr.f32.mxu0 0.0
    %2479 = vmatmul.mubr.f32.gmra.mxu0 %v2255
    %v2480 = vpop.f32.mrf.mxu0
    %v2481 = vadd.f32 0.0, %v2480
    %v2482 = vpop.f32.mrf.mxu0
    %2483 = vdwg.mxu0
    %v2485 = vsel %vm2031, %v2205, 0
    %v2488 = vsel %vm2031, %v2206, 0
    %v2491 = vsel %vm2031, %v2207, 0
    %v2494 = vsel %vm2031, %v2208, 0
    %v2497 = vsel %vm2031, %v2209, 0
    %v2500 = vsel %vm2031, %v2210, 0
    %v2503 = vsel %vm2031, %v2211, 0
    %v2506 = vsel %vm2031, %v2212, 0
    %v2509 = vsel %vm2056, %v2216, 0
    %v2512 = vsel %vm2056, %v2217, 0
    %v2515 = vsel %vm2056, %v2218, 0
    %2517 = vmatprep.subr.mxu0 0.0
    %2518 = vmatpush1.msra.mxu0 0.0
    %2519 = vmatprep.subr.mxu0 0.0
    %2520 = vmatpush1.msra.mxu0 0.0
    %2521 = vmatprep.subr.mxu0 0.0
    %2522 = vmatpush1.msra.mxu0 0.0
    %2523 = vmatprep.subr.mxu0 0.0
    %2524 = vmatpush1.msra.mxu0 0.0
    %2525 = vmatprep.subr.mxu0 0.0
    %2526 = vmatpush1.msra.mxu0 0.0
    %2527 = vmatprep.subr.mxu0 0.0
    %2528 = vmatpush1.msra.mxu0 0.0
    %2529 = vmatprep.subr.mxu0 0.0
    %2530 = vmatpush1.msra.mxu0 0.0
    %2531 = vmatprep.subr.mxu0 0.0
    %2532 = vmatpush1.msra.mxu0 0.0
    %2533 = vmatprep.subr.mxu0 0.0
    %2534 = vmatpush1.msra.mxu0 0.0
    %2535 = vmatprep.subr.mxu0 0.0
    %2536 = vmatpush1.msra.mxu0 0.0
    %2537 = vmatprep.subr.mxu0 0.0
    %2538 = vmatpush1.msra.mxu0 0.0
    %2539 = vmatprep.subr.mxu0 0.0
    %2540 = vmatpush1.msra.mxu0 0.0
    %2541 = vmatprep.subr.mxu0 0.0
    %2542 = vmatpush1.msra.mxu0 0.0
    %2543 = vmatprep.subr.mxu0 0.0
    %2544 = vmatpush1.msra.mxu0 0.0
    %2545 = vmatprep.subr.mxu0 %v2512
    %2546 = vmatpush1.msra.mxu0 %v2509
    %2547 = vmatprep.subr.mxu0 %v2214
    %2548 = vmatpush1.msra.mxu0 %v2213
    %2549 = vmatprep.subr.mxu0 0.0
    %2550 = vmatpush2.msra.mxu0 0.0
    %2551 = vmatprep.subr.mxu0 0.0
    %2552 = vmatpush2.msra.mxu0 0.0
    %2553 = vmatprep.subr.mxu0 0.0
    %2554 = vmatpush2.msra.mxu0 0.0
    %2555 = vmatprep.subr.mxu0 0.0
    %2556 = vmatpush2.msra.mxu0 0.0
    %2557 = vmatprep.subr.mxu0 0.0
    %2558 = vmatpush2.msra.mxu0 0.0
    %2559 = vmatprep.subr.mxu0 0.0
    %2560 = vmatpush2.msra.mxu0 0.0
    %2561 = vmatprep.subr.mxu0 0.0
    %2562 = vmatpush2.msra.mxu0 0.0
    %2563 = vmatprep.subr.mxu0 0.0
    %2564 = vmatpush2.msra.mxu0 0.0
    %2565 = vmatprep.subr.mxu0 0.0
    %2566 = vmatpush2.msra.mxu0 0.0
    %2567 = vmatprep.subr.mxu0 0.0
    %2568 = vmatpush2.msra.mxu0 0.0
    %2569 = vmatprep.subr.mxu0 0.0
    %2570 = vmatpush2.msra.mxu0 0.0
    %2571 = vmatprep.subr.mxu0 0.0
    %2572 = vmatpush2.msra.mxu0 0.0
    %2573 = vmatprep.subr.mxu0 0.0
    %2574 = vmatpush2.msra.mxu0 0.0
    %2575 = vmatprep.subr.mxu0 0.0
    %2576 = vmatpush2.msra.mxu0 0.0
    %2577 = vmatprep.subr.mxu0 0.0
    %2578 = vmatpush2.msra.mxu0 0.0
    %2579 = vmatprep.subr.mxu0 0.0
    %2580 = vmatpush2.msra.mxu0 0.0
    %2581 = vmatprep.mubr.f32.mxu0 0.0
    %2582 = vmatmul.mubr.f32.gmra.mxu0 %v2485
    %v2583 = vpop.f32.mrf.mxu0
    %v2584 = vadd.f32 %v2333, %v2583
    %v2585 = vpop.f32.mrf.mxu0
    %v2586 = vadd.f32 %v2335, %v2585
    %2587 = vmatprep.mubr.f32.mxu0 0.0
    %2588 = vmatmul.mubr.f32.gmra.mxu0 %v2488
    %v2589 = vpop.f32.mrf.mxu0
    %v2590 = vadd.f32 %v2339, %v2589
    %v2591 = vpop.f32.mrf.mxu0
    %v2592 = vadd.f32 %v2341, %v2591
    %2593 = vmatprep.mubr.f32.mxu0 0.0
    %2594 = vmatmul.mubr.f32.gmra.mxu0 %v2491
    %v2595 = vpop.f32.mrf.mxu0
    %v2596 = vadd.f32 %v2345, %v2595
    %v2597 = vpop.f32.mrf.mxu0
    %v2598 = vadd.f32 %v2347, %v2597
    %2599 = vmatprep.mubr.f32.mxu0 0.0
    %2600 = vmatmul.mubr.f32.gmra.mxu0 %v2494
    %v2601 = vpop.f32.mrf.mxu0
    %v2602 = vadd.f32 %v2351, %v2601
    %v2603 = vpop.f32.mrf.mxu0
    %v2604 = vadd.f32 %v2353, %v2603
    %2605 = vmatprep.mubr.f32.mxu0 0.0
    %2606 = vmatmul.mubr.f32.gmra.mxu0 %v2497
    %v2607 = vpop.f32.mrf.mxu0
    %v2608 = vadd.f32 %v2357, %v2607
    %v2609 = vpop.f32.mrf.mxu0
    %v2610 = vadd.f32 %v2359, %v2609
    %2611 = vmatprep.mubr.f32.mxu0 0.0
    %2612 = vmatmul.mubr.f32.gmra.mxu0 %v2500
    %v2613 = vpop.f32.mrf.mxu0
    %v2614 = vadd.f32 %v2363, %v2613
    %v2615 = vpop.f32.mrf.mxu0
    %v2616 = vadd.f32 %v2365, %v2615
    %2617 = vmatprep.mubr.f32.mxu0 0.0
    %2618 = vmatmul.mubr.f32.gmra.mxu0 %v2503
    %v2619 = vpop.f32.mrf.mxu0
    %v2620 = vadd.f32 %v2369, %v2619
    %v2621 = vpop.f32.mrf.mxu0
    %v2622 = vadd.f32 %v2371, %v2621
    %2623 = vmatprep.mubr.f32.mxu0 0.0
    %2624 = vmatmul.mubr.f32.gmra.mxu0 %v2506
    %v2625 = vpop.f32.mrf.mxu0
    %v2626 = vadd.f32 %v2375, %v2625
    %v2627 = vpop.f32.mrf.mxu0
    %v2628 = vadd.f32 %v2377, %v2627
    %2629 = vdwg.mxu0
    %2630 = vmatprep.subr.mxu0 0.0
    %2631 = vmatpush1.msra.mxu0 0.0
    %2632 = vmatprep.subr.mxu0 0.0
    %2633 = vmatpush1.msra.mxu0 0.0
    %2634 = vmatprep.subr.mxu0 0.0
    %2635 = vmatpush1.msra.mxu0 0.0
    %2636 = vmatprep.subr.mxu0 0.0
    %2637 = vmatpush1.msra.mxu0 0.0
    %2638 = vmatprep.subr.mxu0 0.0
    %2639 = vmatpush1.msra.mxu0 0.0
    %2640 = vmatprep.subr.mxu0 0.0
    %2641 = vmatpush1.msra.mxu0 0.0
    %2642 = vmatprep.subr.mxu0 0.0
    %2643 = vmatpush1.msra.mxu0 0.0
    %2644 = vmatprep.subr.mxu0 0.0
    %2645 = vmatpush1.msra.mxu0 0.0
    %2646 = vmatprep.subr.mxu0 0.0
    %2647 = vmatpush1.msra.mxu0 0.0
    %2648 = vmatprep.subr.mxu0 0.0
    %2649 = vmatpush1.msra.mxu0 0.0
    %2650 = vmatprep.subr.mxu0 0.0
    %2651 = vmatpush1.msra.mxu0 0.0
    %2652 = vmatprep.subr.mxu0 0.0
    %2653 = vmatpush1.msra.mxu0 0.0
    %2654 = vmatprep.subr.mxu0 0.0
    %2655 = vmatpush1.msra.mxu0 0.0
    %2656 = vmatprep.subr.mxu0 0.0
    %2657 = vmatpush1.msra.mxu0 0.0
    %2658 = vmatprep.subr.mxu0 0.0
    %2659 = vmatpush1.msra.mxu0 %v2515
    %2660 = vmatprep.subr.mxu0 0.0
    %2661 = vmatpush1.msra.mxu0 %v2215
    %2662 = vmatprep.subr.mxu0 0.0
    %2663 = vmatpush2.msra.mxu0 0.0
    %2664 = vmatprep.subr.mxu0 0.0
    %2665 = vmatpush2.msra.mxu0 0.0
    %2666 = vmatprep.subr.mxu0 0.0
    %2667 = vmatpush2.msra.mxu0 0.0
    %2668 = vmatprep.subr.mxu0 0.0
    %2669 = vmatpush2.msra.mxu0 0.0
    %2670 = vmatprep.subr.mxu0 0.0
    %2671 = vmatpush2.msra.mxu0 0.0
    %2672 = vmatprep.subr.mxu0 0.0
    %2673 = vmatpush2.msra.mxu0 0.0
    %2674 = vmatprep.subr.mxu0 0.0
    %2675 = vmatpush2.msra.mxu0 0.0
    %2676 = vmatprep.subr.mxu0 0.0
    %2677 = vmatpush2.msra.mxu0 0.0
    %2678 = vmatprep.subr.mxu0 0.0
    %2679 = vmatpush2.msra.mxu0 0.0
    %2680 = vmatprep.subr.mxu0 0.0
    %2681 = vmatpush2.msra.mxu0 0.0
    %2682 = vmatprep.subr.mxu0 0.0
    %2683 = vmatpush2.msra.mxu0 0.0
    %2684 = vmatprep.subr.mxu0 0.0
    %2685 = vmatpush2.msra.mxu0 0.0
    %2686 = vmatprep.subr.mxu0 0.0
    %2687 = vmatpush2.msra.mxu0 0.0
    %2688 = vmatprep.subr.mxu0 0.0
    %2689 = vmatpush2.msra.mxu0 0.0
    %2690 = vmatprep.subr.mxu0 0.0
    %2691 = vmatpush2.msra.mxu0 0.0
    %2692 = vmatprep.subr.mxu0 0.0
    %2693 = vmatpush2.msra.mxu0 0.0
    %2694 = vmatprep.mubr.f32.mxu0 0.0
    %2695 = vmatmul.mubr.f32.gmra.mxu0 %v2485
    %v2696 = vpop.f32.mrf.mxu0
    %v2697 = vadd.f32 %v2446, %v2696
    %v2698 = vpop.f32.mrf.mxu0
    %2699 = vmatprep.mubr.f32.mxu0 0.0
    %2700 = vmatmul.mubr.f32.gmra.mxu0 %v2488
    %v2701 = vpop.f32.mrf.mxu0
    %v2702 = vadd.f32 %v2451, %v2701
    %v2703 = vpop.f32.mrf.mxu0
    %2704 = vmatprep.mubr.f32.mxu0 0.0
    %2705 = vmatmul.mubr.f32.gmra.mxu0 %v2491
    %v2706 = vpop.f32.mrf.mxu0
    %v2707 = vadd.f32 %v2456, %v2706
    %v2708 = vpop.f32.mrf.mxu0
    %2709 = vmatprep.mubr.f32.mxu0 0.0
    %2710 = vmatmul.mubr.f32.gmra.mxu0 %v2494
    %v2711 = vpop.f32.mrf.mxu0
    %v2712 = vadd.f32 %v2461, %v2711
    %v2713 = vpop.f32.mrf.mxu0
    %2714 = vmatprep.mubr.f32.mxu0 0.0
    %2715 = vmatmul.mubr.f32.gmra.mxu0 %v2497
    %v2716 = vpop.f32.mrf.mxu0
    %v2717 = vadd.f32 %v2466, %v2716
    %v2718 = vpop.f32.mrf.mxu0
    %2719 = vmatprep.mubr.f32.mxu0 0.0
    %2720 = vmatmul.mubr.f32.gmra.mxu0 %v2500
    %v2721 = vpop.f32.mrf.mxu0
    %v2722 = vadd.f32 %v2471, %v2721
    %v2723 = vpop.f32.mrf.mxu0
    %2724 = vmatprep.mubr.f32.mxu0 0.0
    %2725 = vmatmul.mubr.f32.gmra.mxu0 %v2503
    %v2726 = vpop.f32.mrf.mxu0
    %v2727 = vadd.f32 %v2476, %v2726
    %v2728 = vpop.f32.mrf.mxu0
    %2729 = vmatprep.mubr.f32.mxu0 0.0
    %2730 = vmatmul.mubr.f32.gmra.mxu0 %v2506
    %v2731 = vpop.f32.mrf.mxu0
    %v2732 = vadd.f32 %v2481, %v2731
    %v2733 = vpop.f32.mrf.mxu0
    %2734 = vdwg.mxu0
    %v2735 = vld [vmem:[#allocation19] sm:$0xff]
    %v2736 = vld [vmem:[#allocation19 + $0x8] sm:$0xff]
    %v2737 = vld [vmem:[#allocation19 + $0x10] sm:$0xff]
    %v2738 = vld [vmem:[#allocation19 + $0x18] sm:$0xff]
    %v2739 = vld [vmem:[#allocation19 + $0x20] sm:$0xff]
    %v2740 = vld [vmem:[#allocation19 + $0x28] sm:$0xff]
    %v2741 = vld [vmem:[#allocation19 + $0x30] sm:$0xff]
    %v2742 = vld [vmem:[#allocation19 + $0x38] sm:$0xff]
    %v2743 = vld [vmem:[#allocation19 + $0x40] sm:$0xff]
    %v2744 = vld [vmem:[#allocation19 + $0x48] sm:$0xff]
    %v2745 = vld [vmem:[#allocation19 + $0x50] sm:$0xff]
    %v2746 = vld [vmem:[#allocation19 + $0x58] sm:$0xff]
    %v2747 = vld [vmem:[#allocation19 + $0x60] sm:$0xff]
    %v2748 = vld [vmem:[#allocation19 + $0x68] sm:$0xff]
    %v2749 = vld [vmem:[#allocation19 + $0x70] sm:$0xff]
    %v2750 = vld [vmem:[#allocation19 + $0x78] sm:$0xff]
    %v2751 = vld [vmem:[#allocation19 + $0x80] sm:$0xff]
    %v2752 = vld [vmem:[#allocation19 + $0x88] sm:$0xff]
    %v2753 = vld [vmem:[#allocation19 + $0x90] sm:$0xff]
    %v2754 = vld [vmem:[#allocation19 + $0x98] sm:$0xff]
    %v2755 = vld [vmem:[#allocation19 + $0xa0] sm:$0xff]
    %v2756 = vld [vmem:[#allocation19 + $0xa8] sm:$0xff]
    %v2757 = vld [vmem:[#allocation19 + $0xb0] sm:$0xff]
    %v2758 = vld [vmem:[#allocation19 + $0xb8] sm:$0xff]
    %v2759 = vld [vmem:[#allocation19 + $0xc0] sm:$0xff]
    %v2760 = vld [vmem:[#allocation19 + $0xc8] sm:$0xff]
    %v2761 = vld [vmem:[#allocation19 + $0xd0] sm:$0xff]
    %v2762 = vld [vmem:[#allocation19 + $0xd8] sm:$0xff]
    %v2763 = vld [vmem:[#allocation19 + $0xe0] sm:$0xff]
    %v2764 = vld [vmem:[#allocation19 + $0xe8] sm:$0xff]
    %v2765 = vld [vmem:[#allocation19 + $0xf0] sm:$0xff]
    %v2766 = vld [vmem:[#allocation19 + $0xf8] sm:$0xff]
    %v2767 = vld [vmem:[#allocation19 + $0x100] sm:$0xff]
    %v2768 = vld [vmem:[#allocation19 + $0x108] sm:$0xff]
    %v2769 = vld [vmem:[#allocation19 + $0x110] sm:$0xff]
    %v2770 = vld [vmem:[#allocation19 + $0x118] sm:$0xff]
    %v2771 = vld [vmem:[#allocation19 + $0x120] sm:$0xff]
    %v2772 = vld [vmem:[#allocation19 + $0x128] sm:$0xff]
    %v2773 = vld [vmem:[#allocation19 + $0x130] sm:$0xff]
    %v2774 = vld [vmem:[#allocation19 + $0x138] sm:$0xff]
    %v2775 = vld [vmem:[#allocation19 + $0x140] sm:$0xff]
    %v2776 = vld [vmem:[#allocation19 + $0x148] sm:$0xff]
    %v2777 = vld [vmem:[#allocation19 + $0x150] sm:$0xff]
    %v2778 = vld [vmem:[#allocation19 + $0x158] sm:$0xff]
    %v2779 = vld [vmem:[#allocation19 + $0x160] sm:$0xff]
    %v2780 = vld [vmem:[#allocation19 + $0x168] sm:$0xff]
    %v2781 = vld [vmem:[#allocation19 + $0x170] sm:$0xff]
    %v2782 = vld [vmem:[#allocation19 + $0x178] sm:$0xff]
    %2783 = vmatprep.subr.mxu0 %v2781
    %2784 = vmatpush1.msra.mxu0 %v2780
    %2785 = vmatprep.subr.mxu0 %v2778
    %2786 = vmatpush1.msra.mxu0 %v2777
    %2787 = vmatprep.subr.mxu0 %v2775
    %2788 = vmatpush1.msra.mxu0 %v2774
    %2789 = vmatprep.subr.mxu0 %v2772
    %2790 = vmatpush1.msra.mxu0 %v2771
    %2791 = vmatprep.subr.mxu0 %v2769
    %2792 = vmatpush1.msra.mxu0 %v2768
    %2793 = vmatprep.subr.mxu0 %v2766
    %2794 = vmatpush1.msra.mxu0 %v2765
    %2795 = vmatprep.subr.mxu0 %v2763
    %2796 = vmatpush1.msra.mxu0 %v2762
    %2797 = vmatprep.subr.mxu0 %v2760
    %2798 = vmatpush1.msra.mxu0 %v2759
    %2799 = vmatprep.subr.mxu0 %v2757
    %2800 = vmatpush1.msra.mxu0 %v2756
    %2801 = vmatprep.subr.mxu0 %v2754
    %2802 = vmatpush1.msra.mxu0 %v2753
    %2803 = vmatprep.subr.mxu0 %v2751
    %2804 = vmatpush1.msra.mxu0 %v2750
    %2805 = vmatprep.subr.mxu0 %v2748
    %2806 = vmatpush1.msra.mxu0 %v2747
    %2807 = vmatprep.subr.mxu0 %v2745
    %2808 = vmatpush1.msra.mxu0 %v2744
    %2809 = vmatprep.subr.mxu0 %v2742
    %2810 = vmatpush1.msra.mxu0 %v2741
    %2811 = vmatprep.subr.mxu0 %v2739
    %2812 = vmatpush1.msra.mxu0 %v2738
    %2813 = vmatprep.subr.mxu0 %v2736
    %2814 = vmatpush1.msra.mxu0 %v2735
    %2815 = vmatprep.subr.mxu0 0.0
    %2816 = vmatpush2.msra.mxu0 0.0
    %2817 = vmatprep.subr.mxu0 0.0
    %2818 = vmatpush2.msra.mxu0 0.0
    %2819 = vmatprep.subr.mxu0 0.0
    %2820 = vmatpush2.msra.mxu0 0.0
    %2821 = vmatprep.subr.mxu0 0.0
    %2822 = vmatpush2.msra.mxu0 0.0
    %2823 = vmatprep.subr.mxu0 0.0
    %2824 = vmatpush2.msra.mxu0 0.0
    %2825 = vmatprep.subr.mxu0 0.0
    %2826 = vmatpush2.msra.mxu0 0.0
    %2827 = vmatprep.subr.mxu0 0.0
    %2828 = vmatpush2.msra.mxu0 0.0
    %2829 = vmatprep.subr.mxu0 0.0
    %2830 = vmatpush2.msra.mxu0 0.0
    %2831 = vmatprep.subr.mxu0 0.0
    %2832 = vmatpush2.msra.mxu0 0.0
    %2833 = vmatprep.subr.mxu0 0.0
    %2834 = vmatpush2.msra.mxu0 0.0
    %2835 = vmatprep.subr.mxu0 0.0
    %2836 = vmatpush2.msra.mxu0 0.0
    %2837 = vmatprep.subr.mxu0 0.0
    %2838 = vmatpush2.msra.mxu0 0.0
    %2839 = vmatprep.subr.mxu0 0.0
    %2840 = vmatpush2.msra.mxu0 0.0
    %2841 = vmatprep.subr.mxu0 0.0
    %2842 = vmatpush2.msra.mxu0 0.0
    %2843 = vmatprep.subr.mxu0 0.0
    %2844 = vmatpush2.msra.mxu0 0.0
    %2845 = vmatprep.subr.mxu0 0.0
    %2846 = vmatpush2.msra.mxu0 0.0
    %2847 = vmatprep.mubr.f32.mxu0 0.0
    %2848 = vmatmul.mubr.f32.gmra.mxu0 %v1976
    %v2849 = vpop.f32.mrf.mxu0
    %v2850 = vadd.f32 0.0, %v2849
    %v2851 = vpop.f32.mrf.mxu0
    %v2852 = vadd.f32 0.0, %v2851
    %2853 = vmatprep.mubr.f32.mxu0 0.0
    %2854 = vmatmul.mubr.f32.gmra.mxu0 %v1981
    %v2855 = vpop.f32.mrf.mxu0
    %v2856 = vadd.f32 0.0, %v2855
    %v2857 = vpop.f32.mrf.mxu0
    %v2858 = vadd.f32 0.0, %v2857
    %2859 = vmatprep.mubr.f32.mxu0 0.0
    %2860 = vmatmul.mubr.f32.gmra.mxu0 %v1986
    %v2861 = vpop.f32.mrf.mxu0
    %v2862 = vadd.f32 0.0, %v2861
    %v2863 = vpop.f32.mrf.mxu0
    %v2864 = vadd.f32 0.0, %v2863
    %2865 = vmatprep.mubr.f32.mxu0 0.0
    %2866 = vmatmul.mubr.f32.gmra.mxu0 %v1991
    %v2867 = vpop.f32.mrf.mxu0
    %v2868 = vadd.f32 0.0, %v2867
    %v2869 = vpop.f32.mrf.mxu0
    %v2870 = vadd.f32 0.0, %v2869
    %2871 = vmatprep.mubr.f32.mxu0 0.0
    %2872 = vmatmul.mubr.f32.gmra.mxu0 %v1996
    %v2873 = vpop.f32.mrf.mxu0
    %v2874 = vadd.f32 0.0, %v2873
    %v2875 = vpop.f32.mrf.mxu0
    %v2876 = vadd.f32 0.0, %v2875
    %2877 = vmatprep.mubr.f32.mxu0 0.0
    %2878 = vmatmul.mubr.f32.gmra.mxu0 %v2001
    %v2879 = vpop.f32.mrf.mxu0
    %v2880 = vadd.f32 0.0, %v2879
    %v2881 = vpop.f32.mrf.mxu0
    %v2882 = vadd.f32 0.0, %v2881
    %2883 = vmatprep.mubr.f32.mxu0 0.0
    %2884 = vmatmul.mubr.f32.gmra.mxu0 %v2006
    %v2885 = vpop.f32.mrf.mxu0
    %v2886 = vadd.f32 0.0, %v2885
    %v2887 = vpop.f32.mrf.mxu0
    %v2888 = vadd.f32 0.0, %v2887
    %2889 = vmatprep.mubr.f32.mxu0 0.0
    %2890 = vmatmul.mubr.f32.gmra.mxu0 %v2011
    %v2891 = vpop.f32.mrf.mxu0
    %v2892 = vadd.f32 0.0, %v2891
    %v2893 = vpop.f32.mrf.mxu0
    %v2894 = vadd.f32 0.0, %v2893
    %2895 = vdwg.mxu0
    %2896 = vmatprep.subr.mxu0 0.0
    %2897 = vmatpush1.msra.mxu0 %v2782
    %2898 = vmatprep.subr.mxu0 0.0
    %2899 = vmatpush1.msra.mxu0 %v2779
    %2900 = vmatprep.subr.mxu0 0.0
    %2901 = vmatpush1.msra.mxu0 %v2776
    %2902 = vmatprep.subr.mxu0 0.0
    %2903 = vmatpush1.msra.mxu0 %v2773
    %2904 = vmatprep.subr.mxu0 0.0
    %2905 = vmatpush1.msra.mxu0 %v2770
    %2906 = vmatprep.subr.mxu0 0.0
    %2907 = vmatpush1.msra.mxu0 %v2767
    %2908 = vmatprep.subr.mxu0 0.0
    %2909 = vmatpush1.msra.mxu0 %v2764
    %2910 = vmatprep.subr.mxu0 0.0
    %2911 = vmatpush1.msra.mxu0 %v2761
    %2912 = vmatprep.subr.mxu0 0.0
    %2913 = vmatpush1.msra.mxu0 %v2758
    %2914 = vmatprep.subr.mxu0 0.0
    %2915 = vmatpush1.msra.mxu0 %v2755
    %2916 = vmatprep.subr.mxu0 0.0
    %2917 = vmatpush1.msra.mxu0 %v2752
    %2918 = vmatprep.subr.mxu0 0.0
    %2919 = vmatpush1.msra.mxu0 %v2749
    %2920 = vmatprep.subr.mxu0 0.0
    %2921 = vmatpush1.msra.mxu0 %v2746
    %2922 = vmatprep.subr.mxu0 0.0
    %2923 = vmatpush1.msra.mxu0 %v2743
    %2924 = vmatprep.subr.mxu0 0.0
    %2925 = vmatpush1.msra.mxu0 %v2740
    %2926 = vmatprep.subr.mxu0 0.0
    %2927 = vmatpush1.msra.mxu0 %v2737
    %2928 = vmatprep.subr.mxu0 0.0
    %2929 = vmatpush2.msra.mxu0 0.0
    %2930 = vmatprep.subr.mxu0 0.0
    %2931 = vmatpush2.msra.mxu0 0.0
    %2932 = vmatprep.subr.mxu0 0.0
    %2933 = vmatpush2.msra.mxu0 0.0
    %2934 = vmatprep.subr.mxu0 0.0
    %2935 = vmatpush2.msra.mxu0 0.0
    %2936 = vmatprep.subr.mxu0 0.0
    %2937 = vmatpush2.msra.mxu0 0.0
    %2938 = vmatprep.subr.mxu0 0.0
    %2939 = vmatpush2.msra.mxu0 0.0
    %2940 = vmatprep.subr.mxu0 0.0
    %2941 = vmatpush2.msra.mxu0 0.0
    %2942 = vmatprep.subr.mxu0 0.0
    %2943 = vmatpush2.msra.mxu0 0.0
    %2944 = vmatprep.subr.mxu0 0.0
    %2945 = vmatpush2.msra.mxu0 0.0
    %2946 = vmatprep.subr.mxu0 0.0
    %2947 = vmatpush2.msra.mxu0 0.0
    %2948 = vmatprep.subr.mxu0 0.0
    %2949 = vmatpush2.msra.mxu0 0.0
    %2950 = vmatprep.subr.mxu0 0.0
    %2951 = vmatpush2.msra.mxu0 0.0
    %2952 = vmatprep.subr.mxu0 0.0
    %2953 = vmatpush2.msra.mxu0 0.0
    %2954 = vmatprep.subr.mxu0 0.0
    %2955 = vmatpush2.msra.mxu0 0.0
    %2956 = vmatprep.subr.mxu0 0.0
    %2957 = vmatpush2.msra.mxu0 0.0
    %2958 = vmatprep.subr.mxu0 0.0
    %2959 = vmatpush2.msra.mxu0 0.0
    %2960 = vmatprep.mubr.f32.mxu0 0.0
    %2961 = vmatmul.mubr.f32.gmra.mxu0 %v1976
    %v2962 = vpop.f32.mrf.mxu0
    %v2963 = vadd.f32 0.0, %v2962
    %v2964 = vpop.f32.mrf.mxu0
    %2965 = vmatprep.mubr.f32.mxu0 0.0
    %2966 = vmatmul.mubr.f32.gmra.mxu0 %v1981
    %v2967 = vpop.f32.mrf.mxu0
    %v2968 = vadd.f32 0.0, %v2967
    %v2969 = vpop.f32.mrf.mxu0
    %2970 = vmatprep.mubr.f32.mxu0 0.0
    %2971 = vmatmul.mubr.f32.gmra.mxu0 %v1986
    %v2972 = vpop.f32.mrf.mxu0
    %v2973 = vadd.f32 0.0, %v2972
    %v2974 = vpop.f32.mrf.mxu0
    %2975 = vmatprep.mubr.f32.mxu0 0.0
    %2976 = vmatmul.mubr.f32.gmra.mxu0 %v1991
    %v2977 = vpop.f32.mrf.mxu0
    %v2978 = vadd.f32 0.0, %v2977
    %v2979 = vpop.f32.mrf.mxu0
    %2980 = vmatprep.mubr.f32.mxu0 0.0
    %2981 = vmatmul.mubr.f32.gmra.mxu0 %v1996
    %v2982 = vpop.f32.mrf.mxu0
    %v2983 = vadd.f32 0.0, %v2982
    %v2984 = vpop.f32.mrf.mxu0
    %2985 = vmatprep.mubr.f32.mxu0 0.0
    %2986 = vmatmul.mubr.f32.gmra.mxu0 %v2001
    %v2987 = vpop.f32.mrf.mxu0
    %v2988 = vadd.f32 0.0, %v2987
    %v2989 = vpop.f32.mrf.mxu0
    %2990 = vmatprep.mubr.f32.mxu0 0.0
    %2991 = vmatmul.mubr.f32.gmra.mxu0 %v2006
    %v2992 = vpop.f32.mrf.mxu0
    %v2993 = vadd.f32 0.0, %v2992
    %v2994 = vpop.f32.mrf.mxu0
    %2995 = vmatprep.mubr.f32.mxu0 0.0
    %2996 = vmatmul.mubr.f32.gmra.mxu0 %v2011
    %v2997 = vpop.f32.mrf.mxu0
    %v2998 = vadd.f32 0.0, %v2997
    %v2999 = vpop.f32.mrf.mxu0
    %3000 = vdwg.mxu0
    %v3001 = vadd.f32 %v2584, %v2850
    %v3002 = vadd.f32 %v2586, %v2852
    %v3003 = vadd.f32 %v2697, %v2963
    %v3004 = vadd.f32 %v2590, %v2856
    %v3005 = vadd.f32 %v2592, %v2858
    %v3006 = vadd.f32 %v2702, %v2968
    %v3007 = vadd.f32 %v2596, %v2862
    %v3008 = vadd.f32 %v2598, %v2864
    %v3009 = vadd.f32 %v2707, %v2973
    %v3010 = vadd.f32 %v2602, %v2868
    %v3011 = vadd.f32 %v2604, %v2870
    %v3012 = vadd.f32 %v2712, %v2978
    %v3013 = vadd.f32 %v2608, %v2874
    %v3014 = vadd.f32 %v2610, %v2876
    %v3015 = vadd.f32 %v2717, %v2983
    %v3016 = vadd.f32 %v2614, %v2880
    %v3017 = vadd.f32 %v2616, %v2882
    %v3018 = vadd.f32 %v2722, %v2988
    %v3019 = vadd.f32 %v2620, %v2886
    %v3020 = vadd.f32 %v2622, %v2888
    %v3021 = vadd.f32 %v2727, %v2993
    %v3022 = vadd.f32 %v2626, %v2892
    %v3023 = vadd.f32 %v2628, %v2894
    %v3024 = vadd.f32 %v2732, %v2998
    %v3025 = vld [vmem:[#allocation20] sm:$0x7]
    %v3027 = vlaneseq
    %v3028 = vshrl.u32 %v3027, 7
    %v3029 = vsub.s32 0, %v3028
    %v3030 = vrot.slane %v3025, %v3029
    %v3031 = vlaneseq
    %v3032 = vshrl.u32 %v3031, 7
    %v3033 = vsub.s32 1, %v3032
    %v3034 = vrot.slane %v3025, %v3033
    %v3035 = vlaneseq
    %v3036 = vshrl.u32 %v3035, 7
    %v3037 = vsub.s32 2, %v3036
    %v3038 = vrot.slane %v3025, %v3037
    %v3042 = vadd.f32 %v3001, %v3030
    %v3043 = vadd.f32 %v3002, %v3034
    %v3044 = vadd.f32 %v3003, %v3038
    %v3045 = vadd.f32 %v3004, %v3030
    %v3046 = vadd.f32 %v3005, %v3034
    %v3047 = vadd.f32 %v3006, %v3038
    %v3048 = vadd.f32 %v3007, %v3030
    %v3049 = vadd.f32 %v3008, %v3034
    %v3050 = vadd.f32 %v3009, %v3038
    %v3051 = vadd.f32 %v3010, %v3030
    %v3052 = vadd.f32 %v3011, %v3034
    %v3053 = vadd.f32 %v3012, %v3038
    %v3054 = vadd.f32 %v3013, %v3030
    %v3055 = vadd.f32 %v3014, %v3034
    %v3056 = vadd.f32 %v3015, %v3038
    %v3057 = vadd.f32 %v3016, %v3030
    %v3058 = vadd.f32 %v3017, %v3034
    %v3059 = vadd.f32 %v3018, %v3038
    %v3060 = vadd.f32 %v3019, %v3030
    %v3061 = vadd.f32 %v3020, %v3034
    %v3062 = vadd.f32 %v3021, %v3038
    %v3063 = vadd.f32 %v3022, %v3030
    %v3064 = vadd.f32 %v3023, %v3034
    %v3065 = vadd.f32 %v3024, %v3038
    %3066 = vst [vmem:[#allocation22] sm:$0xff] %v3042
    %3067 = vst [vmem:[#allocation22 + $0x8] sm:$0xff] %v3043
    %3068 = vst [vmem:[#allocation22 + $0x10] sm:$0xff] %v3044
    %3069 = vst [vmem:[#allocation22 + $0x18] sm:$0xff] %v3045
    %3070 = vst [vmem:[#allocation22 + $0x20] sm:$0xff] %v3046
    %3071 = vst [vmem:[#allocation22 + $0x28] sm:$0xff] %v3047
    %3072 = vst [vmem:[#allocation22 + $0x30] sm:$0xff] %v3048
    %3073 = vst [vmem:[#allocation22 + $0x38] sm:$0xff] %v3049
    %3074 = vst [vmem:[#allocation22 + $0x40] sm:$0xff] %v3050
    %3075 = vst [vmem:[#allocation22 + $0x48] sm:$0xff] %v3051
    %3076 = vst [vmem:[#allocation22 + $0x50] sm:$0xff] %v3052
    %3077 = vst [vmem:[#allocation22 + $0x58] sm:$0xff] %v3053
    %3078 = vst [vmem:[#allocation22 + $0x60] sm:$0xff] %v3054
    %3079 = vst [vmem:[#allocation22 + $0x68] sm:$0xff] %v3055
    %3080 = vst [vmem:[#allocation22 + $0x70] sm:$0xff] %v3056
    %3081 = vst [vmem:[#allocation22 + $0x78] sm:$0xff] %v3057
    %3082 = vst [vmem:[#allocation22 + $0x80] sm:$0xff] %v3058
    %3083 = vst [vmem:[#allocation22 + $0x88] sm:$0xff] %v3059
    %3084 = vst [vmem:[#allocation22 + $0x90] sm:$0xff] %v3060
    %3085 = vst [vmem:[#allocation22 + $0x98] sm:$0xff] %v3061
    %3086 = vst [vmem:[#allocation22 + $0xa0] sm:$0xff] %v3062
    %3087 = vst [vmem:[#allocation22 + $0xa8] sm:$0xff] %v3063
    %3088 = vst [vmem:[#allocation22 + $0xb0] sm:$0xff] %v3064
    %3089 = vst [vmem:[#allocation22 + $0xb8] sm:$0xff] %v3065
    // Predicated region
    $region114: #{tpu_custom_call.1} parent=1 // pred_check
      _
    $region115: #{tpu_custom_call.1} parent=1 // pred_check_branch
      %3091 = sbr.rel (0) target = $region117
    $region116: #{tpu_custom_call.1} parent=1 // pred_region
      %s3093 = ssub.s32 3072, 3072
      %3094 = vsyncadd [#allocation4], %s3093
      %s3095 = sshll.u32 [#allocation22], 4
      %s3096 = int_to_ptr.vmem [resolvable:$true] %s3095
      %3101 = dma.vmem_to_hbm [thread:$0]  %s3096, 3072, %s16, [#allocation4], 384, 384, 24
    $region117: #{tpu_custom_call.1} parent=1 // pred_fallthru
      _
    // Predicated region
    $region118: #{tpu_custom_call.1} parent=1 // pred_check
      _
    $region119: #{tpu_custom_call.1} parent=1 // pred_check_branch
      %3103 = sbr.rel (0) target = $region121
    $region120: #{tpu_custom_call.1} parent=1 // pred_region
      %s3105 = ssub.s32 1024, 1024
      %3106 = vsyncadd [#allocation24], %s3105
      %s3107 = sshll.u32 [#allocation23], 4
      %s3108 = int_to_ptr.vmem [resolvable:$true] %s3107
      %3113 = dma.vmem_to_hbm [thread:$0]  %s3108, 1024, %s17, [#allocation24], 128, 128, 8
    $region121: #{tpu_custom_call.1} parent=1 // pred_fallthru
      _
    // Predicated region
    $region122: #{tpu_custom_call.1} parent=1 // pred_check
      _
    $region123: #{tpu_custom_call.1} parent=1 // pred_check_branch
      %3115 = sbr.rel (0) target = $region125
    $region124: #{tpu_custom_call.1} parent=1 // pred_region
      %3116 = dma.done [#allocation4], 3072
    $region125: #{tpu_custom_call.1} parent=1 // pred_fallthru
      _
    // Predicated region
    $region126: #{tpu_custom_call.1} parent=1 // pred_check
      _
    $region127: #{tpu_custom_call.1} parent=1 // pred_check_branch
      %3118 = sbr.rel (0) target = $region129
    $region128: #{tpu_custom_call.1} parent=1 // pred_region
      %3119 = dma.done [#allocation24], 1024
    $region129: #{tpu_custom_call.1} parent=1 // pred_fallthru
      _
    %3120 = vsyncpa [#allocation3], 1
    %3121 = vsyncpa [#allocation6], 1
    %3122 = vsyncpa [#allocation9], 1
    %3123 = vsyncpa [#allocation12], 1
    %3124 = vsyncpa [#allocation15], 1
    %3125 = vsyncpa [#allocation18], 1
    %3126 = vsyncpa [#allocation21], 1
    %3127 = vsyncpa [#allocation4], 1
    %3128 = vsyncpa [#allocation24], 1

</llo_original>
